<compile_context>
chip_gen: v6e
topology: v6e:2x2x1
jax: 0.10.0
libtpu: 0.0.40
codegen_flags: <defaults>
</compile_context>

<pallas_src>
import functools
import math

import jax
import jax.numpy as jnp
from jax.experimental import pallas as pl
from jax.experimental.pallas import tpu as pltpu

# ---- module hyper-parameters (PyTorch Model defaults) ---------------------------
INPUT_DIM = 84
EMBED_DIM = 128
OUTPUT_DIM = 128
ATTENTION_DIM = 256
NUM_BLOCKS = 6
NUM_HEADS = 4
CONV_KERNEL = 15
LN_EPS = 1e-5
BN_EPS = 1e-5
ASP_EPS = 1e-12


# =================================================================================
# small in-kernel helpers
# =================================================================================
def _ln(x, g, b, eps=LN_EPS):
    mu = jnp.mean(x, axis=-1, keepdims=True)
    var = jnp.mean(jnp.square(x - mu), axis=-1, keepdims=True)
    return (x - mu) * jax.lax.rsqrt(var + eps) * g + b


def _swish(x):
    return x * (1.0 / (1.0 + jnp.exp(-x)))


def _dot(a, w):
    # bf16 operands, f32 accumulation on the MXU.
    return jnp.dot(a.astype(jnp.bfloat16), w.astype(jnp.bfloat16),
                   preferred_element_type=jnp.float32)


def _m_tiling(M, max_single=512, tile=256):
    """Pick an M tile (rows) for (M, D) kernels; returns (TM, M_padded, num_tiles)."""
    Mp = ((M + 7) // 8) * 8
    if Mp <= max_single:
        return Mp, Mp, 1
    Mp = ((M + tile - 1) // tile) * tile
    return tile, Mp, Mp // tile


# =================================================================================
# Pallas kernels
# =================================================================================
def _embed_kernel(x_ref, w_ref, b_ref, g_ref, beta_ref, pos_ref, o_ref, *, scale):
    x = x_ref[0]                                           # (T, F)
    h = _dot(x, w_ref[...]) + b_ref[...]                   # cmvn already folded into w/b
    h = _ln(h, g_ref[...], beta_ref[...])
    o_ref[0] = h * scale + pos_ref[...]


def _ff_kernel(x_ref, g_ref, b_ref, w1_ref, b1_ref, w2_ref, b2_ref,
               gf_ref, bf_ref, o_ref, *, apply_final_ln):
    x = x_ref[...]                                         # (TM, D)
    h = _ln(x, g_ref[...], b_ref[...])
    h = _swish(_dot(h, w1_ref[...]) + b1_ref[...])
    h = _dot(h, w2_ref[...]) + b2_ref[...]
    y = x + 0.5 * h
    if apply_final_ln:
        y = _ln(y, gf_ref[...], bf_ref[...])
    o_ref[...] = y


def _mhsa_kernel(x_ref, g_ref, b_ref, wqkv_ref, bqkv_ref, wout_ref, bout_ref,
                 o_ref, *, num_heads):
    x = x_ref[0]                                           # (T, D)
    D = x.shape[-1]
    dk = D // num_heads
    h = _ln(x, g_ref[...], b_ref[...])
    qkv = _dot(h, wqkv_ref[...]) + bqkv_ref[...]           # (T, 3D); 1/sqrt(dk) folded into Wq
    q = qkv[:, :D]
    k = qkv[:, D:2 * D]
    v = qkv[:, 2 * D:]
    outs = []
    for hh in range(num_heads):                            # static unroll over heads
        sl = slice(hh * dk, (hh + 1) * dk)
        qh = q[:, sl].astype(jnp.bfloat16)
        kh = k[:, sl].astype(jnp.bfloat16)
        vh = v[:, sl].astype(jnp.bfloat16)
        s = jax.lax.dot_general(qh, kh, (((1,), (1,)), ((), ())),
                                preferred_element_type=jnp.float32)    # (T, T)
        s = s - jnp.max(s, axis=-1, keepdims=True)
        e = jnp.exp(s)
        p = e * pl.reciprocal(jnp.sum(e, axis=-1, keepdims=True), approx=True)
        outs.append(jnp.dot(p.astype(jnp.bfloat16), vh,
                            preferred_element_type=jnp.float32))
    o = jnp.concatenate(outs, axis=-1)                     # (T, D)
    y = _dot(o, wout_ref[...]) + bout_ref[...]
    o_ref[0] = x + y


def _conv_kernel(x_ref, g_ref, b_ref, w1_ref, b1_ref, wdw_ref, bdw_ref,
                 bns_ref, bnt_ref, w2_ref, b2_ref, o_ref, *, kernel_size):
    x = x_ref[0]                                           # (T, D)
    T, D = x.shape
    h = _ln(x, g_ref[...], b_ref[...])
    z = _dot(h, w1_ref[...]) + b1_ref[...]                 # pointwise conv1: (T, 2D)
    y = z[:, :D] * (1.0 / (1.0 + jnp.exp(-z[:, D:])))      # GLU
    pad = (kernel_size - 1) // 2
    zeros = jnp.zeros((pad, D), jnp.float32)
    yp = jnp.concatenate([zeros, y, zeros], axis=0)        # 'same' padding, (T+2*pad, D)
    wdw = wdw_ref[...]                                     # (K, D)
    acc = jnp.zeros((T, D), jnp.float32)
    for kk in range(kernel_size):                          # static 15-tap unroll
        acc = acc + yp[kk:kk + T, :] * wdw[kk:kk + 1, :]
    y = acc + bdw_ref[...]
    y = _swish(y * bns_ref[...] + bnt_ref[...])            # folded eval-mode BatchNorm + swish
    y = _dot(y, w2_ref[...]) + b2_ref[...]                 # pointwise conv2
    o_ref[0] = x + y


def _asp_kernel(x_ref, ang_ref, anb_ref, w1_ref, b1_ref, w2_ref, b2_ref, wf_ref,
                o_ref, *, eps):
    x = x_ref[0]                                           # (T, C)
    C = x.shape[-1]
    x = _ln(x, ang_ref[...], anb_ref[...])                 # encoder after_norm (fused in)
    # unweighted (full-length-mask) statistics
    mean = jnp.mean(x, axis=0, keepdims=True)              # (1, C)
    var = jnp.mean(jnp.square(x - mean), axis=0, keepdims=True)
    std = jnp.sqrt(jnp.maximum(var, eps))
    # attention MLP on concat([x, mean, std]) without materializing (T, 3C)
    a = (_dot(x, w1_ref[:C, :]) + _dot(mean, w1_ref[C:2 * C, :])
         + _dot(std, w1_ref[2 * C:, :]) + b1_ref[...])     # (T, C)
    a = jnp.tanh(a)
    s = _dot(a, w2_ref[...]) + b2_ref[...]                 # scores (T, C)
    s = s - jnp.max(s, axis=0, keepdims=True)              # softmax over time per channel
    e = jnp.exp(s)
    w = e * pl.reciprocal(jnp.sum(e, axis=0, keepdims=True), approx=True)
    mean2 = jnp.sum(w * x, axis=0, keepdims=True)          # (1, C)
    var2 = jnp.sum(w * jnp.square(x - mean2), axis=0, keepdims=True)
    std2 = jnp.sqrt(jnp.maximum(var2, eps))
    # final Linear(2C -> C, bias=False), lane-dense output
    o_ref[0] = _dot(mean2, wf_ref[:C, :]) + _dot(std2, wf_ref[C:, :])


# =================================================================================
# kernel wrappers
# =================================================================================
def embed_module(xt, p, pos):
    """xt: (B, T, F) -> (B, T, D). cmvn folded into p['w']/p['b']."""
    B, T, F = xt.shape
    D = pos.shape[-1]
    full = lambda shape: pl.BlockSpec(shape, lambda b: tuple(0 for _ in shape))
    return pl.pallas_call(
        functools.partial(_embed_kernel, scale=float(math.sqrt(D))),
        out_shape=jax.ShapeDtypeStruct((B, T, D), jnp.float32),
        grid=(B,),
        in_specs=[
            pl.BlockSpec((1, T, F), lambda b: (b, 0, 0)),
            full((F, D)), full((1, D)), full((1, D)), full((1, D)), full((T, D)),
        ],
        out_specs=pl.BlockSpec((1, T, D), lambda b: (b, 0, 0)),
        compiler_params=pltpu.CompilerParams(dimension_semantics=("parallel",)),
    )(xt, p["w"], p["b"], p["lng"], p["lnb"], pos)


def ff_module(x, p):
    """Fused LN + FF(swish) + 0.5*residual (+ optional trailing LN). x: (B, T, D)."""
    B, T, D = x.shape
    Dff = p["w1"].shape[1]
    apply_final = "gf" in p
    gf = p["gf"] if apply_final else p["g"]
    bf = p["bf"] if apply_final else p["b"]
    M = B * T
    TM, Mp, ntiles = _m_tiling(M)
    x2 = x.reshape(M, D)
    if Mp != M:
        x2 = jnp.pad(x2, ((0, Mp - M), (0, 0)))
    fixed = lambda shape: pl.BlockSpec(shape, lambda i: tuple(0 for _ in shape))
    out = pl.pallas_call(
        functools.partial(_ff_kernel, apply_final_ln=apply_final),
        out_shape=jax.ShapeDtypeStruct((Mp, D), jnp.float32),
        grid=(ntiles,),
        in_specs=[
            pl.BlockSpec((TM, D), lambda i: (i, 0)),
            fixed((1, D)), fixed((1, D)),
            fixed((D, Dff)), fixed((1, Dff)),
            fixed((Dff, D)), fixed((1, D)),
            fixed((1, D)), fixed((1, D)),
        ],
        out_specs=pl.BlockSpec((TM, D), lambda i: (i, 0)),
        compiler_params=pltpu.CompilerParams(dimension_semantics=("parallel",)),
    )(x2, p["g"], p["b"], p["w1"], p["b1"], p["w2"], p["b2"], gf, bf)
    return out[:M].reshape(B, T, D)


def mhsa_module(x, p):
    """Fused LN + QKV + attention + out-proj + residual. x: (B, T, D)."""
    B, T, D = x.shape
    fixed = lambda shape: pl.BlockSpec(shape, lambda b: tuple(0 for _ in shape))
    return pl.pallas_call(
        functools.partial(_mhsa_kernel, num_heads=NUM_HEADS),
        out_shape=jax.ShapeDtypeStruct((B, T, D), jnp.float32),
        grid=(B,),
        in_specs=[
            pl.BlockSpec((1, T, D), lambda b: (b, 0, 0)),
            fixed((1, D)), fixed((1, D)),
            fixed((D, 3 * D)), fixed((1, 3 * D)),
            fixed((D, D)), fixed((1, D)),
        ],
        out_specs=pl.BlockSpec((1, T, D), lambda b: (b, 0, 0)),
        compiler_params=pltpu.CompilerParams(dimension_semantics=("parallel",)),
    )(x, p["g"], p["b"], p["wqkv"], p["bqkv"], p["wout"], p["bout"])


def conv_module(x, p):
    """Fused LN + pw1/GLU + depthwise conv + folded-BN/swish + pw2 + residual."""
    B, T, D = x.shape
    fixed = lambda shape: pl.BlockSpec(shape, lambda b: tuple(0 for _ in shape))
    return pl.pallas_call(
        functools.partial(_conv_kernel, kernel_size=CONV_KERNEL),
        out_shape=jax.ShapeDtypeStruct((B, T, D), jnp.float32),
        grid=(B,),
        in_specs=[
            pl.BlockSpec((1, T, D), lambda b: (b, 0, 0)),
            fixed((1, D)), fixed((1, D)),
            fixed((D, 2 * D)), fixed((1, 2 * D)),
            fixed((CONV_KERNEL, D)), fixed((1, D)),
            fixed((1, D)), fixed((1, D)),
            fixed((D, D)), fixed((1, D)),
        ],
        out_specs=pl.BlockSpec((1, T, D), lambda b: (b, 0, 0)),
        compiler_params=pltpu.CompilerParams(dimension_semantics=("parallel",)),
    )(x, p["g"], p["b"], p["w1"], p["b1"], p["wdw"], p["bdw"],
      p["bns"], p["bnt"], p["w2"], p["b2"])


def asp_module(x, p):
    """Fused after_norm + attentive statistics pooling + final Linear. x: (B, T, C) -> (B, C)."""
    B, T, C = x.shape
    fixed = lambda shape: pl.BlockSpec(shape, lambda b: tuple(0 for _ in shape))
    out = pl.pallas_call(
        functools.partial(_asp_kernel, eps=ASP_EPS),
        out_shape=jax.ShapeDtypeStruct((B, 1, C), jnp.float32),
        grid=(B,),
        in_specs=[
            pl.BlockSpec((1, T, C), lambda b: (b, 0, 0)),
            fixed((1, C)), fixed((1, C)),
            fixed((3 * C, C)), fixed((1, C)),
            fixed((C, C)), fixed((1, C)),
            fixed((2 * C, C)),
        ],
        out_specs=pl.BlockSpec((1, 1, C), lambda b: (b, 0, 0)),
        compiler_params=pltpu.CompilerParams(dimension_semantics=("parallel",)),
    )(x, p["ang"], p["anb"], p["w1"], p["b1"], p["w2"], p["b2"], p["wf"])
    return out[:, 0, :]


# =================================================================================
# model glue (plain JAX: pos-encoding, block scan)
# =================================================================================
def sinusoid_pos_encoding(T, D):
    pos = jnp.arange(T, dtype=jnp.float32)[:, None]
    div = jnp.exp(jnp.arange(0, D, 2, dtype=jnp.float32) * (-math.log(10000.0) / D))
    pe = jnp.zeros((T, D), jnp.float32)
    pe = pe.at[:, 0::2].set(jnp.sin(pos * div))
    pe = pe.at[:, 1::2].set(jnp.cos(pos * div))
    return pe


def model_forward(params, x):
    """x: (B, 1, INPUT_DIM, T) -> (B, EMBED_DIM)."""
    x = jnp.squeeze(x, axis=1)                    # (B, INPUT_DIM, T) — safe for B == 1
    B, F, T = x.shape
    xt = jnp.transpose(x, (0, 2, 1))              # (B, T, F): time-major, channels-last
    pos = sinusoid_pos_encoding(T, OUTPUT_DIM)
    h = embed_module(xt, params["embed"], pos)    # (B, T, D)

    def step(c, blk):
        c = ff_module(c, blk["ff_mac"])           # macaron FF
        c = mhsa_module(c, blk["mhsa"])           # self-attention
        c = conv_module(c, blk["conv"])           # conv module
        c = ff_module(c, blk["ff"])               # FF + block-final LN (fused)
        return c, None

    h, _ = jax.lax.scan(step, h, params["blocks"])
    return asp_module(h, params["pool"])          # after_norm + ASP fused
    # NOTE: ce_layer (Linear(EMBED_DIM, 30000)) is only used in `inference`, not `forward`.


# =================================================================================
# parameter initialization (raw, torch-like) + kernel-ready folding
# =================================================================================
def init_params(key):
    keys = iter(jax.random.split(key, 1024))

    def nk():
        return next(keys)

    def dense(i, o):
        return {"w": jax.random.normal(nk(), (i, o), jnp.float32) / math.sqrt(i),
                "b": 0.01 * jax.random.normal(nk(), (o,), jnp.float32)}

    def ln(d):
        return {"g": jnp.ones((d,), jnp.float32), "b": jnp.zeros((d,), jnp.float32)}

    def bn(d):
        return {"g": jnp.ones((d,), jnp.float32), "b": jnp.zeros((d,), jnp.float32),
                "mean": jnp.zeros((d,), jnp.float32), "var": jnp.ones((d,), jnp.float32)}

    D, FF, F = OUTPUT_DIM, ATTENTION_DIM, INPUT_DIM

    def block():
        return {
            "ln_ff_macaron": ln(D),
            "ff_macaron_1": dense(D, FF), "ff_macaron_2": dense(FF, D),
            "ln_mha": ln(D),
            "attn_q": dense(D, D), "attn_k": dense(D, D),
            "attn_v": dense(D, D), "attn_out": dense(D, D),
            "ln_conv": ln(D),
            "conv_pw1": dense(D, 2 * D),
            "conv_dw_w": jax.random.normal(nk(), (CONV_KERNEL, D), jnp.float32) / math.sqrt(CONV_KERNEL),
            "conv_dw_b": 0.01 * jax.random.normal(nk(), (D,), jnp.float32),
            "conv_bn": bn(D),
            "conv_pw2": dense(D, D),
            "ln_ff": ln(D),
            "ff_1": dense(D, FF), "ff_2": dense(FF, D),
            "ln_final": ln(D),
        }

    return {
        "encoder": {
            "cmvn": bn(F),
            "embed": {"lin": dense(F, D), "ln": ln(D)},
            "blocks": [block() for _ in range(NUM_BLOCKS)],
            "after_norm": ln(D),
        },
        "pool": {
            "lin": dense(3 * EMBED_DIM, EMBED_DIM),
            "conv": dense(EMBED_DIM, EMBED_DIM),
            "final_w": jax.random.normal(nk(), (2 * EMBED_DIM, EMBED_DIM), jnp.float32)
                       / math.sqrt(2 * EMBED_DIM),
        },
    }


def prep_params(p):
    """Fold eval-mode BatchNorms, concat QKV (with 1/sqrt(dk) folded into Wq), cast
    matmul weights to bf16, reshape row params to (1, N) — everything kernel-ready."""
    D, F, C = OUTPUT_DIM, INPUT_DIM, EMBED_DIM
    bf16 = lambda w: w.astype(jnp.bfloat16)
    row = lambda v: v.reshape(1, -1).astype(jnp.float32)

    enc = p["encoder"]
    # cmvn (eval BatchNorm1d over channels) folded into the embed Linear
    cm = enc["cmvn"]
    scale = cm["g"] * jax.lax.rsqrt(cm["var"] + BN_EPS)
    shift = cm["b"] - cm["mean"] * scale
    w_e = enc["embed"]["lin"]["w"] * scale[:, None]
    b_e = enc["embed"]["lin"]["b"] + shift @ enc["embed"]["lin"]["w"]

    qs = 1.0 / math.sqrt(D // NUM_HEADS)

    def prep_block(blk):
        wqkv = jnp.concatenate(
            [blk["attn_q"]["w"] * qs, blk["attn_k"]["w"], blk["attn_v"]["w"]], axis=1)
        bqkv = jnp.concatenate(
            [blk["attn_q"]["b"] * qs, blk["attn_k"]["b"], blk["attn_v"]["b"]])
        bn = blk["conv_bn"]
        bns = bn["g"] * jax.lax.rsqrt(bn["var"] + BN_EPS)
        bnt = bn["b"] - bn["mean"] * bns
        return {
            "ff_mac": {"g": row(blk["ln_ff_macaron"]["g"]), "b": row(blk["ln_ff_macaron"]["b"]),
                       "w1": bf16(blk["ff_macaron_1"]["w"]), "b1": row(blk["ff_macaron_1"]["b"]),
                       "w2": bf16(blk["ff_macaron_2"]["w"]), "b2": row(blk["ff_macaron_2"]["b"])},
            "mhsa": {"g": row(blk["ln_mha"]["g"]), "b": row(blk["ln_mha"]["b"]),
                     "wqkv": bf16(wqkv), "bqkv": row(bqkv),
                     "wout": bf16(blk["attn_out"]["w"]), "bout": row(blk["attn_out"]["b"])},
            "conv": {"g": row(blk["ln_conv"]["g"]), "b": row(blk["ln_conv"]["b"]),
                     "w1": bf16(blk["conv_pw1"]["w"]), "b1": row(blk["conv_pw1"]["b"]),
                     "wdw": blk["conv_dw_w"].astype(jnp.float32), "bdw": row(blk["conv_dw_b"]),
                     "bns": row(bns), "bnt": row(bnt),
                     "w2": bf16(blk["conv_pw2"]["w"]), "b2": row(blk["conv_pw2"]["b"])},
            "ff": {"g": row(blk["ln_ff"]["g"]), "b": row(blk["ln_ff"]["b"]),
                   "w1": bf16(blk["ff_1"]["w"]), "b1": row(blk["ff_1"]["b"]),
                   "w2": bf16(blk["ff_2"]["w"]), "b2": row(blk["ff_2"]["b"]),
                   "gf": row(blk["ln_final"]["g"]), "bf": row(blk["ln_final"]["b"])},
        }

    prepped_blocks = [prep_block(blk) for blk in enc["blocks"]]
    stacked = jax.tree_util.tree_map(lambda *xs: jnp.stack(xs, 0), *prepped_blocks)

    pool = p["pool"]
    return {
        "embed": {"w": bf16(w_e), "b": row(b_e),
                  "lng": row(enc["embed"]["ln"]["g"]), "lnb": row(enc["embed"]["ln"]["b"])},
        "blocks": stacked,
        "pool": {"ang": row(enc["after_norm"]["g"]), "anb": row(enc["after_norm"]["b"]),
                 "w1": bf16(pool["lin"]["w"]), "b1": row(pool["lin"]["b"]),
                 "w2": bf16(pool["conv"]["w"]), "b2": row(pool["conv"]["b"]),
                 "wf": bf16(pool["final_w"])},
    }


# =================================================================================
if __name__ == "__main__":
    key = jax.random.PRNGKey(0)
    pkey, xkey = jax.random.split(key)
    params = prep_params(init_params(pkey))

    B, T = 2, 16
    x = jax.random.normal(xkey, (B, 1, INPUT_DIM, T), jnp.float32)

    fwd = jax.jit(model_forward)
    out = fwd(params, x)
    out = jax.block_until_ready(out)

    assert out.shape == (B, EMBED_DIM), out.shape
    assert bool(jnp.all(jnp.isfinite(out)))
    print("KERNEL_OK")
</pallas_src>

<mosaic_0001>
module attributes {stable_mosaic.version = 11 : i64} {
  func.func @_embed_kernel(%arg0: i32, %arg1: memref<1x16x84xf32, #tpu.memory_space<vmem>>, %arg2: memref<84x128xbf16, #tpu.memory_space<vmem>>, %arg3: memref<1x128xf32, #tpu.memory_space<vmem>>, %arg4: memref<1x128xf32, #tpu.memory_space<vmem>>, %arg5: memref<1x128xf32, #tpu.memory_space<vmem>>, %arg6: memref<16x128xf32, #tpu.memory_space<vmem>>, %arg7: memref<1x16x128xf32, #tpu.memory_space<vmem>>) attributes {dimension_semantics = [#tpu.dimension_semantics<parallel>], iteration_bounds = array<i64: 2>, scalar_prefetch = 0 : i64, scratch_operands = 0 : i64, tpu.core_type = #tpu.core_type<tc>, window_params = [{transform_indices = @transform_0, window_bounds = array<i64: 1, 16, 84>}, {pipeline_mode = #tpu.pipeline_mode<synchronous>, transform_indices = @transform_1, window_bounds = array<i64: 84, 128>}, {pipeline_mode = #tpu.pipeline_mode<synchronous>, transform_indices = @transform_2, window_bounds = array<i64: 1, 128>}, {pipeline_mode = #tpu.pipeline_mode<synchronous>, transform_indices = @transform_3, window_bounds = array<i64: 1, 128>}, {pipeline_mode = #tpu.pipeline_mode<synchronous>, transform_indices = @transform_4, window_bounds = array<i64: 1, 128>}, {pipeline_mode = #tpu.pipeline_mode<synchronous>, transform_indices = @transform_5, window_bounds = array<i64: 16, 128>}, {transform_indices = @transform_6, window_bounds = array<i64: 1, 16, 128>}]} {
    %c0 = arith.constant 0 : index
    %c0_0 = arith.constant 0 : index
    %c0_1 = arith.constant 0 : index
    %0 = vector.load %arg1[%c0, %c0_0, %c0_1] : memref<1x16x84xf32, #tpu.memory_space<vmem>>, vector<1x16x84xf32>
    %1 = vector.shape_cast %0 : vector<1x16x84xf32> to vector<16x84xf32>
    %c0_2 = arith.constant 0 : index
    %c0_3 = arith.constant 0 : index
    %2 = vector.load %arg2[%c0_2, %c0_3] : memref<84x128xbf16, #tpu.memory_space<vmem>>, vector<84x128xbf16>
    %3 = arith.truncf %1 : vector<16x84xf32> to vector<16x84xbf16>
    %cst = arith.constant dense<0.000000e+00> : vector<16x128xf32>
    %4 = tpu.matmul %3, %2, %cst {dimension_numbers = #tpu.dot_dimension_numbers<[1], [0], [0], [1], [0, 0, 1, 1], [], []>} : vector<16x84xbf16>, vector<84x128xbf16>, vector<16x128xf32> -> vector<16x128xf32>
    %c0_4 = arith.constant 0 : index
    %c0_5 = arith.constant 0 : index
    %5 = vector.load %arg3[%c0_4, %c0_5] : memref<1x128xf32, #tpu.memory_space<vmem>>, vector<1x128xf32>
    %6 = vector.broadcast %5 : vector<1x128xf32> to vector<16x128xf32>
    %7 = arith.addf %4, %6 : vector<16x128xf32>
    %c0_6 = arith.constant 0 : index
    %c0_7 = arith.constant 0 : index
    %8 = vector.load %arg4[%c0_6, %c0_7] : memref<1x128xf32, #tpu.memory_space<vmem>>, vector<1x128xf32>
    %c0_8 = arith.constant 0 : index
    %c0_9 = arith.constant 0 : index
    %9 = vector.load %arg5[%c0_8, %c0_9] : memref<1x128xf32, #tpu.memory_space<vmem>>, vector<1x128xf32>
    %cst_10 = arith.constant dense<0.000000e+00> : vector<16xf32>
    %10 = vector.multi_reduction <add>, %7, %cst_10 [1] : vector<16x128xf32> to vector<16xf32>
    %11 = vector.shape_cast %10 : vector<16xf32> to vector<16x1xf32>
    %cst_11 = arith.constant 1.280000e+02 : f32
    %12 = vector.broadcast %cst_11 : f32 to vector<16x1xf32>
    %13 = arith.divf %11, %12 : vector<16x1xf32>
    %14 = vector.broadcast %13 : vector<16x1xf32> to vector<16x128xf32>
    %15 = arith.subf %7, %14 : vector<16x128xf32>
    %16 = arith.mulf %15, %15 : vector<16x128xf32>
    %cst_12 = arith.constant dense<0.000000e+00> : vector<16xf32>
    %17 = vector.multi_reduction <add>, %16, %cst_12 [1] : vector<16x128xf32> to vector<16xf32>
    %18 = vector.shape_cast %17 : vector<16xf32> to vector<16x1xf32>
    %cst_13 = arith.constant 1.280000e+02 : f32
    %19 = vector.broadcast %cst_13 : f32 to vector<16x1xf32>
    %20 = arith.divf %18, %19 : vector<16x1xf32>
    %21 = vector.broadcast %13 : vector<16x1xf32> to vector<16x128xf32>
    %22 = arith.subf %7, %21 : vector<16x128xf32>
    %cst_14 = arith.constant 9.99999974E-6 : f32
    %23 = vector.broadcast %cst_14 : f32 to vector<16x1xf32>
    %24 = arith.addf %20, %23 : vector<16x1xf32>
    %25 = math.rsqrt %24 : vector<16x1xf32>
    %26 = vector.broadcast %25 : vector<16x1xf32> to vector<16x128xf32>
    %27 = arith.mulf %22, %26 : vector<16x128xf32>
    %28 = vector.broadcast %8 : vector<1x128xf32> to vector<16x128xf32>
    %29 = arith.mulf %27, %28 : vector<16x128xf32>
    %30 = vector.broadcast %9 : vector<1x128xf32> to vector<16x128xf32>
    %31 = arith.addf %29, %30 : vector<16x128xf32>
    %cst_15 = arith.constant 11.3137083 : f32
    %32 = vector.broadcast %cst_15 : f32 to vector<16x128xf32>
    %33 = arith.mulf %31, %32 : vector<16x128xf32>
    %c0_16 = arith.constant 0 : index
    %c0_17 = arith.constant 0 : index
    %34 = vector.load %arg6[%c0_16, %c0_17] : memref<16x128xf32, #tpu.memory_space<vmem>>, vector<16x128xf32>
    %35 = arith.addf %33, %34 : vector<16x128xf32>
    %c0_18 = arith.constant 0 : index
    %c0_19 = arith.constant 0 : index
    %c0_20 = arith.constant 0 : index
    %36 = vector.load %arg7[%c0_18, %c0_19, %c0_20] : memref<1x16x128xf32, #tpu.memory_space<vmem>>, vector<1x16x128xf32>
    %37 = vector.shape_cast %36 : vector<1x16x128xf32> to vector<16x128xf32>
    %38 = vector.shape_cast %35 : vector<16x128xf32> to vector<1x16x128xf32>
    tpu.vector_store %arg7[%c0_18, %c0_19, %c0_20], %38 {strides = array<i32>} : memref<1x16x128xf32, #tpu.memory_space<vmem>>, vector<1x16x128xf32>,
    return
  }
  func.func @transform_0(%arg0: i32) -> (i32, i32, i32) {
    %c0_i32 = arith.constant 0 : i32
    %c0_i32_0 = arith.constant 0 : i32
    %c0_i32_1 = arith.constant 0 : i32
    return %arg0, %c0_i32, %c0_i32_0 : i32, i32, i32
  }
  func.func @transform_1(%arg0: i32) -> (i32, i32) {
    %c0_i32 = arith.constant 0 : i32
    %c0_i32_0 = arith.constant 0 : i32
    %c0_i32_1 = arith.constant 0 : i32
    return %c0_i32, %c0_i32_0 : i32, i32
  }
  func.func @transform_2(%arg0: i32) -> (i32, i32) {
    %c0_i32 = arith.constant 0 : i32
    %c0_i32_0 = arith.constant 0 : i32
    %c0_i32_1 = arith.constant 0 : i32
    return %c0_i32, %c0_i32_0 : i32, i32
  }
  func.func @transform_3(%arg0: i32) -> (i32, i32) {
    %c0_i32 = arith.constant 0 : i32
    %c0_i32_0 = arith.constant 0 : i32
    %c0_i32_1 = arith.constant 0 : i32
    return %c0_i32, %c0_i32_0 : i32, i32
  }
  func.func @transform_4(%arg0: i32) -> (i32, i32) {
    %c0_i32 = arith.constant 0 : i32
    %c0_i32_0 = arith.constant 0 : i32
    %c0_i32_1 = arith.constant 0 : i32
    return %c0_i32, %c0_i32_0 : i32, i32
  }
  func.func @transform_5(%arg0: i32) -> (i32, i32) {
    %c0_i32 = arith.constant 0 : i32
    %c0_i32_0 = arith.constant 0 : i32
    %c0_i32_1 = arith.constant 0 : i32
    return %c0_i32, %c0_i32_0 : i32, i32
  }
  func.func @transform_6(%arg0: i32) -> (i32, i32, i32) {
    %c0_i32 = arith.constant 0 : i32
    %c0_i32_0 = arith.constant 0 : i32
    %c0_i32_1 = arith.constant 0 : i32
    return %arg0, %c0_i32, %c0_i32_0 : i32, i32, i32
  }
}

module attributes {stable_mosaic.version = 11 : i64} {
  func.func @_ff_kernel(%arg0: i32, %arg1: memref<32x128xf32, #tpu.memory_space<vmem>>, %arg2: memref<1x128xf32, #tpu.memory_space<vmem>>, %arg3: memref<1x128xf32, #tpu.memory_space<vmem>>, %arg4: memref<128x256xbf16, #tpu.memory_space<vmem>>, %arg5: memref<1x256xf32, #tpu.memory_space<vmem>>, %arg6: memref<256x128xbf16, #tpu.memory_space<vmem>>, %arg7: memref<1x128xf32, #tpu.memory_space<vmem>>, %arg8: memref<1x128xf32, #tpu.memory_space<vmem>>, %arg9: memref<1x128xf32, #tpu.memory_space<vmem>>, %arg10: memref<32x128xf32, #tpu.memory_space<vmem>>) attributes {dimension_semantics = [#tpu.dimension_semantics<parallel>], iteration_bounds = array<i64: 1>, scalar_prefetch = 0 : i64, scratch_operands = 0 : i64, tpu.core_type = #tpu.core_type<tc>, window_params = [{transform_indices = @transform_0, window_bounds = array<i64: 32, 128>}, {pipeline_mode = #tpu.pipeline_mode<synchronous>, transform_indices = @transform_1, window_bounds = array<i64: 1, 128>}, {pipeline_mode = #tpu.pipeline_mode<synchronous>, transform_indices = @transform_2, window_bounds = array<i64: 1, 128>}, {pipeline_mode = #tpu.pipeline_mode<synchronous>, transform_indices = @transform_3, window_bounds = array<i64: 128, 256>}, {pipeline_mode = #tpu.pipeline_mode<synchronous>, transform_indices = @transform_4, window_bounds = array<i64: 1, 256>}, {pipeline_mode = #tpu.pipeline_mode<synchronous>, transform_indices = @transform_5, window_bounds = array<i64: 256, 128>}, {pipeline_mode = #tpu.pipeline_mode<synchronous>, transform_indices = @transform_6, window_bounds = array<i64: 1, 128>}, {pipeline_mode = #tpu.pipeline_mode<synchronous>, transform_indices = @transform_7, window_bounds = array<i64: 1, 128>}, {pipeline_mode = #tpu.pipeline_mode<synchronous>, transform_indices = @transform_8, window_bounds = array<i64: 1, 128>}, {transform_indices = @transform_9, window_bounds = array<i64: 32, 128>}]} {
    %c0 = arith.constant 0 : index
    %c0_0 = arith.constant 0 : index
    %0 = vector.load %arg1[%c0, %c0_0] : memref<32x128xf32, #tpu.memory_space<vmem>>, vector<32x128xf32>
    %c0_1 = arith.constant 0 : index
    %c0_2 = arith.constant 0 : index
    %1 = vector.load %arg2[%c0_1, %c0_2] : memref<1x128xf32, #tpu.memory_space<vmem>>, vector<1x128xf32>
    %c0_3 = arith.constant 0 : index
    %c0_4 = arith.constant 0 : index
    %2 = vector.load %arg3[%c0_3, %c0_4] : memref<1x128xf32, #tpu.memory_space<vmem>>, vector<1x128xf32>
    %cst = arith.constant dense<0.000000e+00> : vector<32xf32>
    %3 = vector.multi_reduction <add>, %0, %cst [1] : vector<32x128xf32> to vector<32xf32>
    %4 = vector.shape_cast %3 : vector<32xf32> to vector<32x1xf32>
    %cst_5 = arith.constant 1.280000e+02 : f32
    %5 = vector.broadcast %cst_5 : f32 to vector<32x1xf32>
    %6 = arith.divf %4, %5 : vector<32x1xf32>
    %7 = vector.broadcast %6 : vector<32x1xf32> to vector<32x128xf32>
    %8 = arith.subf %0, %7 : vector<32x128xf32>
    %9 = arith.mulf %8, %8 : vector<32x128xf32>
    %cst_6 = arith.constant dense<0.000000e+00> : vector<32xf32>
    %10 = vector.multi_reduction <add>, %9, %cst_6 [1] : vector<32x128xf32> to vector<32xf32>
    %11 = vector.shape_cast %10 : vector<32xf32> to vector<32x1xf32>
    %cst_7 = arith.constant 1.280000e+02 : f32
    %12 = vector.broadcast %cst_7 : f32 to vector<32x1xf32>
    %13 = arith.divf %11, %12 : vector<32x1xf32>
    %14 = vector.broadcast %6 : vector<32x1xf32> to vector<32x128xf32>
    %15 = arith.subf %0, %14 : vector<32x128xf32>
    %cst_8 = arith.constant 9.99999974E-6 : f32
    %16 = vector.broadcast %cst_8 : f32 to vector<32x1xf32>
    %17 = arith.addf %13, %16 : vector<32x1xf32>
    %18 = math.rsqrt %17 : vector<32x1xf32>
    %19 = vector.broadcast %18 : vector<32x1xf32> to vector<32x128xf32>
    %20 = arith.mulf %15, %19 : vector<32x128xf32>
    %21 = vector.broadcast %1 : vector<1x128xf32> to vector<32x128xf32>
    %22 = arith.mulf %20, %21 : vector<32x128xf32>
    %23 = vector.broadcast %2 : vector<1x128xf32> to vector<32x128xf32>
    %24 = arith.addf %22, %23 : vector<32x128xf32>
    %c0_9 = arith.constant 0 : index
    %c0_10 = arith.constant 0 : index
    %25 = vector.load %arg4[%c0_9, %c0_10] : memref<128x256xbf16, #tpu.memory_space<vmem>>, vector<128x256xbf16>
    %26 = arith.truncf %24 : vector<32x128xf32> to vector<32x128xbf16>
    %cst_11 = arith.constant dense<0.000000e+00> : vector<32x256xf32>
    %27 = tpu.matmul %26, %25, %cst_11 {dimension_numbers = #tpu.dot_dimension_numbers<[1], [0], [0], [1], [0, 0, 1, 1], [], []>} : vector<32x128xbf16>, vector<128x256xbf16>, vector<32x256xf32> -> vector<32x256xf32>
    %c0_12 = arith.constant 0 : index
    %c0_13 = arith.constant 0 : index
    %28 = vector.load %arg5[%c0_12, %c0_13] : memref<1x256xf32, #tpu.memory_space<vmem>>, vector<1x256xf32>
    %29 = vector.broadcast %28 : vector<1x256xf32> to vector<32x256xf32>
    %30 = arith.addf %27, %29 : vector<32x256xf32>
    %cst_14 = arith.constant 0.000000e+00 : f32
    %31 = vector.broadcast %cst_14 : f32 to vector<32x256xf32>
    %32 = arith.subf %31, %30 : vector<32x256xf32>
    %33 = math.exp %32 : vector<32x256xf32>
    %cst_15 = arith.constant 1.000000e+00 : f32
    %34 = vector.broadcast %cst_15 : f32 to vector<32x256xf32>
    %35 = arith.addf %34, %33 : vector<32x256xf32>
    %cst_16 = arith.constant 1.000000e+00 : f32
    %36 = vector.broadcast %cst_16 : f32 to vector<32x256xf32>
    %37 = arith.divf %36, %35 : vector<32x256xf32>
    %38 = arith.mulf %30, %37 : vector<32x256xf32>
    %c0_17 = arith.constant 0 : index
    %c0_18 = arith.constant 0 : index
    %39 = vector.load %arg6[%c0_17, %c0_18] : memref<256x128xbf16, #tpu.memory_space<vmem>>, vector<256x128xbf16>
    %40 = arith.truncf %38 : vector<32x256xf32> to vector<32x256xbf16>
    %cst_19 = arith.constant dense<0.000000e+00> : vector<32x128xf32>
    %41 = tpu.matmul %40, %39, %cst_19 {dimension_numbers = #tpu.dot_dimension_numbers<[1], [0], [0], [1], [0, 0, 1, 1], [], []>} : vector<32x256xbf16>, vector<256x128xbf16>, vector<32x128xf32> -> vector<32x128xf32>
    %c0_20 = arith.constant 0 : index
    %c0_21 = arith.constant 0 : index
    %42 = vector.load %arg7[%c0_20, %c0_21] : memref<1x128xf32, #tpu.memory_space<vmem>>, vector<1x128xf32>
    %43 = vector.broadcast %42 : vector<1x128xf32> to vector<32x128xf32>
    %44 = arith.addf %41, %43 : vector<32x128xf32>
    %cst_22 = arith.constant 5.000000e-01 : f32
    %45 = vector.broadcast %cst_22 : f32 to vector<32x128xf32>
    %46 = arith.mulf %45, %44 : vector<32x128xf32>
    %47 = arith.addf %0, %46 : vector<32x128xf32>
    %c0_23 = arith.constant 0 : index
    %c0_24 = arith.constant 0 : index
    %48 = vector.load %arg10[%c0_23, %c0_24] : memref<32x128xf32, #tpu.memory_space<vmem>>, vector<32x128xf32>
    tpu.vector_store %arg10[%c0_23, %c0_24], %47 {strides = array<i32>} : memref<32x128xf32, #tpu.memory_space<vmem>>, vector<32x128xf32>,
    return
  }
  func.func @transform_0(%arg0: i32) -> (i32, i32) {
    %c0_i32 = arith.constant 0 : i32
    %c0_i32_0 = arith.constant 0 : i32
    return %arg0, %c0_i32 : i32, i32
  }
  func.func @transform_1(%arg0: i32) -> (i32, i32) {
    %c0_i32 = arith.constant 0 : i32
    %c0_i32_0 = arith.constant 0 : i32
    %c0_i32_1 = arith.constant 0 : i32
    return %c0_i32, %c0_i32_0 : i32, i32
  }
  func.func @transform_2(%arg0: i32) -> (i32, i32) {
    %c0_i32 = arith.constant 0 : i32
    %c0_i32_0 = arith.constant 0 : i32
    %c0_i32_1 = arith.constant 0 : i32
    return %c0_i32, %c0_i32_0 : i32, i32
  }
  func.func @transform_3(%arg0: i32) -> (i32, i32) {
    %c0_i32 = arith.constant 0 : i32
    %c0_i32_0 = arith.constant 0 : i32
    %c0_i32_1 = arith.constant 0 : i32
    return %c0_i32, %c0_i32_0 : i32, i32
  }
  func.func @transform_4(%arg0: i32) -> (i32, i32) {
    %c0_i32 = arith.constant 0 : i32
    %c0_i32_0 = arith.constant 0 : i32
    %c0_i32_1 = arith.constant 0 : i32
    return %c0_i32, %c0_i32_0 : i32, i32
  }
  func.func @transform_5(%arg0: i32) -> (i32, i32) {
    %c0_i32 = arith.constant 0 : i32
    %c0_i32_0 = arith.constant 0 : i32
    %c0_i32_1 = arith.constant 0 : i32
    return %c0_i32, %c0_i32_0 : i32, i32
  }
  func.func @transform_6(%arg0: i32) -> (i32, i32) {
    %c0_i32 = arith.constant 0 : i32
    %c0_i32_0 = arith.constant 0 : i32
    %c0_i32_1 = arith.constant 0 : i32
    return %c0_i32, %c0_i32_0 : i32, i32
  }
  func.func @transform_7(%arg0: i32) -> (i32, i32) {
    %c0_i32 = arith.constant 0 : i32
    %c0_i32_0 = arith.constant 0 : i32
    %c0_i32_1 = arith.constant 0 : i32
    return %c0_i32, %c0_i32_0 : i32, i32
  }
  func.func @transform_8(%arg0: i32) -> (i32, i32) {
    %c0_i32 = arith.constant 0 : i32
    %c0_i32_0 = arith.constant 0 : i32
    %c0_i32_1 = arith.constant 0 : i32
    return %c0_i32, %c0_i32_0 : i32, i32
  }
  func.func @transform_9(%arg0: i32) -> (i32, i32) {
    %c0_i32 = arith.constant 0 : i32
    %c0_i32_0 = arith.constant 0 : i32
    return %arg0, %c0_i32 : i32, i32
  }
}

module attributes {stable_mosaic.version = 11 : i64} {
  func.func @_mhsa_kernel(%arg0: i32, %arg1: memref<1x16x128xf32, #tpu.memory_space<vmem>>, %arg2: memref<1x128xf32, #tpu.memory_space<vmem>>, %arg3: memref<1x128xf32, #tpu.memory_space<vmem>>, %arg4: memref<128x384xbf16, #tpu.memory_space<vmem>>, %arg5: memref<1x384xf32, #tpu.memory_space<vmem>>, %arg6: memref<128x128xbf16, #tpu.memory_space<vmem>>, %arg7: memref<1x128xf32, #tpu.memory_space<vmem>>, %arg8: memref<1x16x128xf32, #tpu.memory_space<vmem>>) attributes {dimension_semantics = [#tpu.dimension_semantics<parallel>], iteration_bounds = array<i64: 2>, scalar_prefetch = 0 : i64, scratch_operands = 0 : i64, tpu.core_type = #tpu.core_type<tc>, window_params = [{transform_indices = @transform_0, window_bounds = array<i64: 1, 16, 128>}, {pipeline_mode = #tpu.pipeline_mode<synchronous>, transform_indices = @transform_1, window_bounds = array<i64: 1, 128>}, {pipeline_mode = #tpu.pipeline_mode<synchronous>, transform_indices = @transform_2, window_bounds = array<i64: 1, 128>}, {pipeline_mode = #tpu.pipeline_mode<synchronous>, transform_indices = @transform_3, window_bounds = array<i64: 128, 384>}, {pipeline_mode = #tpu.pipeline_mode<synchronous>, transform_indices = @transform_4, window_bounds = array<i64: 1, 384>}, {pipeline_mode = #tpu.pipeline_mode<synchronous>, transform_indices = @transform_5, window_bounds = array<i64: 128, 128>}, {pipeline_mode = #tpu.pipeline_mode<synchronous>, transform_indices = @transform_6, window_bounds = array<i64: 1, 128>}, {transform_indices = @transform_7, window_bounds = array<i64: 1, 16, 128>}]} {
    %c0 = arith.constant 0 : index
    %c0_0 = arith.constant 0 : index
    %c0_1 = arith.constant 0 : index
    %0 = vector.load %arg1[%c0, %c0_0, %c0_1] : memref<1x16x128xf32, #tpu.memory_space<vmem>>, vector<1x16x128xf32>
    %1 = vector.shape_cast %0 : vector<1x16x128xf32> to vector<16x128xf32>
    %c0_2 = arith.constant 0 : index
    %c0_3 = arith.constant 0 : index
    %2 = vector.load %arg2[%c0_2, %c0_3] : memref<1x128xf32, #tpu.memory_space<vmem>>, vector<1x128xf32>
    %c0_4 = arith.constant 0 : index
    %c0_5 = arith.constant 0 : index
    %3 = vector.load %arg3[%c0_4, %c0_5] : memref<1x128xf32, #tpu.memory_space<vmem>>, vector<1x128xf32>
    %cst = arith.constant dense<0.000000e+00> : vector<16xf32>
    %4 = vector.multi_reduction <add>, %1, %cst [1] : vector<16x128xf32> to vector<16xf32>
    %5 = vector.shape_cast %4 : vector<16xf32> to vector<16x1xf32>
    %cst_6 = arith.constant 1.280000e+02 : f32
    %6 = vector.broadcast %cst_6 : f32 to vector<16x1xf32>
    %7 = arith.divf %5, %6 : vector<16x1xf32>
    %8 = vector.broadcast %7 : vector<16x1xf32> to vector<16x128xf32>
    %9 = arith.subf %1, %8 : vector<16x128xf32>
    %10 = arith.mulf %9, %9 : vector<16x128xf32>
    %cst_7 = arith.constant dense<0.000000e+00> : vector<16xf32>
    %11 = vector.multi_reduction <add>, %10, %cst_7 [1] : vector<16x128xf32> to vector<16xf32>
    %12 = vector.shape_cast %11 : vector<16xf32> to vector<16x1xf32>
    %cst_8 = arith.constant 1.280000e+02 : f32
    %13 = vector.broadcast %cst_8 : f32 to vector<16x1xf32>
    %14 = arith.divf %12, %13 : vector<16x1xf32>
    %15 = vector.broadcast %7 : vector<16x1xf32> to vector<16x128xf32>
    %16 = arith.subf %1, %15 : vector<16x128xf32>
    %cst_9 = arith.constant 9.99999974E-6 : f32
    %17 = vector.broadcast %cst_9 : f32 to vector<16x1xf32>
    %18 = arith.addf %14, %17 : vector<16x1xf32>
    %19 = math.rsqrt %18 : vector<16x1xf32>
    %20 = vector.broadcast %19 : vector<16x1xf32> to vector<16x128xf32>
    %21 = arith.mulf %16, %20 : vector<16x128xf32>
    %22 = vector.broadcast %2 : vector<1x128xf32> to vector<16x128xf32>
    %23 = arith.mulf %21, %22 : vector<16x128xf32>
    %24 = vector.broadcast %3 : vector<1x128xf32> to vector<16x128xf32>
    %25 = arith.addf %23, %24 : vector<16x128xf32>
    %c0_10 = arith.constant 0 : index
    %c0_11 = arith.constant 0 : index
    %26 = vector.load %arg4[%c0_10, %c0_11] : memref<128x384xbf16, #tpu.memory_space<vmem>>, vector<128x384xbf16>
    %27 = arith.truncf %25 : vector<16x128xf32> to vector<16x128xbf16>
    %cst_12 = arith.constant dense<0.000000e+00> : vector<16x384xf32>
    %28 = tpu.matmul %27, %26, %cst_12 {dimension_numbers = #tpu.dot_dimension_numbers<[1], [0], [0], [1], [0, 0, 1, 1], [], []>} : vector<16x128xbf16>, vector<128x384xbf16>, vector<16x384xf32> -> vector<16x384xf32>
    %c0_13 = arith.constant 0 : index
    %c0_14 = arith.constant 0 : index
    %29 = vector.load %arg5[%c0_13, %c0_14] : memref<1x384xf32, #tpu.memory_space<vmem>>, vector<1x384xf32>
    %30 = vector.broadcast %29 : vector<1x384xf32> to vector<16x384xf32>
    %31 = arith.addf %28, %30 : vector<16x384xf32>
    %32 = vector.extract_strided_slice %31 {offsets = [0, 0], sizes = [16, 128], strides = [1, 1]} : vector<16x384xf32> to vector<16x128xf32>
    %33 = vector.extract_strided_slice %31 {offsets = [0, 128], sizes = [16, 128], strides = [1, 1]} : vector<16x384xf32> to vector<16x128xf32>
    %34 = vector.extract_strided_slice %31 {offsets = [0, 256], sizes = [16, 128], strides = [1, 1]} : vector<16x384xf32> to vector<16x128xf32>
    %35 = vector.extract_strided_slice %32 {offsets = [0, 0], sizes = [16, 32], strides = [1, 1]} : vector<16x128xf32> to vector<16x32xf32>
    %36 = arith.truncf %35 : vector<16x32xf32> to vector<16x32xbf16>
    %37 = vector.extract_strided_slice %33 {offsets = [0, 0], sizes = [16, 32], strides = [1, 1]} : vector<16x128xf32> to vector<16x32xf32>
    %38 = arith.truncf %37 : vector<16x32xf32> to vector<16x32xbf16>
    %39 = vector.extract_strided_slice %34 {offsets = [0, 0], sizes = [16, 32], strides = [1, 1]} : vector<16x128xf32> to vector<16x32xf32>
    %40 = arith.truncf %39 : vector<16x32xf32> to vector<16x32xbf16>
    %cst_15 = arith.constant dense<0.000000e+00> : vector<16x16xf32>
    %41 = tpu.matmul %36, %38, %cst_15 {dimension_numbers = #tpu.dot_dimension_numbers<[1], [1], [0], [0], [0, 0, 1, 0], [], []>} : vector<16x32xbf16>, vector<16x32xbf16>, vector<16x16xf32> -> vector<16x16xf32>
    %cst_16 = arith.constant dense<0xFF800000> : vector<16xf32>
    %42 = vector.multi_reduction <maximumf>, %41, %cst_16 [1] : vector<16x16xf32> to vector<16xf32>
    %43 = vector.shape_cast %42 : vector<16xf32> to vector<16x1xf32>
    %44 = vector.broadcast %43 : vector<16x1xf32> to vector<16x16xf32>
    %45 = arith.subf %41, %44 : vector<16x16xf32>
    %46 = math.exp %45 : vector<16x16xf32>
    %cst_17 = arith.constant dense<0.000000e+00> : vector<16xf32>
    %47 = vector.multi_reduction <add>, %46, %cst_17 [1] : vector<16x16xf32> to vector<16xf32>
    %48 = vector.shape_cast %47 : vector<16xf32> to vector<16x1xf32>
    %49 = tpu.reciprocal %48 {approx = true} : vector<16x1xf32> -> vector<16x1xf32>
    %50 = vector.broadcast %49 : vector<16x1xf32> to vector<16x16xf32>
    %51 = arith.mulf %46, %50 : vector<16x16xf32>
    %52 = arith.truncf %51 : vector<16x16xf32> to vector<16x16xbf16>
    %cst_18 = arith.constant dense<0.000000e+00> : vector<16x32xf32>
    %53 = tpu.matmul %52, %40, %cst_18 {dimension_numbers = #tpu.dot_dimension_numbers<[1], [0], [0], [1], [0, 0, 1, 1], [], []>} : vector<16x16xbf16>, vector<16x32xbf16>, vector<16x32xf32> -> vector<16x32xf32>
    %54 = vector.extract_strided_slice %32 {offsets = [0, 32], sizes = [16, 32], strides = [1, 1]} : vector<16x128xf32> to vector<16x32xf32>
    %55 = arith.truncf %54 : vector<16x32xf32> to vector<16x32xbf16>
    %56 = vector.extract_strided_slice %33 {offsets = [0, 32], sizes = [16, 32], strides = [1, 1]} : vector<16x128xf32> to vector<16x32xf32>
    %57 = arith.truncf %56 : vector<16x32xf32> to vector<16x32xbf16>
    %58 = vector.extract_strided_slice %34 {offsets = [0, 32], sizes = [16, 32], strides = [1, 1]} : vector<16x128xf32> to vector<16x32xf32>
    %59 = arith.truncf %58 : vector<16x32xf32> to vector<16x32xbf16>
    %cst_19 = arith.constant dense<0.000000e+00> : vector<16x16xf32>
    %60 = tpu.matmul %55, %57, %cst_19 {dimension_numbers = #tpu.dot_dimension_numbers<[1], [1], [0], [0], [0, 0, 1, 0], [], []>} : vector<16x32xbf16>, vector<16x32xbf16>, vector<16x16xf32> -> vector<16x16xf32>
    %cst_20 = arith.constant dense<0xFF800000> : vector<16xf32>
    %61 = vector.multi_reduction <maximumf>, %60, %cst_20 [1] : vector<16x16xf32> to vector<16xf32>
    %62 = vector.shape_cast %61 : vector<16xf32> to vector<16x1xf32>
    %63 = vector.broadcast %62 : vector<16x1xf32> to vector<16x16xf32>
    %64 = arith.subf %60, %63 : vector<16x16xf32>
    %65 = math.exp %64 : vector<16x16xf32>
    %cst_21 = arith.constant dense<0.000000e+00> : vector<16xf32>
    %66 = vector.multi_reduction <add>, %65, %cst_21 [1] : vector<16x16xf32> to vector<16xf32>
    %67 = vector.shape_cast %66 : vector<16xf32> to vector<16x1xf32>
    %68 = tpu.reciprocal %67 {approx = true} : vector<16x1xf32> -> vector<16x1xf32>
    %69 = vector.broadcast %68 : vector<16x1xf32> to vector<16x16xf32>
    %70 = arith.mulf %65, %69 : vector<16x16xf32>
    %71 = arith.truncf %70 : vector<16x16xf32> to vector<16x16xbf16>
    %cst_22 = arith.constant dense<0.000000e+00> : vector<16x32xf32>
    %72 = tpu.matmul %71, %59, %cst_22 {dimension_numbers = #tpu.dot_dimension_numbers<[1], [0], [0], [1], [0, 0, 1, 1], [], []>} : vector<16x16xbf16>, vector<16x32xbf16>, vector<16x32xf32> -> vector<16x32xf32>
    %73 = vector.extract_strided_slice %32 {offsets = [0, 64], sizes = [16, 32], strides = [1, 1]} : vector<16x128xf32> to vector<16x32xf32>
    %74 = arith.truncf %73 : vector<16x32xf32> to vector<16x32xbf16>
    %75 = vector.extract_strided_slice %33 {offsets = [0, 64], sizes = [16, 32], strides = [1, 1]} : vector<16x128xf32> to vector<16x32xf32>
    %76 = arith.truncf %75 : vector<16x32xf32> to vector<16x32xbf16>
    %77 = vector.extract_strided_slice %34 {offsets = [0, 64], sizes = [16, 32], strides = [1, 1]} : vector<16x128xf32> to vector<16x32xf32>
    %78 = arith.truncf %77 : vector<16x32xf32> to vector<16x32xbf16>
    %cst_23 = arith.constant dense<0.000000e+00> : vector<16x16xf32>
    %79 = tpu.matmul %74, %76, %cst_23 {dimension_numbers = #tpu.dot_dimension_numbers<[1], [1], [0], [0], [0, 0, 1, 0], [], []>} : vector<16x32xbf16>, vector<16x32xbf16>, vector<16x16xf32> -> vector<16x16xf32>
    %cst_24 = arith.constant dense<0xFF800000> : vector<16xf32>
    %80 = vector.multi_reduction <maximumf>, %79, %cst_24 [1] : vector<16x16xf32> to vector<16xf32>
    %81 = vector.shape_cast %80 : vector<16xf32> to vector<16x1xf32>
    %82 = vector.broadcast %81 : vector<16x1xf32> to vector<16x16xf32>
    %83 = arith.subf %79, %82 : vector<16x16xf32>
    %84 = math.exp %83 : vector<16x16xf32>
    %cst_25 = arith.constant dense<0.000000e+00> : vector<16xf32>
    %85 = vector.multi_reduction <add>, %84, %cst_25 [1] : vector<16x16xf32> to vector<16xf32>
    %86 = vector.shape_cast %85 : vector<16xf32> to vector<16x1xf32>
    %87 = tpu.reciprocal %86 {approx = true} : vector<16x1xf32> -> vector<16x1xf32>
    %88 = vector.broadcast %87 : vector<16x1xf32> to vector<16x16xf32>
    %89 = arith.mulf %84, %88 : vector<16x16xf32>
    %90 = arith.truncf %89 : vector<16x16xf32> to vector<16x16xbf16>
    %cst_26 = arith.constant dense<0.000000e+00> : vector<16x32xf32>
    %91 = tpu.matmul %90, %78, %cst_26 {dimension_numbers = #tpu.dot_dimension_numbers<[1], [0], [0], [1], [0, 0, 1, 1], [], []>} : vector<16x16xbf16>, vector<16x32xbf16>, vector<16x32xf32> -> vector<16x32xf32>
    %92 = vector.extract_strided_slice %32 {offsets = [0, 96], sizes = [16, 32], strides = [1, 1]} : vector<16x128xf32> to vector<16x32xf32>
    %93 = arith.truncf %92 : vector<16x32xf32> to vector<16x32xbf16>
    %94 = vector.extract_strided_slice %33 {offsets = [0, 96], sizes = [16, 32], strides = [1, 1]} : vector<16x128xf32> to vector<16x32xf32>
    %95 = arith.truncf %94 : vector<16x32xf32> to vector<16x32xbf16>
    %96 = vector.extract_strided_slice %34 {offsets = [0, 96], sizes = [16, 32], strides = [1, 1]} : vector<16x128xf32> to vector<16x32xf32>
    %97 = arith.truncf %96 : vector<16x32xf32> to vector<16x32xbf16>
    %cst_27 = arith.constant dense<0.000000e+00> : vector<16x16xf32>
    %98 = tpu.matmul %93, %95, %cst_27 {dimension_numbers = #tpu.dot_dimension_numbers<[1], [1], [0], [0], [0, 0, 1, 0], [], []>} : vector<16x32xbf16>, vector<16x32xbf16>, vector<16x16xf32> -> vector<16x16xf32>
    %cst_28 = arith.constant dense<0xFF800000> : vector<16xf32>
    %99 = vector.multi_reduction <maximumf>, %98, %cst_28 [1] : vector<16x16xf32> to vector<16xf32>
    %100 = vector.shape_cast %99 : vector<16xf32> to vector<16x1xf32>
    %101 = vector.broadcast %100 : vector<16x1xf32> to vector<16x16xf32>
    %102 = arith.subf %98, %101 : vector<16x16xf32>
    %103 = math.exp %102 : vector<16x16xf32>
    %cst_29 = arith.constant dense<0.000000e+00> : vector<16xf32>
    %104 = vector.multi_reduction <add>, %103, %cst_29 [1] : vector<16x16xf32> to vector<16xf32>
    %105 = vector.shape_cast %104 : vector<16xf32> to vector<16x1xf32>
    %106 = tpu.reciprocal %105 {approx = true} : vector<16x1xf32> -> vector<16x1xf32>
    %107 = vector.broadcast %106 : vector<16x1xf32> to vector<16x16xf32>
    %108 = arith.mulf %103, %107 : vector<16x16xf32>
    %109 = arith.truncf %108 : vector<16x16xf32> to vector<16x16xbf16>
    %cst_30 = arith.constant dense<0.000000e+00> : vector<16x32xf32>
    %110 = tpu.matmul %109, %97, %cst_30 {dimension_numbers = #tpu.dot_dimension_numbers<[1], [0], [0], [1], [0, 0, 1, 1], [], []>} : vector<16x16xbf16>, vector<16x32xbf16>, vector<16x32xf32> -> vector<16x32xf32>
    %111 = tpu.concatenate %53, %72, %91, %110 in 1 : vector<16x32xf32>, vector<16x32xf32>, vector<16x32xf32>, vector<16x32xf32> -> vector<16x128xf32>
    %c0_31 = arith.constant 0 : index
    %c0_32 = arith.constant 0 : index
    %112 = vector.load %arg6[%c0_31, %c0_32] : memref<128x128xbf16, #tpu.memory_space<vmem>>, vector<128x128xbf16>
    %113 = arith.truncf %111 : vector<16x128xf32> to vector<16x128xbf16>
    %cst_33 = arith.constant dense<0.000000e+00> : vector<16x128xf32>
    %114 = tpu.matmul %113, %112, %cst_33 {dimension_numbers = #tpu.dot_dimension_numbers<[1], [0], [0], [1], [0, 0, 1, 1], [], []>} : vector<16x128xbf16>, vector<128x128xbf16>, vector<16x128xf32> -> vector<16x128xf32>
    %c0_34 = arith.constant 0 : index
    %c0_35 = arith.constant 0 : index
    %115 = vector.load %arg7[%c0_34, %c0_35] : memref<1x128xf32, #tpu.memory_space<vmem>>, vector<1x128xf32>
    %116 = vector.broadcast %115 : vector<1x128xf32> to vector<16x128xf32>
    %117 = arith.addf %114, %116 : vector<16x128xf32>
    %118 = arith.addf %1, %117 : vector<16x128xf32>
    %c0_36 = arith.constant 0 : index
    %c0_37 = arith.constant 0 : index
    %c0_38 = arith.constant 0 : index
    %119 = vector.load %arg8[%c0_36, %c0_37, %c0_38] : memref<1x16x128xf32, #tpu.memory_space<vmem>>, vector<1x16x128xf32>
    %120 = vector.shape_cast %119 : vector<1x16x128xf32> to vector<16x128xf32>
    %121 = vector.shape_cast %118 : vector<16x128xf32> to vector<1x16x128xf32>
    tpu.vector_store %arg8[%c0_36, %c0_37, %c0_38], %121 {strides = array<i32>} : memref<1x16x128xf32, #tpu.memory_space<vmem>>, vector<1x16x128xf32>,
    return
  }
  func.func @transform_0(%arg0: i32) -> (i32, i32, i32) {
    %c0_i32 = arith.constant 0 : i32
    %c0_i32_0 = arith.constant 0 : i32
    %c0_i32_1 = arith.constant 0 : i32
    return %arg0, %c0_i32, %c0_i32_0 : i32, i32, i32
  }
  func.func @transform_1(%arg0: i32) -> (i32, i32) {
    %c0_i32 = arith.constant 0 : i32
    %c0_i32_0 = arith.constant 0 : i32
    %c0_i32_1 = arith.constant 0 : i32
    return %c0_i32, %c0_i32_0 : i32, i32
  }
  func.func @transform_2(%arg0: i32) -> (i32, i32) {
    %c0_i32 = arith.constant 0 : i32
    %c0_i32_0 = arith.constant 0 : i32
    %c0_i32_1 = arith.constant 0 : i32
    return %c0_i32, %c0_i32_0 : i32, i32
  }
  func.func @transform_3(%arg0: i32) -> (i32, i32) {
    %c0_i32 = arith.constant 0 : i32
    %c0_i32_0 = arith.constant 0 : i32
    %c0_i32_1 = arith.constant 0 : i32
    return %c0_i32, %c0_i32_0 : i32, i32
  }
  func.func @transform_4(%arg0: i32) -> (i32, i32) {
    %c0_i32 = arith.constant 0 : i32
    %c0_i32_0 = arith.constant 0 : i32
    %c0_i32_1 = arith.constant 0 : i32
    return %c0_i32, %c0_i32_0 : i32, i32
  }
  func.func @transform_5(%arg0: i32) -> (i32, i32) {
    %c0_i32 = arith.constant 0 : i32
    %c0_i32_0 = arith.constant 0 : i32
    %c0_i32_1 = arith.constant 0 : i32
    return %c0_i32, %c0_i32_0 : i32, i32
  }
  func.func @transform_6(%arg0: i32) -> (i32, i32) {
    %c0_i32 = arith.constant 0 : i32
    %c0_i32_0 = arith.constant 0 : i32
    %c0_i32_1 = arith.constant 0 : i32
    return %c0_i32, %c0_i32_0 : i32, i32
  }
  func.func @transform_7(%arg0: i32) -> (i32, i32, i32) {
    %c0_i32 = arith.constant 0 : i32
    %c0_i32_0 = arith.constant 0 : i32
    %c0_i32_1 = arith.constant 0 : i32
    return %arg0, %c0_i32, %c0_i32_0 : i32, i32, i32
  }
}

module attributes {stable_mosaic.version = 11 : i64} {
  func.func @_conv_kernel(%arg0: i32, %arg1: memref<1x16x128xf32, #tpu.memory_space<vmem>>, %arg2: memref<1x128xf32, #tpu.memory_space<vmem>>, %arg3: memref<1x128xf32, #tpu.memory_space<vmem>>, %arg4: memref<128x256xbf16, #tpu.memory_space<vmem>>, %arg5: memref<1x256xf32, #tpu.memory_space<vmem>>, %arg6: memref<15x128xf32, #tpu.memory_space<vmem>>, %arg7: memref<1x128xf32, #tpu.memory_space<vmem>>, %arg8: memref<1x128xf32, #tpu.memory_space<vmem>>, %arg9: memref<1x128xf32, #tpu.memory_space<vmem>>, %arg10: memref<128x128xbf16, #tpu.memory_space<vmem>>, %arg11: memref<1x128xf32, #tpu.memory_space<vmem>>, %arg12: memref<1x16x128xf32, #tpu.memory_space<vmem>>) attributes {dimension_semantics = [#tpu.dimension_semantics<parallel>], iteration_bounds = array<i64: 2>, scalar_prefetch = 0 : i64, scratch_operands = 0 : i64, tpu.core_type = #tpu.core_type<tc>, window_params = [{transform_indices = @transform_0, window_bounds = array<i64: 1, 16, 128>}, {pipeline_mode = #tpu.pipeline_mode<synchronous>, transform_indices = @transform_1, window_bounds = array<i64: 1, 128>}, {pipeline_mode = #tpu.pipeline_mode<synchronous>, transform_indices = @transform_2, window_bounds = array<i64: 1, 128>}, {pipeline_mode = #tpu.pipeline_mode<synchronous>, transform_indices = @transform_3, window_bounds = array<i64: 128, 256>}, {pipeline_mode = #tpu.pipeline_mode<synchronous>, transform_indices = @transform_4, window_bounds = array<i64: 1, 256>}, {pipeline_mode = #tpu.pipeline_mode<synchronous>, transform_indices = @transform_5, window_bounds = array<i64: 15, 128>}, {pipeline_mode = #tpu.pipeline_mode<synchronous>, transform_indices = @transform_6, window_bounds = array<i64: 1, 128>}, {pipeline_mode = #tpu.pipeline_mode<synchronous>, transform_indices = @transform_7, window_bounds = array<i64: 1, 128>}, {pipeline_mode = #tpu.pipeline_mode<synchronous>, transform_indices = @transform_8, window_bounds = array<i64: 1, 128>}, {pipeline_mode = #tpu.pipeline_mode<synchronous>, transform_indices = @transform_9, window_bounds = array<i64: 128, 128>}, {pipeline_mode = #tpu.pipeline_mode<synchronous>, transform_indices = @transform_10, window_bounds = array<i64: 1, 128>}, {transform_indices = @transform_11, window_bounds = array<i64: 1, 16, 128>}]} {
    %c0 = arith.constant 0 : index
    %c0_0 = arith.constant 0 : index
    %c0_1 = arith.constant 0 : index
    %0 = vector.load %arg1[%c0, %c0_0, %c0_1] : memref<1x16x128xf32, #tpu.memory_space<vmem>>, vector<1x16x128xf32>
    %1 = vector.shape_cast %0 : vector<1x16x128xf32> to vector<16x128xf32>
    %c0_2 = arith.constant 0 : index
    %c0_3 = arith.constant 0 : index
    %2 = vector.load %arg2[%c0_2, %c0_3] : memref<1x128xf32, #tpu.memory_space<vmem>>, vector<1x128xf32>
    %c0_4 = arith.constant 0 : index
    %c0_5 = arith.constant 0 : index
    %3 = vector.load %arg3[%c0_4, %c0_5] : memref<1x128xf32, #tpu.memory_space<vmem>>, vector<1x128xf32>
    %cst = arith.constant dense<0.000000e+00> : vector<16xf32>
    %4 = vector.multi_reduction <add>, %1, %cst [1] : vector<16x128xf32> to vector<16xf32>
    %5 = vector.shape_cast %4 : vector<16xf32> to vector<16x1xf32>
    %cst_6 = arith.constant 1.280000e+02 : f32
    %6 = vector.broadcast %cst_6 : f32 to vector<16x1xf32>
    %7 = arith.divf %5, %6 : vector<16x1xf32>
    %8 = vector.broadcast %7 : vector<16x1xf32> to vector<16x128xf32>
    %9 = arith.subf %1, %8 : vector<16x128xf32>
    %10 = arith.mulf %9, %9 : vector<16x128xf32>
    %cst_7 = arith.constant dense<0.000000e+00> : vector<16xf32>
    %11 = vector.multi_reduction <add>, %10, %cst_7 [1] : vector<16x128xf32> to vector<16xf32>
    %12 = vector.shape_cast %11 : vector<16xf32> to vector<16x1xf32>
    %cst_8 = arith.constant 1.280000e+02 : f32
    %13 = vector.broadcast %cst_8 : f32 to vector<16x1xf32>
    %14 = arith.divf %12, %13 : vector<16x1xf32>
    %15 = vector.broadcast %7 : vector<16x1xf32> to vector<16x128xf32>
    %16 = arith.subf %1, %15 : vector<16x128xf32>
    %cst_9 = arith.constant 9.99999974E-6 : f32
    %17 = vector.broadcast %cst_9 : f32 to vector<16x1xf32>
    %18 = arith.addf %14, %17 : vector<16x1xf32>
    %19 = math.rsqrt %18 : vector<16x1xf32>
    %20 = vector.broadcast %19 : vector<16x1xf32> to vector<16x128xf32>
    %21 = arith.mulf %16, %20 : vector<16x128xf32>
    %22 = vector.broadcast %2 : vector<1x128xf32> to vector<16x128xf32>
    %23 = arith.mulf %21, %22 : vector<16x128xf32>
    %24 = vector.broadcast %3 : vector<1x128xf32> to vector<16x128xf32>
    %25 = arith.addf %23, %24 : vector<16x128xf32>
    %c0_10 = arith.constant 0 : index
    %c0_11 = arith.constant 0 : index
    %26 = vector.load %arg4[%c0_10, %c0_11] : memref<128x256xbf16, #tpu.memory_space<vmem>>, vector<128x256xbf16>
    %27 = arith.truncf %25 : vector<16x128xf32> to vector<16x128xbf16>
    %cst_12 = arith.constant dense<0.000000e+00> : vector<16x256xf32>
    %28 = tpu.matmul %27, %26, %cst_12 {dimension_numbers = #tpu.dot_dimension_numbers<[1], [0], [0], [1], [0, 0, 1, 1], [], []>} : vector<16x128xbf16>, vector<128x256xbf16>, vector<16x256xf32> -> vector<16x256xf32>
    %c0_13 = arith.constant 0 : index
    %c0_14 = arith.constant 0 : index
    %29 = vector.load %arg5[%c0_13, %c0_14] : memref<1x256xf32, #tpu.memory_space<vmem>>, vector<1x256xf32>
    %30 = vector.broadcast %29 : vector<1x256xf32> to vector<16x256xf32>
    %31 = arith.addf %28, %30 : vector<16x256xf32>
    %32 = vector.extract_strided_slice %31 {offsets = [0, 0], sizes = [16, 128], strides = [1, 1]} : vector<16x256xf32> to vector<16x128xf32>
    %33 = vector.extract_strided_slice %31 {offsets = [0, 128], sizes = [16, 128], strides = [1, 1]} : vector<16x256xf32> to vector<16x128xf32>
    %cst_15 = arith.constant 0.000000e+00 : f32
    %34 = vector.broadcast %cst_15 : f32 to vector<16x128xf32>
    %35 = arith.subf %34, %33 : vector<16x128xf32>
    %36 = math.exp %35 : vector<16x128xf32>
    %cst_16 = arith.constant 1.000000e+00 : f32
    %37 = vector.broadcast %cst_16 : f32 to vector<16x128xf32>
    %38 = arith.addf %37, %36 : vector<16x128xf32>
    %cst_17 = arith.constant 1.000000e+00 : f32
    %39 = vector.broadcast %cst_17 : f32 to vector<16x128xf32>
    %40 = arith.divf %39, %38 : vector<16x128xf32>
    %41 = arith.mulf %32, %40 : vector<16x128xf32>
    %cst_18 = arith.constant 0.000000e+00 : f32
    %42 = vector.broadcast %cst_18 : f32 to vector<7x128xf32>
    %43 = tpu.concatenate %42, %41, %42 in 0 : vector<7x128xf32>, vector<16x128xf32>, vector<7x128xf32> -> vector<30x128xf32>
    %c0_19 = arith.constant 0 : index
    %c0_20 = arith.constant 0 : index
    %44 = vector.load %arg6[%c0_19, %c0_20] : memref<15x128xf32, #tpu.memory_space<vmem>>, vector<15x128xf32>
    %cst_21 = arith.constant 0.000000e+00 : f32
    %45 = vector.broadcast %cst_21 : f32 to vector<16x128xf32>
    %46 = vector.extract_strided_slice %43 {offsets = [0, 0], sizes = [16, 128], strides = [1, 1]} : vector<30x128xf32> to vector<16x128xf32>
    %47 = vector.extract_strided_slice %44 {offsets = [0, 0], sizes = [1, 128], strides = [1, 1]} : vector<15x128xf32> to vector<1x128xf32>
    %48 = vector.broadcast %47 : vector<1x128xf32> to vector<16x128xf32>
    %49 = arith.mulf %46, %48 : vector<16x128xf32>
    %50 = arith.addf %45, %49 : vector<16x128xf32>
    %51 = vector.extract_strided_slice %43 {offsets = [1, 0], sizes = [16, 128], strides = [1, 1]} : vector<30x128xf32> to vector<16x128xf32>
    %52 = vector.extract_strided_slice %44 {offsets = [1, 0], sizes = [1, 128], strides = [1, 1]} : vector<15x128xf32> to vector<1x128xf32>
    %53 = vector.broadcast %52 : vector<1x128xf32> to vector<16x128xf32>
    %54 = arith.mulf %51, %53 : vector<16x128xf32>
    %55 = arith.addf %50, %54 : vector<16x128xf32>
    %56 = vector.extract_strided_slice %43 {offsets = [2, 0], sizes = [16, 128], strides = [1, 1]} : vector<30x128xf32> to vector<16x128xf32>
    %57 = vector.extract_strided_slice %44 {offsets = [2, 0], sizes = [1, 128], strides = [1, 1]} : vector<15x128xf32> to vector<1x128xf32>
    %58 = vector.broadcast %57 : vector<1x128xf32> to vector<16x128xf32>
    %59 = arith.mulf %56, %58 : vector<16x128xf32>
    %60 = arith.addf %55, %59 : vector<16x128xf32>
    %61 = vector.extract_strided_slice %43 {offsets = [3, 0], sizes = [16, 128], strides = [1, 1]} : vector<30x128xf32> to vector<16x128xf32>
    %62 = vector.extract_strided_slice %44 {offsets = [3, 0], sizes = [1, 128], strides = [1, 1]} : vector<15x128xf32> to vector<1x128xf32>
    %63 = vector.broadcast %62 : vector<1x128xf32> to vector<16x128xf32>
    %64 = arith.mulf %61, %63 : vector<16x128xf32>
    %65 = arith.addf %60, %64 : vector<16x128xf32>
    %66 = vector.extract_strided_slice %43 {offsets = [4, 0], sizes = [16, 128], strides = [1, 1]} : vector<30x128xf32> to vector<16x128xf32>
    %67 = vector.extract_strided_slice %44 {offsets = [4, 0], sizes = [1, 128], strides = [1, 1]} : vector<15x128xf32> to vector<1x128xf32>
    %68 = vector.broadcast %67 : vector<1x128xf32> to vector<16x128xf32>
    %69 = arith.mulf %66, %68 : vector<16x128xf32>
    %70 = arith.addf %65, %69 : vector<16x128xf32>
    %71 = vector.extract_strided_slice %43 {offsets = [5, 0], sizes = [16, 128], strides = [1, 1]} : vector<30x128xf32> to vector<16x128xf32>
    %72 = vector.extract_strided_slice %44 {offsets = [5, 0], sizes = [1, 128], strides = [1, 1]} : vector<15x128xf32> to vector<1x128xf32>
    %73 = vector.broadcast %72 : vector<1x128xf32> to vector<16x128xf32>
    %74 = arith.mulf %71, %73 : vector<16x128xf32>
    %75 = arith.addf %70, %74 : vector<16x128xf32>
    %76 = vector.extract_strided_slice %43 {offsets = [6, 0], sizes = [16, 128], strides = [1, 1]} : vector<30x128xf32> to vector<16x128xf32>
    %77 = vector.extract_strided_slice %44 {offsets = [6, 0], sizes = [1, 128], strides = [1, 1]} : vector<15x128xf32> to vector<1x128xf32>
    %78 = vector.broadcast %77 : vector<1x128xf32> to vector<16x128xf32>
    %79 = arith.mulf %76, %78 : vector<16x128xf32>
    %80 = arith.addf %75, %79 : vector<16x128xf32>
    %81 = vector.extract_strided_slice %43 {offsets = [7, 0], sizes = [16, 128], strides = [1, 1]} : vector<30x128xf32> to vector<16x128xf32>
    %82 = vector.extract_strided_slice %44 {offsets = [7, 0], sizes = [1, 128], strides = [1, 1]} : vector<15x128xf32> to vector<1x128xf32>
    %83 = vector.broadcast %82 : vector<1x128xf32> to vector<16x128xf32>
    %84 = arith.mulf %81, %83 : vector<16x128xf32>
    %85 = arith.addf %80, %84 : vector<16x128xf32>
    %86 = vector.extract_strided_slice %43 {offsets = [8, 0], sizes = [16, 128], strides = [1, 1]} : vector<30x128xf32> to vector<16x128xf32>
    %87 = vector.extract_strided_slice %44 {offsets = [8, 0], sizes = [1, 128], strides = [1, 1]} : vector<15x128xf32> to vector<1x128xf32>
    %88 = vector.broadcast %87 : vector<1x128xf32> to vector<16x128xf32>
    %89 = arith.mulf %86, %88 : vector<16x128xf32>
    %90 = arith.addf %85, %89 : vector<16x128xf32>
    %91 = vector.extract_strided_slice %43 {offsets = [9, 0], sizes = [16, 128], strides = [1, 1]} : vector<30x128xf32> to vector<16x128xf32>
    %92 = vector.extract_strided_slice %44 {offsets = [9, 0], sizes = [1, 128], strides = [1, 1]} : vector<15x128xf32> to vector<1x128xf32>
    %93 = vector.broadcast %92 : vector<1x128xf32> to vector<16x128xf32>
    %94 = arith.mulf %91, %93 : vector<16x128xf32>
    %95 = arith.addf %90, %94 : vector<16x128xf32>
    %96 = vector.extract_strided_slice %43 {offsets = [10, 0], sizes = [16, 128], strides = [1, 1]} : vector<30x128xf32> to vector<16x128xf32>
    %97 = vector.extract_strided_slice %44 {offsets = [10, 0], sizes = [1, 128], strides = [1, 1]} : vector<15x128xf32> to vector<1x128xf32>
    %98 = vector.broadcast %97 : vector<1x128xf32> to vector<16x128xf32>
    %99 = arith.mulf %96, %98 : vector<16x128xf32>
    %100 = arith.addf %95, %99 : vector<16x128xf32>
    %101 = vector.extract_strided_slice %43 {offsets = [11, 0], sizes = [16, 128], strides = [1, 1]} : vector<30x128xf32> to vector<16x128xf32>
    %102 = vector.extract_strided_slice %44 {offsets = [11, 0], sizes = [1, 128], strides = [1, 1]} : vector<15x128xf32> to vector<1x128xf32>
    %103 = vector.broadcast %102 : vector<1x128xf32> to vector<16x128xf32>
    %104 = arith.mulf %101, %103 : vector<16x128xf32>
    %105 = arith.addf %100, %104 : vector<16x128xf32>
    %106 = vector.extract_strided_slice %43 {offsets = [12, 0], sizes = [16, 128], strides = [1, 1]} : vector<30x128xf32> to vector<16x128xf32>
    %107 = vector.extract_strided_slice %44 {offsets = [12, 0], sizes = [1, 128], strides = [1, 1]} : vector<15x128xf32> to vector<1x128xf32>
    %108 = vector.broadcast %107 : vector<1x128xf32> to vector<16x128xf32>
    %109 = arith.mulf %106, %108 : vector<16x128xf32>
    %110 = arith.addf %105, %109 : vector<16x128xf32>
    %111 = vector.extract_strided_slice %43 {offsets = [13, 0], sizes = [16, 128], strides = [1, 1]} : vector<30x128xf32> to vector<16x128xf32>
    %112 = vector.extract_strided_slice %44 {offsets = [13, 0], sizes = [1, 128], strides = [1, 1]} : vector<15x128xf32> to vector<1x128xf32>
    %113 = vector.broadcast %112 : vector<1x128xf32> to vector<16x128xf32>
    %114 = arith.mulf %111, %113 : vector<16x128xf32>
    %115 = arith.addf %110, %114 : vector<16x128xf32>
    %116 = vector.extract_strided_slice %43 {offsets = [14, 0], sizes = [16, 128], strides = [1, 1]} : vector<30x128xf32> to vector<16x128xf32>
    %117 = vector.extract_strided_slice %44 {offsets = [14, 0], sizes = [1, 128], strides = [1, 1]} : vector<15x128xf32> to vector<1x128xf32>
    %118 = vector.broadcast %117 : vector<1x128xf32> to vector<16x128xf32>
    %119 = arith.mulf %116, %118 : vector<16x128xf32>
    %120 = arith.addf %115, %119 : vector<16x128xf32>
    %c0_22 = arith.constant 0 : index
    %c0_23 = arith.constant 0 : index
    %121 = vector.load %arg7[%c0_22, %c0_23] : memref<1x128xf32, #tpu.memory_space<vmem>>, vector<1x128xf32>
    %122 = vector.broadcast %121 : vector<1x128xf32> to vector<16x128xf32>
    %123 = arith.addf %120, %122 : vector<16x128xf32>
    %c0_24 = arith.constant 0 : index
    %c0_25 = arith.constant 0 : index
    %124 = vector.load %arg8[%c0_24, %c0_25] : memref<1x128xf32, #tpu.memory_space<vmem>>, vector<1x128xf32>
    %125 = vector.broadcast %124 : vector<1x128xf32> to vector<16x128xf32>
    %126 = arith.mulf %123, %125 : vector<16x128xf32>
    %c0_26 = arith.constant 0 : index
    %c0_27 = arith.constant 0 : index
    %127 = vector.load %arg9[%c0_26, %c0_27] : memref<1x128xf32, #tpu.memory_space<vmem>>, vector<1x128xf32>
    %128 = vector.broadcast %127 : vector<1x128xf32> to vector<16x128xf32>
    %129 = arith.addf %126, %128 : vector<16x128xf32>
    %cst_28 = arith.constant 0.000000e+00 : f32
    %130 = vector.broadcast %cst_28 : f32 to vector<16x128xf32>
    %131 = arith.subf %130, %129 : vector<16x128xf32>
    %132 = math.exp %131 : vector<16x128xf32>
    %cst_29 = arith.constant 1.000000e+00 : f32
    %133 = vector.broadcast %cst_29 : f32 to vector<16x128xf32>
    %134 = arith.addf %133, %132 : vector<16x128xf32>
    %cst_30 = arith.constant 1.000000e+00 : f32
    %135 = vector.broadcast %cst_30 : f32 to vector<16x128xf32>
    %136 = arith.divf %135, %134 : vector<16x128xf32>
    %137 = arith.mulf %129, %136 : vector<16x128xf32>
    %c0_31 = arith.constant 0 : index
    %c0_32 = arith.constant 0 : index
    %138 = vector.load %arg10[%c0_31, %c0_32] : memref<128x128xbf16, #tpu.memory_space<vmem>>, vector<128x128xbf16>
    %139 = arith.truncf %137 : vector<16x128xf32> to vector<16x128xbf16>
    %cst_33 = arith.constant dense<0.000000e+00> : vector<16x128xf32>
    %140 = tpu.matmul %139, %138, %cst_33 {dimension_numbers = #tpu.dot_dimension_numbers<[1], [0], [0], [1], [0, 0, 1, 1], [], []>} : vector<16x128xbf16>, vector<128x128xbf16>, vector<16x128xf32> -> vector<16x128xf32>
    %c0_34 = arith.constant 0 : index
    %c0_35 = arith.constant 0 : index
    %141 = vector.load %arg11[%c0_34, %c0_35] : memref<1x128xf32, #tpu.memory_space<vmem>>, vector<1x128xf32>
    %142 = vector.broadcast %141 : vector<1x128xf32> to vector<16x128xf32>
    %143 = arith.addf %140, %142 : vector<16x128xf32>
    %144 = arith.addf %1, %143 : vector<16x128xf32>
    %c0_36 = arith.constant 0 : index
    %c0_37 = arith.constant 0 : index
    %c0_38 = arith.constant 0 : index
    %145 = vector.load %arg12[%c0_36, %c0_37, %c0_38] : memref<1x16x128xf32, #tpu.memory_space<vmem>>, vector<1x16x128xf32>
    %146 = vector.shape_cast %145 : vector<1x16x128xf32> to vector<16x128xf32>
    %147 = vector.shape_cast %144 : vector<16x128xf32> to vector<1x16x128xf32>
    tpu.vector_store %arg12[%c0_36, %c0_37, %c0_38], %147 {strides = array<i32>} : memref<1x16x128xf32, #tpu.memory_space<vmem>>, vector<1x16x128xf32>,
    return
  }
  func.func @transform_0(%arg0: i32) -> (i32, i32, i32) {
    %c0_i32 = arith.constant 0 : i32
    %c0_i32_0 = arith.constant 0 : i32
    %c0_i32_1 = arith.constant 0 : i32
    return %arg0, %c0_i32, %c0_i32_0 : i32, i32, i32
  }
  func.func @transform_1(%arg0: i32) -> (i32, i32) {
    %c0_i32 = arith.constant 0 : i32
    %c0_i32_0 = arith.constant 0 : i32
    %c0_i32_1 = arith.constant 0 : i32
    return %c0_i32, %c0_i32_0 : i32, i32
  }
  func.func @transform_2(%arg0: i32) -> (i32, i32) {
    %c0_i32 = arith.constant 0 : i32
    %c0_i32_0 = arith.constant 0 : i32
    %c0_i32_1 = arith.constant 0 : i32
    return %c0_i32, %c0_i32_0 : i32, i32
  }
  func.func @transform_3(%arg0: i32) -> (i32, i32) {
    %c0_i32 = arith.constant 0 : i32
    %c0_i32_0 = arith.constant 0 : i32
    %c0_i32_1 = arith.constant 0 : i32
    return %c0_i32, %c0_i32_0 : i32, i32
  }
  func.func @transform_4(%arg0: i32) -> (i32, i32) {
    %c0_i32 = arith.constant 0 : i32
    %c0_i32_0 = arith.constant 0 : i32
    %c0_i32_1 = arith.constant 0 : i32
    return %c0_i32, %c0_i32_0 : i32, i32
  }
  func.func @transform_5(%arg0: i32) -> (i32, i32) {
    %c0_i32 = arith.constant 0 : i32
    %c0_i32_0 = arith.constant 0 : i32
    %c0_i32_1 = arith.constant 0 : i32
    return %c0_i32, %c0_i32_0 : i32, i32
  }
  func.func @transform_6(%arg0: i32) -> (i32, i32) {
    %c0_i32 = arith.constant 0 : i32
    %c0_i32_0 = arith.constant 0 : i32
    %c0_i32_1 = arith.constant 0 : i32
    return %c0_i32, %c0_i32_0 : i32, i32
  }
  func.func @transform_7(%arg0: i32) -> (i32, i32) {
    %c0_i32 = arith.constant 0 : i32
    %c0_i32_0 = arith.constant 0 : i32
    %c0_i32_1 = arith.constant 0 : i32
    return %c0_i32, %c0_i32_0 : i32, i32
  }
  func.func @transform_8(%arg0: i32) -> (i32, i32) {
    %c0_i32 = arith.constant 0 : i32
    %c0_i32_0 = arith.constant 0 : i32
    %c0_i32_1 = arith.constant 0 : i32
    return %c0_i32, %c0_i32_0 : i32, i32
  }
  func.func @transform_9(%arg0: i32) -> (i32, i32) {
    %c0_i32 = arith.constant 0 : i32
    %c0_i32_0 = arith.constant 0 : i32
    %c0_i32_1 = arith.constant 0 : i32
    return %c0_i32, %c0_i32_0 : i32, i32
  }
  func.func @transform_10(%arg0: i32) -> (i32, i32) {
    %c0_i32 = arith.constant 0 : i32
    %c0_i32_0 = arith.constant 0 : i32
    %c0_i32_1 = arith.constant 0 : i32
    return %c0_i32, %c0_i32_0 : i32, i32
  }
  func.func @transform_11(%arg0: i32) -> (i32, i32, i32) {
    %c0_i32 = arith.constant 0 : i32
    %c0_i32_0 = arith.constant 0 : i32
    %c0_i32_1 = arith.constant 0 : i32
    return %arg0, %c0_i32, %c0_i32_0 : i32, i32, i32
  }
}

module attributes {stable_mosaic.version = 11 : i64} {
  func.func @_asp_kernel(%arg0: i32, %arg1: memref<1x16x128xf32, #tpu.memory_space<vmem>>, %arg2: memref<1x128xf32, #tpu.memory_space<vmem>>, %arg3: memref<1x128xf32, #tpu.memory_space<vmem>>, %arg4: memref<384x128xbf16, #tpu.memory_space<vmem>>, %arg5: memref<1x128xf32, #tpu.memory_space<vmem>>, %arg6: memref<128x128xbf16, #tpu.memory_space<vmem>>, %arg7: memref<1x128xf32, #tpu.memory_space<vmem>>, %arg8: memref<256x128xbf16, #tpu.memory_space<vmem>>, %arg9: memref<1x1x128xf32, #tpu.memory_space<vmem>>) attributes {dimension_semantics = [#tpu.dimension_semantics<parallel>], iteration_bounds = array<i64: 2>, scalar_prefetch = 0 : i64, scratch_operands = 0 : i64, tpu.core_type = #tpu.core_type<tc>, window_params = [{transform_indices = @transform_0, window_bounds = array<i64: 1, 16, 128>}, {pipeline_mode = #tpu.pipeline_mode<synchronous>, transform_indices = @transform_1, window_bounds = array<i64: 1, 128>}, {pipeline_mode = #tpu.pipeline_mode<synchronous>, transform_indices = @transform_2, window_bounds = array<i64: 1, 128>}, {pipeline_mode = #tpu.pipeline_mode<synchronous>, transform_indices = @transform_3, window_bounds = array<i64: 384, 128>}, {pipeline_mode = #tpu.pipeline_mode<synchronous>, transform_indices = @transform_4, window_bounds = array<i64: 1, 128>}, {pipeline_mode = #tpu.pipeline_mode<synchronous>, transform_indices = @transform_5, window_bounds = array<i64: 128, 128>}, {pipeline_mode = #tpu.pipeline_mode<synchronous>, transform_indices = @transform_6, window_bounds = array<i64: 1, 128>}, {pipeline_mode = #tpu.pipeline_mode<synchronous>, transform_indices = @transform_7, window_bounds = array<i64: 256, 128>}, {transform_indices = @transform_8, window_bounds = array<i64: 1, 1, 128>}]} {
    %c0 = arith.constant 0 : index
    %c0_0 = arith.constant 0 : index
    %c0_1 = arith.constant 0 : index
    %0 = vector.load %arg1[%c0, %c0_0, %c0_1] : memref<1x16x128xf32, #tpu.memory_space<vmem>>, vector<1x16x128xf32>
    %1 = vector.shape_cast %0 : vector<1x16x128xf32> to vector<16x128xf32>
    %c0_2 = arith.constant 0 : index
    %c0_3 = arith.constant 0 : index
    %2 = vector.load %arg2[%c0_2, %c0_3] : memref<1x128xf32, #tpu.memory_space<vmem>>, vector<1x128xf32>
    %c0_4 = arith.constant 0 : index
    %c0_5 = arith.constant 0 : index
    %3 = vector.load %arg3[%c0_4, %c0_5] : memref<1x128xf32, #tpu.memory_space<vmem>>, vector<1x128xf32>
    %cst = arith.constant dense<0.000000e+00> : vector<16xf32>
    %4 = vector.multi_reduction <add>, %1, %cst [1] : vector<16x128xf32> to vector<16xf32>
    %5 = vector.shape_cast %4 : vector<16xf32> to vector<16x1xf32>
    %cst_6 = arith.constant 1.280000e+02 : f32
    %6 = vector.broadcast %cst_6 : f32 to vector<16x1xf32>
    %7 = arith.divf %5, %6 : vector<16x1xf32>
    %8 = vector.broadcast %7 : vector<16x1xf32> to vector<16x128xf32>
    %9 = arith.subf %1, %8 : vector<16x128xf32>
    %10 = arith.mulf %9, %9 : vector<16x128xf32>
    %cst_7 = arith.constant dense<0.000000e+00> : vector<16xf32>
    %11 = vector.multi_reduction <add>, %10, %cst_7 [1] : vector<16x128xf32> to vector<16xf32>
    %12 = vector.shape_cast %11 : vector<16xf32> to vector<16x1xf32>
    %cst_8 = arith.constant 1.280000e+02 : f32
    %13 = vector.broadcast %cst_8 : f32 to vector<16x1xf32>
    %14 = arith.divf %12, %13 : vector<16x1xf32>
    %15 = vector.broadcast %7 : vector<16x1xf32> to vector<16x128xf32>
    %16 = arith.subf %1, %15 : vector<16x128xf32>
    %cst_9 = arith.constant 9.99999974E-6 : f32
    %17 = vector.broadcast %cst_9 : f32 to vector<16x1xf32>
    %18 = arith.addf %14, %17 : vector<16x1xf32>
    %19 = math.rsqrt %18 : vector<16x1xf32>
    %20 = vector.broadcast %19 : vector<16x1xf32> to vector<16x128xf32>
    %21 = arith.mulf %16, %20 : vector<16x128xf32>
    %22 = vector.broadcast %2 : vector<1x128xf32> to vector<16x128xf32>
    %23 = arith.mulf %21, %22 : vector<16x128xf32>
    %24 = vector.broadcast %3 : vector<1x128xf32> to vector<16x128xf32>
    %25 = arith.addf %23, %24 : vector<16x128xf32>
    %cst_10 = arith.constant dense<0.000000e+00> : vector<128xf32>
    %26 = vector.multi_reduction <add>, %25, %cst_10 [0] : vector<16x128xf32> to vector<128xf32>
    %27 = vector.shape_cast %26 : vector<128xf32> to vector<1x128xf32>
    %cst_11 = arith.constant 1.600000e+01 : f32
    %28 = vector.broadcast %cst_11 : f32 to vector<1x128xf32>
    %29 = arith.divf %27, %28 : vector<1x128xf32>
    %30 = vector.broadcast %29 : vector<1x128xf32> to vector<16x128xf32>
    %31 = arith.subf %25, %30 : vector<16x128xf32>
    %32 = arith.mulf %31, %31 : vector<16x128xf32>
    %cst_12 = arith.constant dense<0.000000e+00> : vector<128xf32>
    %33 = vector.multi_reduction <add>, %32, %cst_12 [0] : vector<16x128xf32> to vector<128xf32>
    %34 = vector.shape_cast %33 : vector<128xf32> to vector<1x128xf32>
    %cst_13 = arith.constant 1.600000e+01 : f32
    %35 = vector.broadcast %cst_13 : f32 to vector<1x128xf32>
    %36 = arith.divf %34, %35 : vector<1x128xf32>
    %cst_14 = arith.constant 9.99999996E-13 : f32
    %37 = vector.broadcast %cst_14 : f32 to vector<1x128xf32>
    %38 = arith.maximumf %36, %37 : vector<1x128xf32>
    %39 = math.sqrt %38 : vector<1x128xf32>
    %c0_15 = arith.constant 0 : index
    %c0_16 = arith.constant 0 : index
    %40 = vector.load %arg4[%c0_15, %c0_16] : memref<384x128xbf16, #tpu.memory_space<vmem>>, vector<128x128xbf16>
    %41 = arith.truncf %25 : vector<16x128xf32> to vector<16x128xbf16>
    %cst_17 = arith.constant dense<0.000000e+00> : vector<16x128xf32>
    %42 = tpu.matmul %41, %40, %cst_17 {dimension_numbers = #tpu.dot_dimension_numbers<[1], [0], [0], [1], [0, 0, 1, 1], [], []>} : vector<16x128xbf16>, vector<128x128xbf16>, vector<16x128xf32> -> vector<16x128xf32>
    %c128 = arith.constant 128 : index
    %c0_18 = arith.constant 0 : index
    %43 = vector.load %arg4[%c128, %c0_18] : memref<384x128xbf16, #tpu.memory_space<vmem>>, vector<128x128xbf16>
    %44 = arith.truncf %29 : vector<1x128xf32> to vector<1x128xbf16>
    %cst_19 = arith.constant dense<0.000000e+00> : vector<1x128xf32>
    %45 = tpu.matmul %44, %43, %cst_19 {dimension_numbers = #tpu.dot_dimension_numbers<[1], [0], [0], [1], [0, 0, 1, 1], [], []>} : vector<1x128xbf16>, vector<128x128xbf16>, vector<1x128xf32> -> vector<1x128xf32>
    %46 = vector.broadcast %45 : vector<1x128xf32> to vector<16x128xf32>
    %47 = arith.addf %42, %46 : vector<16x128xf32>
    %c256 = arith.constant 256 : index
    %c0_20 = arith.constant 0 : index
    %48 = vector.load %arg4[%c256, %c0_20] : memref<384x128xbf16, #tpu.memory_space<vmem>>, vector<128x128xbf16>
    %49 = arith.truncf %39 : vector<1x128xf32> to vector<1x128xbf16>
    %cst_21 = arith.constant dense<0.000000e+00> : vector<1x128xf32>
    %50 = tpu.matmul %49, %48, %cst_21 {dimension_numbers = #tpu.dot_dimension_numbers<[1], [0], [0], [1], [0, 0, 1, 1], [], []>} : vector<1x128xbf16>, vector<128x128xbf16>, vector<1x128xf32> -> vector<1x128xf32>
    %51 = vector.broadcast %50 : vector<1x128xf32> to vector<16x128xf32>
    %52 = arith.addf %47, %51 : vector<16x128xf32>
    %c0_22 = arith.constant 0 : index
    %c0_23 = arith.constant 0 : index
    %53 = vector.load %arg5[%c0_22, %c0_23] : memref<1x128xf32, #tpu.memory_space<vmem>>, vector<1x128xf32>
    %54 = vector.broadcast %53 : vector<1x128xf32> to vector<16x128xf32>
    %55 = arith.addf %52, %54 : vector<16x128xf32>
    %56 = math.tanh %55 : vector<16x128xf32>
    %c0_24 = arith.constant 0 : index
    %c0_25 = arith.constant 0 : index
    %57 = vector.load %arg6[%c0_24, %c0_25] : memref<128x128xbf16, #tpu.memory_space<vmem>>, vector<128x128xbf16>
    %58 = arith.truncf %56 : vector<16x128xf32> to vector<16x128xbf16>
    %cst_26 = arith.constant dense<0.000000e+00> : vector<16x128xf32>
    %59 = tpu.matmul %58, %57, %cst_26 {dimension_numbers = #tpu.dot_dimension_numbers<[1], [0], [0], [1], [0, 0, 1, 1], [], []>} : vector<16x128xbf16>, vector<128x128xbf16>, vector<16x128xf32> -> vector<16x128xf32>
    %c0_27 = arith.constant 0 : index
    %c0_28 = arith.constant 0 : index
    %60 = vector.load %arg7[%c0_27, %c0_28] : memref<1x128xf32, #tpu.memory_space<vmem>>, vector<1x128xf32>
    %61 = vector.broadcast %60 : vector<1x128xf32> to vector<16x128xf32>
    %62 = arith.addf %59, %61 : vector<16x128xf32>
    %cst_29 = arith.constant dense<0xFF800000> : vector<128xf32>
    %63 = vector.multi_reduction <maximumf>, %62, %cst_29 [0] : vector<16x128xf32> to vector<128xf32>
    %64 = vector.shape_cast %63 : vector<128xf32> to vector<1x128xf32>
    %65 = vector.broadcast %64 : vector<1x128xf32> to vector<16x128xf32>
    %66 = arith.subf %62, %65 : vector<16x128xf32>
    %67 = math.exp %66 : vector<16x128xf32>
    %cst_30 = arith.constant dense<0.000000e+00> : vector<128xf32>
    %68 = vector.multi_reduction <add>, %67, %cst_30 [0] : vector<16x128xf32> to vector<128xf32>
    %69 = vector.shape_cast %68 : vector<128xf32> to vector<1x128xf32>
    %70 = tpu.reciprocal %69 {approx = true} : vector<1x128xf32> -> vector<1x128xf32>
    %71 = vector.broadcast %70 : vector<1x128xf32> to vector<16x128xf32>
    %72 = arith.mulf %67, %71 : vector<16x128xf32>
    %73 = arith.mulf %72, %25 : vector<16x128xf32>
    %cst_31 = arith.constant dense<0.000000e+00> : vector<128xf32>
    %74 = vector.multi_reduction <add>, %73, %cst_31 [0] : vector<16x128xf32> to vector<128xf32>
    %75 = vector.shape_cast %74 : vector<128xf32> to vector<1x128xf32>
    %76 = vector.broadcast %75 : vector<1x128xf32> to vector<16x128xf32>
    %77 = arith.subf %25, %76 : vector<16x128xf32>
    %78 = arith.mulf %77, %77 : vector<16x128xf32>
    %79 = arith.mulf %72, %78 : vector<16x128xf32>
    %cst_32 = arith.constant dense<0.000000e+00> : vector<128xf32>
    %80 = vector.multi_reduction <add>, %79, %cst_32 [0] : vector<16x128xf32> to vector<128xf32>
    %81 = vector.shape_cast %80 : vector<128xf32> to vector<1x128xf32>
    %cst_33 = arith.constant 9.99999996E-13 : f32
    %82 = vector.broadcast %cst_33 : f32 to vector<1x128xf32>
    %83 = arith.maximumf %81, %82 : vector<1x128xf32>
    %84 = math.sqrt %83 : vector<1x128xf32>
    %c0_34 = arith.constant 0 : index
    %c0_35 = arith.constant 0 : index
    %85 = vector.load %arg8[%c0_34, %c0_35] : memref<256x128xbf16, #tpu.memory_space<vmem>>, vector<128x128xbf16>
    %86 = arith.truncf %75 : vector<1x128xf32> to vector<1x128xbf16>
    %cst_36 = arith.constant dense<0.000000e+00> : vector<1x128xf32>
    %87 = tpu.matmul %86, %85, %cst_36 {dimension_numbers = #tpu.dot_dimension_numbers<[1], [0], [0], [1], [0, 0, 1, 1], [], []>} : vector<1x128xbf16>, vector<128x128xbf16>, vector<1x128xf32> -> vector<1x128xf32>
    %c128_37 = arith.constant 128 : index
    %c0_38 = arith.constant 0 : index
    %88 = vector.load %arg8[%c128_37, %c0_38] : memref<256x128xbf16, #tpu.memory_space<vmem>>, vector<128x128xbf16>
    %89 = arith.truncf %84 : vector<1x128xf32> to vector<1x128xbf16>
    %cst_39 = arith.constant dense<0.000000e+00> : vector<1x128xf32>
    %90 = tpu.matmul %89, %88, %cst_39 {dimension_numbers = #tpu.dot_dimension_numbers<[1], [0], [0], [1], [0, 0, 1, 1], [], []>} : vector<1x128xbf16>, vector<128x128xbf16>, vector<1x128xf32> -> vector<1x128xf32>
    %91 = arith.addf %87, %90 : vector<1x128xf32>
    %c0_40 = arith.constant 0 : index
    %c0_41 = arith.constant 0 : index
    %c0_42 = arith.constant 0 : index
    %92 = vector.load %arg9[%c0_40, %c0_41, %c0_42] : memref<1x1x128xf32, #tpu.memory_space<vmem>>, vector<1x1x128xf32>
    %93 = vector.shape_cast %92 : vector<1x1x128xf32> to vector<1x128xf32>
    %94 = vector.shape_cast %91 : vector<1x128xf32> to vector<1x1x128xf32>
    tpu.vector_store %arg9[%c0_40, %c0_41, %c0_42], %94 {strides = array<i32>} : memref<1x1x128xf32, #tpu.memory_space<vmem>>, vector<1x1x128xf32>,
    return
  }
  func.func @transform_0(%arg0: i32) -> (i32, i32, i32) {
    %c0_i32 = arith.constant 0 : i32
    %c0_i32_0 = arith.constant 0 : i32
    %c0_i32_1 = arith.constant 0 : i32
    return %arg0, %c0_i32, %c0_i32_0 : i32, i32, i32
  }
  func.func @transform_1(%arg0: i32) -> (i32, i32) {
    %c0_i32 = arith.constant 0 : i32
    %c0_i32_0 = arith.constant 0 : i32
    %c0_i32_1 = arith.constant 0 : i32
    return %c0_i32, %c0_i32_0 : i32, i32
  }
  func.func @transform_2(%arg0: i32) -> (i32, i32) {
    %c0_i32 = arith.constant 0 : i32
    %c0_i32_0 = arith.constant 0 : i32
    %c0_i32_1 = arith.constant 0 : i32
    return %c0_i32, %c0_i32_0 : i32, i32
  }
  func.func @transform_3(%arg0: i32) -> (i32, i32) {
    %c0_i32 = arith.constant 0 : i32
    %c0_i32_0 = arith.constant 0 : i32
    %c0_i32_1 = arith.constant 0 : i32
    return %c0_i32, %c0_i32_0 : i32, i32
  }
  func.func @transform_4(%arg0: i32) -> (i32, i32) {
    %c0_i32 = arith.constant 0 : i32
    %c0_i32_0 = arith.constant 0 : i32
    %c0_i32_1 = arith.constant 0 : i32
    return %c0_i32, %c0_i32_0 : i32, i32
  }
  func.func @transform_5(%arg0: i32) -> (i32, i32) {
    %c0_i32 = arith.constant 0 : i32
    %c0_i32_0 = arith.constant 0 : i32
    %c0_i32_1 = arith.constant 0 : i32
    return %c0_i32, %c0_i32_0 : i32, i32
  }
  func.func @transform_6(%arg0: i32) -> (i32, i32) {
    %c0_i32 = arith.constant 0 : i32
    %c0_i32_0 = arith.constant 0 : i32
    %c0_i32_1 = arith.constant 0 : i32
    return %c0_i32, %c0_i32_0 : i32, i32
  }
  func.func @transform_7(%arg0: i32) -> (i32, i32) {
    %c0_i32 = arith.constant 0 : i32
    %c0_i32_0 = arith.constant 0 : i32
    %c0_i32_1 = arith.constant 0 : i32
    return %c0_i32, %c0_i32_0 : i32, i32
  }
  func.func @transform_8(%arg0: i32) -> (i32, i32, i32) {
    %c0_i32 = arith.constant 0 : i32
    %c0_i32_0 = arith.constant 0 : i32
    %c0_i32_1 = arith.constant 0 : i32
    return %arg0, %c0_i32, %c0_i32_0 : i32, i32, i32
  }
}

module attributes {stable_mosaic.version = 11 : i64} {
  func.func @_ff_kernel(%arg0: i32, %arg1: memref<32x128xf32, #tpu.memory_space<vmem>>, %arg2: memref<1x128xf32, #tpu.memory_space<vmem>>, %arg3: memref<1x128xf32, #tpu.memory_space<vmem>>, %arg4: memref<128x256xbf16, #tpu.memory_space<vmem>>, %arg5: memref<1x256xf32, #tpu.memory_space<vmem>>, %arg6: memref<256x128xbf16, #tpu.memory_space<vmem>>, %arg7: memref<1x128xf32, #tpu.memory_space<vmem>>, %arg8: memref<1x128xf32, #tpu.memory_space<vmem>>, %arg9: memref<1x128xf32, #tpu.memory_space<vmem>>, %arg10: memref<32x128xf32, #tpu.memory_space<vmem>>) attributes {dimension_semantics = [#tpu.dimension_semantics<parallel>], iteration_bounds = array<i64: 1>, scalar_prefetch = 0 : i64, scratch_operands = 0 : i64, tpu.core_type = #tpu.core_type<tc>, window_params = [{transform_indices = @transform_0, window_bounds = array<i64: 32, 128>}, {pipeline_mode = #tpu.pipeline_mode<synchronous>, transform_indices = @transform_1, window_bounds = array<i64: 1, 128>}, {pipeline_mode = #tpu.pipeline_mode<synchronous>, transform_indices = @transform_2, window_bounds = array<i64: 1, 128>}, {pipeline_mode = #tpu.pipeline_mode<synchronous>, transform_indices = @transform_3, window_bounds = array<i64: 128, 256>}, {pipeline_mode = #tpu.pipeline_mode<synchronous>, transform_indices = @transform_4, window_bounds = array<i64: 1, 256>}, {pipeline_mode = #tpu.pipeline_mode<synchronous>, transform_indices = @transform_5, window_bounds = array<i64: 256, 128>}, {pipeline_mode = #tpu.pipeline_mode<synchronous>, transform_indices = @transform_6, window_bounds = array<i64: 1, 128>}, {pipeline_mode = #tpu.pipeline_mode<synchronous>, transform_indices = @transform_7, window_bounds = array<i64: 1, 128>}, {pipeline_mode = #tpu.pipeline_mode<synchronous>, transform_indices = @transform_8, window_bounds = array<i64: 1, 128>}, {transform_indices = @transform_9, window_bounds = array<i64: 32, 128>}]} {
    %c0 = arith.constant 0 : index
    %c0_0 = arith.constant 0 : index
    %0 = vector.load %arg1[%c0, %c0_0] : memref<32x128xf32, #tpu.memory_space<vmem>>, vector<32x128xf32>
    %c0_1 = arith.constant 0 : index
    %c0_2 = arith.constant 0 : index
    %1 = vector.load %arg2[%c0_1, %c0_2] : memref<1x128xf32, #tpu.memory_space<vmem>>, vector<1x128xf32>
    %c0_3 = arith.constant 0 : index
    %c0_4 = arith.constant 0 : index
    %2 = vector.load %arg3[%c0_3, %c0_4] : memref<1x128xf32, #tpu.memory_space<vmem>>, vector<1x128xf32>
    %cst = arith.constant dense<0.000000e+00> : vector<32xf32>
    %3 = vector.multi_reduction <add>, %0, %cst [1] : vector<32x128xf32> to vector<32xf32>
    %4 = vector.shape_cast %3 : vector<32xf32> to vector<32x1xf32>
    %cst_5 = arith.constant 1.280000e+02 : f32
    %5 = vector.broadcast %cst_5 : f32 to vector<32x1xf32>
    %6 = arith.divf %4, %5 : vector<32x1xf32>
    %7 = vector.broadcast %6 : vector<32x1xf32> to vector<32x128xf32>
    %8 = arith.subf %0, %7 : vector<32x128xf32>
    %9 = arith.mulf %8, %8 : vector<32x128xf32>
    %cst_6 = arith.constant dense<0.000000e+00> : vector<32xf32>
    %10 = vector.multi_reduction <add>, %9, %cst_6 [1] : vector<32x128xf32> to vector<32xf32>
    %11 = vector.shape_cast %10 : vector<32xf32> to vector<32x1xf32>
    %cst_7 = arith.constant 1.280000e+02 : f32
    %12 = vector.broadcast %cst_7 : f32 to vector<32x1xf32>
    %13 = arith.divf %11, %12 : vector<32x1xf32>
    %14 = vector.broadcast %6 : vector<32x1xf32> to vector<32x128xf32>
    %15 = arith.subf %0, %14 : vector<32x128xf32>
    %cst_8 = arith.constant 9.99999974E-6 : f32
    %16 = vector.broadcast %cst_8 : f32 to vector<32x1xf32>
    %17 = arith.addf %13, %16 : vector<32x1xf32>
    %18 = math.rsqrt %17 : vector<32x1xf32>
    %19 = vector.broadcast %18 : vector<32x1xf32> to vector<32x128xf32>
    %20 = arith.mulf %15, %19 : vector<32x128xf32>
    %21 = vector.broadcast %1 : vector<1x128xf32> to vector<32x128xf32>
    %22 = arith.mulf %20, %21 : vector<32x128xf32>
    %23 = vector.broadcast %2 : vector<1x128xf32> to vector<32x128xf32>
    %24 = arith.addf %22, %23 : vector<32x128xf32>
    %c0_9 = arith.constant 0 : index
    %c0_10 = arith.constant 0 : index
    %25 = vector.load %arg4[%c0_9, %c0_10] : memref<128x256xbf16, #tpu.memory_space<vmem>>, vector<128x256xbf16>
    %26 = arith.truncf %24 : vector<32x128xf32> to vector<32x128xbf16>
    %cst_11 = arith.constant dense<0.000000e+00> : vector<32x256xf32>
    %27 = tpu.matmul %26, %25, %cst_11 {dimension_numbers = #tpu.dot_dimension_numbers<[1], [0], [0], [1], [0, 0, 1, 1], [], []>} : vector<32x128xbf16>, vector<128x256xbf16>, vector<32x256xf32> -> vector<32x256xf32>
    %c0_12 = arith.constant 0 : index
    %c0_13 = arith.constant 0 : index
    %28 = vector.load %arg5[%c0_12, %c0_13] : memref<1x256xf32, #tpu.memory_space<vmem>>, vector<1x256xf32>
    %29 = vector.broadcast %28 : vector<1x256xf32> to vector<32x256xf32>
    %30 = arith.addf %27, %29 : vector<32x256xf32>
    %cst_14 = arith.constant 0.000000e+00 : f32
    %31 = vector.broadcast %cst_14 : f32 to vector<32x256xf32>
    %32 = arith.subf %31, %30 : vector<32x256xf32>
    %33 = math.exp %32 : vector<32x256xf32>
    %cst_15 = arith.constant 1.000000e+00 : f32
    %34 = vector.broadcast %cst_15 : f32 to vector<32x256xf32>
    %35 = arith.addf %34, %33 : vector<32x256xf32>
    %cst_16 = arith.constant 1.000000e+00 : f32
    %36 = vector.broadcast %cst_16 : f32 to vector<32x256xf32>
    %37 = arith.divf %36, %35 : vector<32x256xf32>
    %38 = arith.mulf %30, %37 : vector<32x256xf32>
    %c0_17 = arith.constant 0 : index
    %c0_18 = arith.constant 0 : index
    %39 = vector.load %arg6[%c0_17, %c0_18] : memref<256x128xbf16, #tpu.memory_space<vmem>>, vector<256x128xbf16>
    %40 = arith.truncf %38 : vector<32x256xf32> to vector<32x256xbf16>
    %cst_19 = arith.constant dense<0.000000e+00> : vector<32x128xf32>
    %41 = tpu.matmul %40, %39, %cst_19 {dimension_numbers = #tpu.dot_dimension_numbers<[1], [0], [0], [1], [0, 0, 1, 1], [], []>} : vector<32x256xbf16>, vector<256x128xbf16>, vector<32x128xf32> -> vector<32x128xf32>
    %c0_20 = arith.constant 0 : index
    %c0_21 = arith.constant 0 : index
    %42 = vector.load %arg7[%c0_20, %c0_21] : memref<1x128xf32, #tpu.memory_space<vmem>>, vector<1x128xf32>
    %43 = vector.broadcast %42 : vector<1x128xf32> to vector<32x128xf32>
    %44 = arith.addf %41, %43 : vector<32x128xf32>
    %cst_22 = arith.constant 5.000000e-01 : f32
    %45 = vector.broadcast %cst_22 : f32 to vector<32x128xf32>
    %46 = arith.mulf %45, %44 : vector<32x128xf32>
    %47 = arith.addf %0, %46 : vector<32x128xf32>
    %c0_23 = arith.constant 0 : index
    %c0_24 = arith.constant 0 : index
    %48 = vector.load %arg8[%c0_23, %c0_24] : memref<1x128xf32, #tpu.memory_space<vmem>>, vector<1x128xf32>
    %c0_25 = arith.constant 0 : index
    %c0_26 = arith.constant 0 : index
    %49 = vector.load %arg9[%c0_25, %c0_26] : memref<1x128xf32, #tpu.memory_space<vmem>>, vector<1x128xf32>
    %cst_27 = arith.constant dense<0.000000e+00> : vector<32xf32>
    %50 = vector.multi_reduction <add>, %47, %cst_27 [1] : vector<32x128xf32> to vector<32xf32>
    %51 = vector.shape_cast %50 : vector<32xf32> to vector<32x1xf32>
    %cst_28 = arith.constant 1.280000e+02 : f32
    %52 = vector.broadcast %cst_28 : f32 to vector<32x1xf32>
    %53 = arith.divf %51, %52 : vector<32x1xf32>
    %54 = vector.broadcast %53 : vector<32x1xf32> to vector<32x128xf32>
    %55 = arith.subf %47, %54 : vector<32x128xf32>
    %56 = arith.mulf %55, %55 : vector<32x128xf32>
    %cst_29 = arith.constant dense<0.000000e+00> : vector<32xf32>
    %57 = vector.multi_reduction <add>, %56, %cst_29 [1] : vector<32x128xf32> to vector<32xf32>
    %58 = vector.shape_cast %57 : vector<32xf32> to vector<32x1xf32>
    %cst_30 = arith.constant 1.280000e+02 : f32
    %59 = vector.broadcast %cst_30 : f32 to vector<32x1xf32>
    %60 = arith.divf %58, %59 : vector<32x1xf32>
    %61 = vector.broadcast %53 : vector<32x1xf32> to vector<32x128xf32>
    %62 = arith.subf %47, %61 : vector<32x128xf32>
    %cst_31 = arith.constant 9.99999974E-6 : f32
    %63 = vector.broadcast %cst_31 : f32 to vector<32x1xf32>
    %64 = arith.addf %60, %63 : vector<32x1xf32>
    %65 = math.rsqrt %64 : vector<32x1xf32>
    %66 = vector.broadcast %65 : vector<32x1xf32> to vector<32x128xf32>
    %67 = arith.mulf %62, %66 : vector<32x128xf32>
    %68 = vector.broadcast %48 : vector<1x128xf32> to vector<32x128xf32>
    %69 = arith.mulf %67, %68 : vector<32x128xf32>
    %70 = vector.broadcast %49 : vector<1x128xf32> to vector<32x128xf32>
    %71 = arith.addf %69, %70 : vector<32x128xf32>
    %c0_32 = arith.constant 0 : index
    %c0_33 = arith.constant 0 : index
    %72 = vector.load %arg10[%c0_32, %c0_33] : memref<32x128xf32, #tpu.memory_space<vmem>>, vector<32x128xf32>
    tpu.vector_store %arg10[%c0_32, %c0_33], %71 {strides = array<i32>} : memref<32x128xf32, #tpu.memory_space<vmem>>, vector<32x128xf32>,
    return
  }
  func.func @transform_0(%arg0: i32) -> (i32, i32) {
    %c0_i32 = arith.constant 0 : i32
    %c0_i32_0 = arith.constant 0 : i32
    return %arg0, %c0_i32 : i32, i32
  }
  func.func @transform_1(%arg0: i32) -> (i32, i32) {
    %c0_i32 = arith.constant 0 : i32
    %c0_i32_0 = arith.constant 0 : i32
    %c0_i32_1 = arith.constant 0 : i32
    return %c0_i32, %c0_i32_0 : i32, i32
  }
  func.func @transform_2(%arg0: i32) -> (i32, i32) {
    %c0_i32 = arith.constant 0 : i32
    %c0_i32_0 = arith.constant 0 : i32
    %c0_i32_1 = arith.constant 0 : i32
    return %c0_i32, %c0_i32_0 : i32, i32
  }
  func.func @transform_3(%arg0: i32) -> (i32, i32) {
    %c0_i32 = arith.constant 0 : i32
    %c0_i32_0 = arith.constant 0 : i32
    %c0_i32_1 = arith.constant 0 : i32
    return %c0_i32, %c0_i32_0 : i32, i32
  }
  func.func @transform_4(%arg0: i32) -> (i32, i32) {
    %c0_i32 = arith.constant 0 : i32
    %c0_i32_0 = arith.constant 0 : i32
    %c0_i32_1 = arith.constant 0 : i32
    return %c0_i32, %c0_i32_0 : i32, i32
  }
  func.func @transform_5(%arg0: i32) -> (i32, i32) {
    %c0_i32 = arith.constant 0 : i32
    %c0_i32_0 = arith.constant 0 : i32
    %c0_i32_1 = arith.constant 0 : i32
    return %c0_i32, %c0_i32_0 : i32, i32
  }
  func.func @transform_6(%arg0: i32) -> (i32, i32) {
    %c0_i32 = arith.constant 0 : i32
    %c0_i32_0 = arith.constant 0 : i32
    %c0_i32_1 = arith.constant 0 : i32
    return %c0_i32, %c0_i32_0 : i32, i32
  }
  func.func @transform_7(%arg0: i32) -> (i32, i32) {
    %c0_i32 = arith.constant 0 : i32
    %c0_i32_0 = arith.constant 0 : i32
    %c0_i32_1 = arith.constant 0 : i32
    return %c0_i32, %c0_i32_0 : i32, i32
  }
  func.func @transform_8(%arg0: i32) -> (i32, i32) {
    %c0_i32 = arith.constant 0 : i32
    %c0_i32_0 = arith.constant 0 : i32
    %c0_i32_1 = arith.constant 0 : i32
    return %c0_i32, %c0_i32_0 : i32, i32
  }
  func.func @transform_9(%arg0: i32) -> (i32, i32) {
    %c0_i32 = arith.constant 0 : i32
    %c0_i32_0 = arith.constant 0 : i32
    return %arg0, %c0_i32 : i32, i32
  }
}

</mosaic_0001>

<llo_original>
// kernel: model_forward.2
$region0: #{model_forward.2}
  #allocation0 [shape = 'u32[]', space=smem, size = 0x4, offset = 0x4, fixed_abs, tag = 'smem constant byte address 0x4 - core index']
  #allocation1 [shape = 'u32[144,128]{1,0:T(1,128)}', space=vmem, size = 0x12000, scoped, tag = 'internal scratch']
  %s0 = inlined_call_operand.vmem [shape: f32[2,16,84], index: 0, kind: input, shape index: {}]
  %s1 = inlined_call_operand.vmem [shape: bf16[84,128], index: 1, kind: input, shape index: {}]
  %s2 = inlined_call_operand.vmem [shape: f32[1,128], index: 2, kind: input, shape index: {}]
  %s3 = inlined_call_operand.vmem [shape: f32[1,128], index: 3, kind: input, shape index: {}]
  %s4 = inlined_call_operand.vmem [shape: f32[1,128], index: 4, kind: input, shape index: {}]
  %s5 = inlined_call_operand.vmem [shape: f32[16,128], index: 5, kind: input, shape index: {}]
  %s6 = inlined_call_operand.vmem [shape: f32[2,16,128], index: 6, kind: output, shape index: {}]
  %s7 = sld [smem:[#allocation0]]
  $region57: #{model_forward.2} parent=0
    _
  %s9 = ssub.s32 1, %s7
  %s10 = scalar_select 0, %s9, %s7
  loop: start=0, step=1, limit=4
  $region2: #{model_forward.2} parent=0 // loop_pre_header
    _
  $region3: #{model_forward.2} parent=0 // loop_header
    %s12 = sphi 0, %s16
    %p13 = scmp.ge.s32.totalorder %s12, 4
    %s22 = sphi 0, %s24
    %s25 = sphi 0, %s22
    %s26 = sphi 0, %s25
    %s42 = sphi 0, %s26
    %s46 = sphi 0, %s46
    %s48 = sphi 0, %s46
    %s49 = sphi 0, %s48
    %s63 = sphi 0, %s49
    %s67 = sphi 0, %s67
    %s69 = sphi 0, %s67
    %s70 = sphi 0, %s69
    %s84 = sphi 0, %s70
    %s88 = sphi 0, %s88
    %s90 = sphi 0, %s88
    %s91 = sphi 0, %s90
    %s105 = sphi 0, %s91
    %s109 = sphi 0, %s109
    %s111 = sphi 0, %s109
    %s112 = sphi 0, %s111
    %s126 = sphi 0, %s112
    %s130 = sphi 0, %s130
    %s132 = sphi 0, %s130
    %s133 = sphi 0, %s132
    %s147 = sphi 0, %s133
    %s153 = sphi 0, %s155
    %s156 = sphi 0, %s153
    %s157 = sphi 0, %s156
    %s173 = sphi 0, %s157
  $region4: #{model_forward.2} parent=0 // loop_header_branch
    %15 = sbr.rel (%p13) target = $region8
  $region5: #{model_forward.2} parent=0 // loop_body
    %s17 = ssub.s32 %s12, 1
    %s18 = ssub.s32 %s12, 2
    %s19 = sadd.s32 %s12, 1
    %s20 = ssub.s32 %s12, %s19
    %p21 = scmp.eq.s32.totalorder %s20, 0
    %s23 = sadd.s32 %s22, 1
    %s24 = scalar_select %p21, %s22, %s23
    %p27 = pneg %p21
    %p28 = scmp.eq.s32.totalorder %s12, 1
    %p29 = por %p27, %p28
    %p30 = scmp.ne.s32.totalorder %s22, %s25
    %p31 = scmp.eq.s32.totalorder %s12, 0
    %p32 = por %p30, %p31
    %p33 = scmp.ne.s32.totalorder %s22, %s25
    %p34 = scmp.eq.s32.totalorder %s17, 1
    %p35 = por %p33, %p34
    %p36 = scmp.ne.s32.totalorder %s25, %s26
    %p37 = scmp.eq.s32.totalorder %s17, 0
    %p38 = por %p36, %p37
    %p39 = scmp.ne.s32.totalorder %s25, %s26
    %p40 = scmp.eq.s32.totalorder %s18, 1
    %p41 = por %p39, %p40
    %p43 = scmp.ne.s32.totalorder %s26, %s42
    %p44 = scmp.eq.s32.totalorder %s18, 0
    %p45 = por %p43, %p44
    %s47 = sadd.s32 %s46, 1
    %p50 = scmp.eq.s32.totalorder %s12, 1
    %p51 = scmp.ne.s32.totalorder %s46, %s48
    %p52 = scmp.eq.s32.totalorder %s12, 0
    %p53 = por %p51, %p52
    %p54 = scmp.ne.s32.totalorder %s46, %s48
    %p55 = scmp.eq.s32.totalorder %s17, 1
    %p56 = por %p54, %p55
    %p57 = scmp.ne.s32.totalorder %s48, %s49
    %p58 = scmp.eq.s32.totalorder %s17, 0
    %p59 = por %p57, %p58
    %p60 = scmp.ne.s32.totalorder %s48, %s49
    %p61 = scmp.eq.s32.totalorder %s18, 1
    %p62 = por %p60, %p61
    %p64 = scmp.ne.s32.totalorder %s49, %s63
    %p65 = scmp.eq.s32.totalorder %s18, 0
    %p66 = por %p64, %p65
    %s68 = sadd.s32 %s67, 1
    %p71 = scmp.eq.s32.totalorder %s12, 1
    %p72 = scmp.ne.s32.totalorder %s67, %s69
    %p73 = scmp.eq.s32.totalorder %s12, 0
    %p74 = por %p72, %p73
    %p75 = scmp.ne.s32.totalorder %s67, %s69
    %p76 = scmp.eq.s32.totalorder %s17, 1
    %p77 = por %p75, %p76
    %p78 = scmp.ne.s32.totalorder %s69, %s70
    %p79 = scmp.eq.s32.totalorder %s17, 0
    %p80 = por %p78, %p79
    %p81 = scmp.ne.s32.totalorder %s69, %s70
    %p82 = scmp.eq.s32.totalorder %s18, 1
    %p83 = por %p81, %p82
    %p85 = scmp.ne.s32.totalorder %s70, %s84
    %p86 = scmp.eq.s32.totalorder %s18, 0
    %p87 = por %p85, %p86
    %s89 = sadd.s32 %s88, 1
    %p92 = scmp.eq.s32.totalorder %s12, 1
    %p93 = scmp.ne.s32.totalorder %s88, %s90
    %p94 = scmp.eq.s32.totalorder %s12, 0
    %p95 = por %p93, %p94
    %p96 = scmp.ne.s32.totalorder %s88, %s90
    %p97 = scmp.eq.s32.totalorder %s17, 1
    %p98 = por %p96, %p97
    %p99 = scmp.ne.s32.totalorder %s90, %s91
    %p100 = scmp.eq.s32.totalorder %s17, 0
    %p101 = por %p99, %p100
    %p102 = scmp.ne.s32.totalorder %s90, %s91
    %p103 = scmp.eq.s32.totalorder %s18, 1
    %p104 = por %p102, %p103
    %p106 = scmp.ne.s32.totalorder %s91, %s105
    %p107 = scmp.eq.s32.totalorder %s18, 0
    %p108 = por %p106, %p107
    %s110 = sadd.s32 %s109, 1
    %p113 = scmp.eq.s32.totalorder %s12, 1
    %p114 = scmp.ne.s32.totalorder %s109, %s111
    %p115 = scmp.eq.s32.totalorder %s12, 0
    %p116 = por %p114, %p115
    %p117 = scmp.ne.s32.totalorder %s109, %s111
    %p118 = scmp.eq.s32.totalorder %s17, 1
    %p119 = por %p117, %p118
    %p120 = scmp.ne.s32.totalorder %s111, %s112
    %p121 = scmp.eq.s32.totalorder %s17, 0
    %p122 = por %p120, %p121
    %p123 = scmp.ne.s32.totalorder %s111, %s112
    %p124 = scmp.eq.s32.totalorder %s18, 1
    %p125 = por %p123, %p124
    %p127 = scmp.ne.s32.totalorder %s112, %s126
    %p128 = scmp.eq.s32.totalorder %s18, 0
    %p129 = por %p127, %p128
    %s131 = sadd.s32 %s130, 1
    %p134 = scmp.eq.s32.totalorder %s12, 1
    %p135 = scmp.ne.s32.totalorder %s130, %s132
    %p136 = scmp.eq.s32.totalorder %s12, 0
    %p137 = por %p135, %p136
    %p138 = scmp.ne.s32.totalorder %s130, %s132
    %p139 = scmp.eq.s32.totalorder %s17, 1
    %p140 = por %p138, %p139
    %p141 = scmp.ne.s32.totalorder %s132, %s133
    %p142 = scmp.eq.s32.totalorder %s17, 0
    %p143 = por %p141, %p142
    %p144 = scmp.ne.s32.totalorder %s132, %s133
    %p145 = scmp.eq.s32.totalorder %s18, 1
    %p146 = por %p144, %p145
    %p148 = scmp.ne.s32.totalorder %s133, %s147
    %p149 = scmp.eq.s32.totalorder %s18, 0
    %p150 = por %p148, %p149
    %s151 = ssub.s32 %s12, %s19
    %p152 = scmp.eq.s32.totalorder %s151, 0
    %s154 = sadd.s32 %s153, 1
    %s155 = scalar_select %p152, %s153, %s154
    %p158 = pneg %p152
    %p159 = scmp.eq.s32.totalorder %s12, 1
    %p160 = por %p158, %p159
    %p161 = scmp.ne.s32.totalorder %s153, %s156
    %p162 = scmp.eq.s32.totalorder %s12, 0
    %p163 = por %p161, %p162
    %p164 = scmp.ne.s32.totalorder %s153, %s156
    %p165 = scmp.eq.s32.totalorder %s17, 1
    %p166 = por %p164, %p165
    %p167 = scmp.ne.s32.totalorder %s156, %s157
    %p168 = scmp.eq.s32.totalorder %s17, 0
    %p169 = por %p167, %p168
    %p170 = scmp.ne.s32.totalorder %s156, %s157
    %p171 = scmp.eq.s32.totalorder %s18, 1
    %p172 = por %p170, %p171
    %p174 = scmp.ne.s32.totalorder %s157, %s173
    %p175 = scmp.eq.s32.totalorder %s18, 0
    %p176 = por %p174, %p175
    %p177 = scmp.le.s32.totalorder 1, %s12
    %p178 = scmp.lt.s32.totalorder %s12, 3
    %p179 = pnand %p177, %p178
    %p180 = pneg %p179
    // Predicated region
    $region9: #{model_forward.2} parent=5 // pred_check
      _
    $region10: #{model_forward.2} parent=5 // pred_check_branch
      %182 = sbr.rel (%p179) target = $region12
    $region11: #{model_forward.2} parent=5 // pred_region
      %s183 = ssub.s32 %s12, 1
      // Predicated region
      $region13: #{model_forward.2} parent=11 // pred_check
        %p184 = pneg %p59
      $region14: #{model_forward.2} parent=11 // pred_check_branch
        %186 = sbr.rel (%p184) target = $region16
      $region15: #{model_forward.2} parent=11 // pred_region
        _
      $region16: #{model_forward.2} parent=11 // pred_fallthru
        _
      // Predicated region
      $region17: #{model_forward.2} parent=11 // pred_check
        %p187 = pneg %p80
      $region18: #{model_forward.2} parent=11 // pred_check_branch
        %189 = sbr.rel (%p187) target = $region20
      $region19: #{model_forward.2} parent=11 // pred_region
        _
      $region20: #{model_forward.2} parent=11 // pred_fallthru
        _
      // Predicated region
      $region21: #{model_forward.2} parent=11 // pred_check
        %p190 = pneg %p101
      $region22: #{model_forward.2} parent=11 // pred_check_branch
        %192 = sbr.rel (%p190) target = $region24
      $region23: #{model_forward.2} parent=11 // pred_region
        _
      $region24: #{model_forward.2} parent=11 // pred_fallthru
        _
      // Predicated region
      $region25: #{model_forward.2} parent=11 // pred_check
        %p193 = pneg %p122
      $region26: #{model_forward.2} parent=11 // pred_check_branch
        %195 = sbr.rel (%p193) target = $region28
      $region27: #{model_forward.2} parent=11 // pred_region
        _
      $region28: #{model_forward.2} parent=11 // pred_fallthru
        _
      // Predicated region
      $region29: #{model_forward.2} parent=11 // pred_check
        %p196 = pneg %p143
      $region30: #{model_forward.2} parent=11 // pred_check_branch
        %198 = sbr.rel (%p196) target = $region32
      $region31: #{model_forward.2} parent=11 // pred_region
        _
      $region32: #{model_forward.2} parent=11 // pred_fallthru
        _
    $region12: #{model_forward.2} parent=5 // pred_fallthru
      _
    %p199 = scmp.lt.s32.totalorder %s12, 2
    // Predicated region
    $region33: #{model_forward.2} parent=5 // pred_check
      %p200 = pneg %p199
    $region34: #{model_forward.2} parent=5 // pred_check_branch
      %202 = sbr.rel (%p200) target = $region36
    $region35: #{model_forward.2} parent=5 // pred_region
      // Predicated region
      $region37: #{model_forward.2} parent=35 // pred_check
        %p203 = pneg %p32
      $region38: #{model_forward.2} parent=35 // pred_check_branch
        %205 = sbr.rel (%p203) target = $region40
      $region39: #{model_forward.2} parent=35 // pred_region
        %p206 = scmp.lt.s32.totalorder %s12, 1
        %s207 = scalar_select %p206, %s12, 1
        %s208 = smul.addr %s207, 2
        %s209 = smul.addr %s208, 8
        %s210 = scalar_lea.vmem %s0, %s209
      $region40: #{model_forward.2} parent=35 // pred_fallthru
        _
    $region36: #{model_forward.2} parent=5 // pred_fallthru
      _
    %p211 = scmp.le.s32.totalorder 1, %s12
    %p212 = scmp.lt.s32.totalorder %s12, 3
    %p213 = pnand %p211, %p212
    %p214 = pneg %p213
    // Predicated region
    $region41: #{model_forward.2} parent=5 // pred_check
      _
    $region42: #{model_forward.2} parent=5 // pred_check_branch
      %216 = sbr.rel (%p213) target = $region44
    $region43: #{model_forward.2} parent=5 // pred_region
      %s217 = ssub.s32 %s12, 1
      %p218 = scmp.lt.s32.totalorder %s17, 1
      %s219 = scalar_select %p218, %s17, 1
      %s220 = smul.addr %s219, 2
      %s221 = smul.addr %s220, 8
      %s222 = scalar_lea.vmem %s0, %s221
      %p223 = pneg %p38
      %p224 = pneg %p35
      %p225 = pneg %p59
      %p226 = pneg %p56
      %p227 = pneg %p80
      %p228 = pneg %p77
      %p229 = pneg %p101
      %p230 = pneg %p98
      %p231 = pneg %p122
      %p232 = pneg %p119
      %p233 = pneg %p143
      %p234 = pneg %p140
      %p235 = pneg %p169
      %p236 = pneg %p166
      %p237 = scmp.lt.s32.totalorder %s17, 1
      %s238 = scalar_select %p237, %s17, 1
      %s239 = smul.addr %s238, 2
      %s240 = smul.addr %s239, 8
      %s241 = scalar_lea.vmem %s6, %s240
      %p242 = scmp.lt.s32.totalorder %s17, 1
      %s243 = scalar_select %p242, %s17, 1
      %s244 = smul.addr %s243, 2
      %s245 = smul.addr %s244, 8
      %s246 = scalar_lea.vmem %s0, %s245
      %p247 = scmp.lt.s32.totalorder %s17, 1
      %s248 = scalar_select %p247, %s17, 1
      %s249 = smul.addr %s248, 2
      %s250 = smul.addr %s249, 8
      %s251 = scalar_lea.vmem %s6, %s250
      %v253 = vld [vmem:[%s246] sm:$0xff]
      %v254 = vld [vmem:[%s246 + $0x8] sm:$0xff]
      %v255 = vld [vmem:[%s1] sm:$0xf]
      %v256 = vld [vmem:[%s1 + $0x4] sm:$0xf]
      %v257 = vld [vmem:[%s1 + $0x8] sm:$0xf]
      %v258 = vld [vmem:[%s1 + $0xc] sm:$0xf]
      %v259 = vld [vmem:[%s1 + $0x10] sm:$0xf]
      %v260 = vld [vmem:[%s1 + $0x14] sm:$0xf]
      %v261 = vld [vmem:[%s1 + $0x18] sm:$0xf]
      %v262 = vld [vmem:[%s1 + $0x1c] sm:$0xf]
      %v263 = vld [vmem:[%s1 + $0x20] sm:$0xf]
      %v264 = vld [vmem:[%s1 + $0x24] sm:$0xf]
      %v265 = vld [vmem:[%s1 + $0x28] sm:$0x3]
      %v266 = vpack.c.bf16 %v254, %v253
      %v267 = vld [vmem:[%s2] sm:$0x1]
      %v269 = vlaneseq
      %v270 = vshrl.u32 %v269, 7
      %v271 = vsub.s32 0, %v270
      %v272 = vrot.slane %v267, %v271
      %v285 = vunpack.c.l.b16 %v255
      %v286 = vunpack.c.l.b16 %v256
      %v287 = vunpack.c.l.b16 %v257
      %v288 = vunpack.c.l.b16 %v258
      %v289 = vunpack.c.l.b16 %v259
      %v290 = vunpack.c.l.b16 %v260
      %v291 = vunpack.c.l.b16 %v261
      %v292 = vunpack.c.l.b16 %v262
      %v293 = vunpack.c.l.b16 %v263
      %v294 = vunpack.c.l.b16 %v264
      %v295 = vunpack.c.l.b16 %v265
      %v296 = vpack.c.b16 %v286, %v285
      %v297 = vpack.c.b16 %v288, %v287
      %v298 = vpack.c.b16 %v290, %v289
      %v299 = vpack.c.b16 %v292, %v291
      %v300 = vpack.c.b16 %v294, %v293
      %v301 = vpack.c.b16 %v295, %v295
      %vm307 = vcmask 687104
      %v309 = vsel %vm307, %v266, 0
      %vm311 = vcmask 1041408
      %v313 = vsel %vm311, %v301, 0
      %315 = vmatprep.subr.bf16.mxu0 0
      %316 = vmatpush1.bf16.msra.mxu0 0
      %317 = vmatprep.subr.bf16.mxu0 0
      %318 = vmatpush1.bf16.msra.mxu0 0
      %319 = vmatprep.subr.bf16.mxu0 0
      %320 = vmatpush1.bf16.msra.mxu0 %v313
      %321 = vmatprep.subr.bf16.mxu0 0
      %322 = vmatpush1.bf16.msra.mxu0 %v300
      %323 = vmatprep.subr.bf16.mxu0 0
      %324 = vmatpush1.bf16.msra.mxu0 %v299
      %325 = vmatprep.subr.bf16.mxu0 0
      %326 = vmatpush1.bf16.msra.mxu0 %v298
      %327 = vmatprep.subr.bf16.mxu0 0
      %328 = vmatpush1.bf16.msra.mxu0 %v297
      %329 = vmatprep.subr.bf16.mxu0 0
      %330 = vmatpush1.bf16.msra.mxu0 %v296
      %331 = vmatprep.subr.bf16.mxu0 0
      %332 = vmatpush2.bf16.msra.mxu0 0
      %333 = vmatprep.subr.bf16.mxu0 0
      %334 = vmatpush2.bf16.msra.mxu0 0
      %335 = vmatprep.subr.bf16.mxu0 0
      %336 = vmatpush2.bf16.msra.mxu0 0
      %337 = vmatprep.subr.bf16.mxu0 0
      %338 = vmatpush2.bf16.msra.mxu0 0
      %339 = vmatprep.subr.bf16.mxu0 0
      %340 = vmatpush2.bf16.msra.mxu0 0
      %341 = vmatprep.subr.bf16.mxu0 0
      %342 = vmatpush2.bf16.msra.mxu0 0
      %343 = vmatprep.subr.bf16.mxu0 0
      %344 = vmatpush2.bf16.msra.mxu0 0
      %345 = vmatprep.subr.bf16.mxu0 0
      %346 = vmatpush2.bf16.msra.mxu0 0
      %347 = vmatprep.mubr.bf16.mxu0 0
      %348 = vmatmul.mubr.bf16.gmra.mxu0 %v309
      %v349 = vpop.f32.mrf.mxu0
      %v350 = vadd.f32 %v272, %v349
      %v351 = vpop.f32.mrf.mxu0
      %v352 = vpop.f32.mrf.mxu0
      %v353 = vadd.f32 %v272, %v352
      %v354 = vpop.f32.mrf.mxu0
      %355 = vdwg.mxu0
      %v356 = vld [vmem:[%s3] sm:$0x1]
      %v357 = vld [vmem:[%s4] sm:$0x1]
      %358 = vadd.xlane.f32.xlu0 %v350
      %v359 = vpop.xlane.xlu0 %358
      %360 = vadd.xlane.f32.xlu0 %v353
      %v361 = vpop.xlane.xlu0 %360
      %v362 = vrcp.pop 128.0
      %v363 = vmul.f32 %v359, %v362
      %v364 = vmul.f32 %v361, %v362
      %v365 = vsub.f32 %v350, %v363
      %v366 = vsub.f32 %v353, %v364
      %v367 = vmul.f32 %v365, %v365
      %v368 = vmul.f32 %v366, %v366
      %369 = vadd.xlane.f32.xlu0 %v367
      %v370 = vpop.xlane.xlu0 %369
      %371 = vadd.xlane.f32.xlu0 %v368
      %v372 = vpop.xlane.xlu0 %371
      %v373 = vmul.f32 %v370, %v362
      %v374 = vmul.f32 %v372, %v362
      %v375 = vadd.f32 %v373, 1e-05
      %v376 = vadd.f32 %v374, 1e-05
      %v377 = vrsqrt.pop %v375
      %v378 = vrsqrt.pop %v376
      %v379 = vmul.f32 %v365, %v377
      %v380 = vmul.f32 %v366, %v378
      %v382 = vlaneseq
      %v383 = vshrl.u32 %v382, 7
      %v384 = vsub.s32 0, %v383
      %v385 = vrot.slane %v356, %v384
      %v387 = vmul.f32 %v379, %v385
      %v388 = vmul.f32 %v380, %v385
      %v390 = vlaneseq
      %v391 = vshrl.u32 %v390, 7
      %v392 = vsub.s32 0, %v391
      %v393 = vrot.slane %v357, %v392
      %v395 = vadd.f32 %v387, %v393
      %v396 = vadd.f32 %v388, %v393
      %v397 = vmul.f32 %v395, 11.313708
      %v398 = vmul.f32 %v396, 11.313708
      %v399 = vld [vmem:[%s5] sm:$0xff]
      %v400 = vld [vmem:[%s5 + $0x8] sm:$0xff]
      %v401 = vadd.f32 %v397, %v399
      %v402 = vadd.f32 %v398, %v400
      %403 = vst [vmem:[%s251] sm:$0xff] %v401
      %404 = vst [vmem:[%s251 + $0x8] sm:$0xff] %v402
      %p405 = scmp.lt.s32.totalorder %s17, 1
      %s406 = scalar_select %p405, %s17, 1
      %s407 = smul.addr %s406, 2
      %s408 = smul.addr %s407, 8
      %s409 = scalar_lea.vmem %s6, %s408
      // Predicated region
      $region45: #{model_forward.2} parent=43 // pred_check
        %p410 = pneg %p166
      $region46: #{model_forward.2} parent=43 // pred_check_branch
        %412 = sbr.rel (%p410) target = $region48
      $region47: #{model_forward.2} parent=43 // pred_region
        _
      $region48: #{model_forward.2} parent=43 // pred_fallthru
        _
    $region44: #{model_forward.2} parent=5 // pred_fallthru
      _
    %p413 = scmp.le.s32.totalorder 2, %s12
    // Predicated region
    $region49: #{model_forward.2} parent=5 // pred_check
      %p414 = pneg %p413
    $region50: #{model_forward.2} parent=5 // pred_check_branch
      %416 = sbr.rel (%p414) target = $region52
    $region51: #{model_forward.2} parent=5 // pred_region
      %s417 = ssub.s32 %s12, 2
      // Predicated region
      $region53: #{model_forward.2} parent=51 // pred_check
        %p418 = pneg %p172
      $region54: #{model_forward.2} parent=51 // pred_check_branch
        %420 = sbr.rel (%p418) target = $region56
      $region55: #{model_forward.2} parent=51 // pred_region
        %p421 = scmp.lt.s32.totalorder %s18, 1
        %s422 = scalar_select %p421, %s18, 1
        %s423 = smul.addr %s422, 2
        %s424 = smul.addr %s423, 8
        %s425 = scalar_lea.vmem %s6, %s424
      $region56: #{model_forward.2} parent=51 // pred_fallthru
        _
    $region52: #{model_forward.2} parent=5 // pred_fallthru
      _
  $region6: #{model_forward.2} parent=0 // loop_footer
    %s16 = sadd.s32 1, %s12
  $region7: #{model_forward.2} parent=0 // loop_footer_branch
    %11 = sbr.rel target = $region3
  $region8: #{model_forward.2} parent=0 // loop_exit
    _

// kernel: closed_call.13
$region0: #{closed_call.13}
  #allocation0 [shape = 'u32[]', space=smem, size = 0x4, offset = 0x4, fixed_abs, tag = 'smem constant byte address 0x4 - core index']
  #allocation1 [shape = 'u32[144,128]{1,0:T(1,128)}', space=vmem, size = 0x12000, scoped, tag = 'internal scratch']
  %s0 = inlined_call_operand.vmem [shape: f32[32,128], index: 0, kind: input, shape index: {}]
  %s1 = inlined_call_operand.vmem [shape: f32[1,128], index: 1, kind: input, shape index: {}, may-alias: {1,7}]
  %s2 = inlined_call_operand.vmem [shape: f32[1,128], index: 2, kind: input, shape index: {}, may-alias: {2,8}]
  %s3 = inlined_call_operand.vmem [shape: bf16[128,256], index: 3, kind: input, shape index: {}]
  %s4 = inlined_call_operand.vmem [shape: f32[1,256], index: 4, kind: input, shape index: {}]
  %s5 = inlined_call_operand.vmem [shape: bf16[256,128], index: 5, kind: input, shape index: {}]
  %s6 = inlined_call_operand.vmem [shape: f32[1,128], index: 6, kind: input, shape index: {}]
  %s7 = inlined_call_operand.vmem [shape: f32[1,128], index: 7, kind: input, shape index: {}, may-alias: {1,7}]
  %s8 = inlined_call_operand.vmem [shape: f32[1,128], index: 8, kind: input, shape index: {}, may-alias: {2,8}]
  %s9 = inlined_call_operand.vmem [shape: f32[32,128], index: 9, kind: output, shape index: {}]
  %s10 = sld [smem:[#allocation0]]
  $region46: #{closed_call.13} parent=0
    _
  %s12 = ssub.s32 1, %s10
  %s13 = scalar_select 0, %s12, %s10
  // Predicated region
  $region2: #{closed_call.13} parent=0 // pred_check
    _
  $region3: #{closed_call.13} parent=0 // pred_check_branch
    %15 = sbr.rel (0) target = $region5
  $region4: #{closed_call.13} parent=0 // pred_region
    _
  $region5: #{closed_call.13} parent=0 // pred_fallthru
    _
  // Predicated region
  $region6: #{closed_call.13} parent=0 // pred_check
    _
  $region7: #{closed_call.13} parent=0 // pred_check_branch
    %17 = sbr.rel (0) target = $region9
  $region8: #{closed_call.13} parent=0 // pred_region
    _
  $region9: #{closed_call.13} parent=0 // pred_fallthru
    _
  // Predicated region
  $region10: #{closed_call.13} parent=0 // pred_check
    _
  $region11: #{closed_call.13} parent=0 // pred_check_branch
    %19 = sbr.rel (0) target = $region13
  $region12: #{closed_call.13} parent=0 // pred_region
    _
  $region13: #{closed_call.13} parent=0 // pred_fallthru
    _
  // Predicated region
  $region14: #{closed_call.13} parent=0 // pred_check
    _
  $region15: #{closed_call.13} parent=0 // pred_check_branch
    %21 = sbr.rel (0) target = $region17
  $region16: #{closed_call.13} parent=0 // pred_region
    _
  $region17: #{closed_call.13} parent=0 // pred_fallthru
    _
  // Predicated region
  $region18: #{closed_call.13} parent=0 // pred_check
    _
  $region19: #{closed_call.13} parent=0 // pred_check_branch
    %23 = sbr.rel (0) target = $region21
  $region20: #{closed_call.13} parent=0 // pred_region
    _
  $region21: #{closed_call.13} parent=0 // pred_fallthru
    _
  // Predicated region
  $region22: #{closed_call.13} parent=0 // pred_check
    _
  $region23: #{closed_call.13} parent=0 // pred_check_branch
    %25 = sbr.rel (0) target = $region25
  $region24: #{closed_call.13} parent=0 // pred_region
    _
  $region25: #{closed_call.13} parent=0 // pred_fallthru
    _
  // Predicated region
  $region26: #{closed_call.13} parent=0 // pred_check
    _
  $region27: #{closed_call.13} parent=0 // pred_check_branch
    %27 = sbr.rel (0) target = $region29
  $region28: #{closed_call.13} parent=0 // pred_region
    _
  $region29: #{closed_call.13} parent=0 // pred_fallthru
    _
  // Predicated region
  $region30: #{closed_call.13} parent=0 // pred_check
    _
  $region31: #{closed_call.13} parent=0 // pred_check_branch
    %29 = sbr.rel (0) target = $region33
  $region32: #{closed_call.13} parent=0 // pred_region
    _
  $region33: #{closed_call.13} parent=0 // pred_fallthru
    _
  // Predicated region
  $region34: #{closed_call.13} parent=0 // pred_check
    _
  $region35: #{closed_call.13} parent=0 // pred_check_branch
    %31 = sbr.rel (0) target = $region37
  $region36: #{closed_call.13} parent=0 // pred_region
    _
  $region37: #{closed_call.13} parent=0 // pred_fallthru
    _
  %v33 = vld [vmem:[%s0] sm:$0xff]
  %v34 = vld [vmem:[%s0 + $0x8] sm:$0xff]
  %v35 = vld [vmem:[%s0 + $0x10] sm:$0xff]
  %v36 = vld [vmem:[%s0 + $0x18] sm:$0xff]
  %v37 = vld [vmem:[%s1] sm:$0x1]
  %v38 = vld [vmem:[%s2] sm:$0x1]
  %39 = vadd.xlane.f32.xlu0 %v33
  %v40 = vpop.xlane.xlu0 %39
  %41 = vadd.xlane.f32.xlu0 %v34
  %v42 = vpop.xlane.xlu0 %41
  %43 = vadd.xlane.f32.xlu0 %v35
  %v44 = vpop.xlane.xlu0 %43
  %45 = vadd.xlane.f32.xlu0 %v36
  %v46 = vpop.xlane.xlu0 %45
  %v47 = vrcp.pop 128.0
  %v48 = vmul.f32 %v40, %v47
  %v49 = vmul.f32 %v42, %v47
  %v50 = vmul.f32 %v44, %v47
  %v51 = vmul.f32 %v46, %v47
  %v52 = vsub.f32 %v33, %v48
  %v53 = vsub.f32 %v34, %v49
  %v54 = vsub.f32 %v35, %v50
  %v55 = vsub.f32 %v36, %v51
  %v56 = vmul.f32 %v52, %v52
  %v57 = vmul.f32 %v53, %v53
  %v58 = vmul.f32 %v54, %v54
  %v59 = vmul.f32 %v55, %v55
  %60 = vadd.xlane.f32.xlu0 %v56
  %v61 = vpop.xlane.xlu0 %60
  %62 = vadd.xlane.f32.xlu0 %v57
  %v63 = vpop.xlane.xlu0 %62
  %64 = vadd.xlane.f32.xlu0 %v58
  %v65 = vpop.xlane.xlu0 %64
  %66 = vadd.xlane.f32.xlu0 %v59
  %v67 = vpop.xlane.xlu0 %66
  %v68 = vmul.f32 %v61, %v47
  %v69 = vmul.f32 %v63, %v47
  %v70 = vmul.f32 %v65, %v47
  %v71 = vmul.f32 %v67, %v47
  %v72 = vadd.f32 %v68, 1e-05
  %v73 = vadd.f32 %v69, 1e-05
  %v74 = vadd.f32 %v70, 1e-05
  %v75 = vadd.f32 %v71, 1e-05
  %v76 = vrsqrt.pop %v72
  %v77 = vrsqrt.pop %v73
  %v78 = vrsqrt.pop %v74
  %v79 = vrsqrt.pop %v75
  %v80 = vmul.f32 %v52, %v76
  %v81 = vmul.f32 %v53, %v77
  %v82 = vmul.f32 %v54, %v78
  %v83 = vmul.f32 %v55, %v79
  %v85 = vlaneseq
  %v86 = vshrl.u32 %v85, 7
  %v87 = vsub.s32 0, %v86
  %v88 = vrot.slane %v37, %v87
  %v90 = vmul.f32 %v80, %v88
  %v91 = vmul.f32 %v81, %v88
  %v92 = vmul.f32 %v82, %v88
  %v93 = vmul.f32 %v83, %v88
  %v95 = vlaneseq
  %v96 = vshrl.u32 %v95, 7
  %v97 = vsub.s32 0, %v96
  %v98 = vrot.slane %v38, %v97
  %v100 = vadd.f32 %v90, %v98
  %v101 = vadd.f32 %v91, %v98
  %v102 = vadd.f32 %v92, %v98
  %v103 = vadd.f32 %v93, %v98
  %v104 = vld [vmem:[%s3] sm:$0xff]
  %v105 = vld [vmem:[%s3 + $0x8] sm:$0xff]
  %v106 = vld [vmem:[%s3 + $0x10] sm:$0xff]
  %v107 = vld [vmem:[%s3 + $0x18] sm:$0xff]
  %v108 = vld [vmem:[%s3 + $0x20] sm:$0xff]
  %v109 = vld [vmem:[%s3 + $0x28] sm:$0xff]
  %v110 = vld [vmem:[%s3 + $0x30] sm:$0xff]
  %v111 = vld [vmem:[%s3 + $0x38] sm:$0xff]
  %v112 = vld [vmem:[%s3 + $0x40] sm:$0xff]
  %v113 = vld [vmem:[%s3 + $0x48] sm:$0xff]
  %v114 = vld [vmem:[%s3 + $0x50] sm:$0xff]
  %v115 = vld [vmem:[%s3 + $0x58] sm:$0xff]
  %v116 = vld [vmem:[%s3 + $0x60] sm:$0xff]
  %v117 = vld [vmem:[%s3 + $0x68] sm:$0xff]
  %v118 = vld [vmem:[%s3 + $0x70] sm:$0xff]
  %v119 = vld [vmem:[%s3 + $0x78] sm:$0xff]
  %v120 = vpack.c.bf16 %v101, %v100
  %v121 = vpack.c.bf16 %v103, %v102
  %v122 = vld [vmem:[%s4] sm:$0x3]
  %v124 = vlaneseq
  %v125 = vshrl.u32 %v124, 7
  %v126 = vsub.s32 0, %v125
  %v127 = vrot.slane %v122, %v126
  %v128 = vlaneseq
  %v129 = vshrl.u32 %v128, 7
  %v130 = vsub.s32 1, %v129
  %v131 = vrot.slane %v122, %v130
  %v150 = vunpack.c.l.b16 %v104
  %v151 = vunpack.c.h.b16 %v104
  %v152 = vunpack.c.l.b16 %v105
  %v153 = vunpack.c.h.b16 %v105
  %v154 = vunpack.c.l.b16 %v106
  %v155 = vunpack.c.h.b16 %v106
  %v156 = vunpack.c.l.b16 %v107
  %v157 = vunpack.c.h.b16 %v107
  %v158 = vunpack.c.l.b16 %v108
  %v159 = vunpack.c.h.b16 %v108
  %v160 = vunpack.c.l.b16 %v109
  %v161 = vunpack.c.h.b16 %v109
  %v162 = vunpack.c.l.b16 %v110
  %v163 = vunpack.c.h.b16 %v110
  %v164 = vunpack.c.l.b16 %v111
  %v165 = vunpack.c.h.b16 %v111
  %v166 = vunpack.c.l.b16 %v112
  %v167 = vunpack.c.h.b16 %v112
  %v168 = vunpack.c.l.b16 %v113
  %v169 = vunpack.c.h.b16 %v113
  %v170 = vunpack.c.l.b16 %v114
  %v171 = vunpack.c.h.b16 %v114
  %v172 = vunpack.c.l.b16 %v115
  %v173 = vunpack.c.h.b16 %v115
  %v174 = vunpack.c.l.b16 %v116
  %v175 = vunpack.c.h.b16 %v116
  %v176 = vunpack.c.l.b16 %v117
  %v177 = vunpack.c.h.b16 %v117
  %v178 = vunpack.c.l.b16 %v118
  %v179 = vunpack.c.h.b16 %v118
  %v180 = vunpack.c.l.b16 %v119
  %v181 = vunpack.c.h.b16 %v119
  %v182 = vpack.c.b16 %v152, %v150
  %v183 = vpack.c.b16 %v153, %v151
  %v184 = vpack.c.b16 %v156, %v154
  %v185 = vpack.c.b16 %v157, %v155
  %v186 = vpack.c.b16 %v160, %v158
  %v187 = vpack.c.b16 %v161, %v159
  %v188 = vpack.c.b16 %v164, %v162
  %v189 = vpack.c.b16 %v165, %v163
  %v190 = vpack.c.b16 %v168, %v166
  %v191 = vpack.c.b16 %v169, %v167
  %v192 = vpack.c.b16 %v172, %v170
  %v193 = vpack.c.b16 %v173, %v171
  %v194 = vpack.c.b16 %v176, %v174
  %v195 = vpack.c.b16 %v177, %v175
  %v196 = vpack.c.b16 %v180, %v178
  %v197 = vpack.c.b16 %v181, %v179
  %214 = vmatprep.subr.bf16.mxu0 %v197
  %215 = vmatpush1.bf16.msra.mxu0 %v196
  %216 = vmatprep.subr.bf16.mxu0 %v195
  %217 = vmatpush1.bf16.msra.mxu0 %v194
  %218 = vmatprep.subr.bf16.mxu0 %v193
  %219 = vmatpush1.bf16.msra.mxu0 %v192
  %220 = vmatprep.subr.bf16.mxu0 %v191
  %221 = vmatpush1.bf16.msra.mxu0 %v190
  %222 = vmatprep.subr.bf16.mxu0 %v189
  %223 = vmatpush1.bf16.msra.mxu0 %v188
  %224 = vmatprep.subr.bf16.mxu0 %v187
  %225 = vmatpush1.bf16.msra.mxu0 %v186
  %226 = vmatprep.subr.bf16.mxu0 %v185
  %227 = vmatpush1.bf16.msra.mxu0 %v184
  %228 = vmatprep.subr.bf16.mxu0 %v183
  %229 = vmatpush1.bf16.msra.mxu0 %v182
  %230 = vmatprep.subr.bf16.mxu0 0
  %231 = vmatpush2.bf16.msra.mxu0 0
  %232 = vmatprep.subr.bf16.mxu0 0
  %233 = vmatpush2.bf16.msra.mxu0 0
  %234 = vmatprep.subr.bf16.mxu0 0
  %235 = vmatpush2.bf16.msra.mxu0 0
  %236 = vmatprep.subr.bf16.mxu0 0
  %237 = vmatpush2.bf16.msra.mxu0 0
  %238 = vmatprep.subr.bf16.mxu0 0
  %239 = vmatpush2.bf16.msra.mxu0 0
  %240 = vmatprep.subr.bf16.mxu0 0
  %241 = vmatpush2.bf16.msra.mxu0 0
  %242 = vmatprep.subr.bf16.mxu0 0
  %243 = vmatpush2.bf16.msra.mxu0 0
  %244 = vmatprep.subr.bf16.mxu0 0
  %245 = vmatpush2.bf16.msra.mxu0 0
  %246 = vmatprep.mubr.bf16.mxu0 0
  %247 = vmatmul.mubr.bf16.gmra.mxu0 %v120
  %v248 = vpop.f32.mrf.mxu0
  %v249 = vadd.f32 %v127, %v248
  %v250 = vpop.f32.mrf.mxu0
  %v251 = vadd.f32 %v131, %v250
  %v252 = vpop.f32.mrf.mxu0
  %v253 = vadd.f32 %v127, %v252
  %v254 = vpop.f32.mrf.mxu0
  %v255 = vadd.f32 %v131, %v254
  %256 = vmatprep.mubr.bf16.mxu0 0
  %257 = vmatmul.mubr.bf16.gmra.mxu0 %v121
  %v258 = vpop.f32.mrf.mxu0
  %v259 = vadd.f32 %v127, %v258
  %v260 = vpop.f32.mrf.mxu0
  %v261 = vadd.f32 %v131, %v260
  %v262 = vpop.f32.mrf.mxu0
  %v263 = vadd.f32 %v127, %v262
  %v264 = vpop.f32.mrf.mxu0
  %v265 = vadd.f32 %v131, %v264
  %266 = vdwg.mxu0
  %v267 = vsub.f32 0.0, %v249
  %v268 = vsub.f32 0.0, %v251
  %v269 = vsub.f32 0.0, %v253
  %v270 = vsub.f32 0.0, %v255
  %v271 = vsub.f32 0.0, %v259
  %v272 = vsub.f32 0.0, %v261
  %v273 = vsub.f32 0.0, %v263
  %v274 = vsub.f32 0.0, %v265
  %v275 = vmul.f32 %v267, 1.442695
  %v276 = vpow.pop %v275
  %v277 = vmul.f32 %v268, 1.442695
  %v278 = vpow.pop %v277
  %v279 = vmul.f32 %v269, 1.442695
  %v280 = vpow.pop %v279
  %v281 = vmul.f32 %v270, 1.442695
  %v282 = vpow.pop %v281
  %v283 = vmul.f32 %v271, 1.442695
  %v284 = vpow.pop %v283
  %v285 = vmul.f32 %v272, 1.442695
  %v286 = vpow.pop %v285
  %v287 = vmul.f32 %v273, 1.442695
  %v288 = vpow.pop %v287
  %v289 = vmul.f32 %v274, 1.442695
  %v290 = vpow.pop %v289
  %v291 = vadd.f32 %v276, 1.0
  %v292 = vadd.f32 %v278, 1.0
  %v293 = vadd.f32 %v280, 1.0
  %v294 = vadd.f32 %v282, 1.0
  %v295 = vadd.f32 %v284, 1.0
  %v296 = vadd.f32 %v286, 1.0
  %v297 = vadd.f32 %v288, 1.0
  %v298 = vadd.f32 %v290, 1.0
  %v299 = vrcp.pop %v291
  %v300 = vmul.f32 1.0, %v299
  %v301 = vrcp.pop %v292
  %v302 = vmul.f32 1.0, %v301
  %v303 = vrcp.pop %v293
  %v304 = vmul.f32 1.0, %v303
  %v305 = vrcp.pop %v294
  %v306 = vmul.f32 1.0, %v305
  %v307 = vrcp.pop %v295
  %v308 = vmul.f32 1.0, %v307
  %v309 = vrcp.pop %v296
  %v310 = vmul.f32 1.0, %v309
  %v311 = vrcp.pop %v297
  %v312 = vmul.f32 1.0, %v311
  %v313 = vrcp.pop %v298
  %v314 = vmul.f32 1.0, %v313
  %v315 = vmul.f32 %v249, %v300
  %v316 = vmul.f32 %v251, %v302
  %v317 = vmul.f32 %v253, %v304
  %v318 = vmul.f32 %v255, %v306
  %v319 = vmul.f32 %v259, %v308
  %v320 = vmul.f32 %v261, %v310
  %v321 = vmul.f32 %v263, %v312
  %v322 = vmul.f32 %v265, %v314
  %v323 = vld [vmem:[%s5] sm:$0xf]
  %v324 = vld [vmem:[%s5 + $0x4] sm:$0xf]
  %v325 = vld [vmem:[%s5 + $0x8] sm:$0xf]
  %v326 = vld [vmem:[%s5 + $0xc] sm:$0xf]
  %v327 = vld [vmem:[%s5 + $0x10] sm:$0xf]
  %v328 = vld [vmem:[%s5 + $0x14] sm:$0xf]
  %v329 = vld [vmem:[%s5 + $0x18] sm:$0xf]
  %v330 = vld [vmem:[%s5 + $0x1c] sm:$0xf]
  %v331 = vld [vmem:[%s5 + $0x20] sm:$0xf]
  %v332 = vld [vmem:[%s5 + $0x24] sm:$0xf]
  %v333 = vld [vmem:[%s5 + $0x28] sm:$0xf]
  %v334 = vld [vmem:[%s5 + $0x2c] sm:$0xf]
  %v335 = vld [vmem:[%s5 + $0x30] sm:$0xf]
  %v336 = vld [vmem:[%s5 + $0x34] sm:$0xf]
  %v337 = vld [vmem:[%s5 + $0x38] sm:$0xf]
  %v338 = vld [vmem:[%s5 + $0x3c] sm:$0xf]
  %v339 = vld [vmem:[%s5 + $0x40] sm:$0xf]
  %v340 = vld [vmem:[%s5 + $0x44] sm:$0xf]
  %v341 = vld [vmem:[%s5 + $0x48] sm:$0xf]
  %v342 = vld [vmem:[%s5 + $0x4c] sm:$0xf]
  %v343 = vld [vmem:[%s5 + $0x50] sm:$0xf]
  %v344 = vld [vmem:[%s5 + $0x54] sm:$0xf]
  %v345 = vld [vmem:[%s5 + $0x58] sm:$0xf]
  %v346 = vld [vmem:[%s5 + $0x5c] sm:$0xf]
  %v347 = vld [vmem:[%s5 + $0x60] sm:$0xf]
  %v348 = vld [vmem:[%s5 + $0x64] sm:$0xf]
  %v349 = vld [vmem:[%s5 + $0x68] sm:$0xf]
  %v350 = vld [vmem:[%s5 + $0x6c] sm:$0xf]
  %v351 = vld [vmem:[%s5 + $0x70] sm:$0xf]
  %v352 = vld [vmem:[%s5 + $0x74] sm:$0xf]
  %v353 = vld [vmem:[%s5 + $0x78] sm:$0xf]
  %v354 = vld [vmem:[%s5 + $0x7c] sm:$0xf]
  %v355 = vpack.c.bf16 %v317, %v315
  %v356 = vpack.c.bf16 %v318, %v316
  %v357 = vpack.c.bf16 %v321, %v319
  %v358 = vpack.c.bf16 %v322, %v320
  %v359 = vld [vmem:[%s6] sm:$0x1]
  %v361 = vlaneseq
  %v362 = vshrl.u32 %v361, 7
  %v363 = vsub.s32 0, %v362
  %v364 = vrot.slane %v359, %v363
  %v398 = vunpack.c.l.b16 %v323
  %v399 = vunpack.c.l.b16 %v324
  %v400 = vunpack.c.l.b16 %v325
  %v401 = vunpack.c.l.b16 %v326
  %v402 = vunpack.c.l.b16 %v327
  %v403 = vunpack.c.l.b16 %v328
  %v404 = vunpack.c.l.b16 %v329
  %v405 = vunpack.c.l.b16 %v330
  %v406 = vunpack.c.l.b16 %v331
  %v407 = vunpack.c.l.b16 %v332
  %v408 = vunpack.c.l.b16 %v333
  %v409 = vunpack.c.l.b16 %v334
  %v410 = vunpack.c.l.b16 %v335
  %v411 = vunpack.c.l.b16 %v336
  %v412 = vunpack.c.l.b16 %v337
  %v413 = vunpack.c.l.b16 %v338
  %v414 = vunpack.c.l.b16 %v339
  %v415 = vunpack.c.l.b16 %v340
  %v416 = vunpack.c.l.b16 %v341
  %v417 = vunpack.c.l.b16 %v342
  %v418 = vunpack.c.l.b16 %v343
  %v419 = vunpack.c.l.b16 %v344
  %v420 = vunpack.c.l.b16 %v345
  %v421 = vunpack.c.l.b16 %v346
  %v422 = vunpack.c.l.b16 %v347
  %v423 = vunpack.c.l.b16 %v348
  %v424 = vunpack.c.l.b16 %v349
  %v425 = vunpack.c.l.b16 %v350
  %v426 = vunpack.c.l.b16 %v351
  %v427 = vunpack.c.l.b16 %v352
  %v428 = vunpack.c.l.b16 %v353
  %v429 = vunpack.c.l.b16 %v354
  %v430 = vpack.c.b16 %v399, %v398
  %v431 = vpack.c.b16 %v401, %v400
  %v432 = vpack.c.b16 %v403, %v402
  %v433 = vpack.c.b16 %v405, %v404
  %v434 = vpack.c.b16 %v407, %v406
  %v435 = vpack.c.b16 %v409, %v408
  %v436 = vpack.c.b16 %v411, %v410
  %v437 = vpack.c.b16 %v413, %v412
  %v438 = vpack.c.b16 %v415, %v414
  %v439 = vpack.c.b16 %v417, %v416
  %v440 = vpack.c.b16 %v419, %v418
  %v441 = vpack.c.b16 %v421, %v420
  %v442 = vpack.c.b16 %v423, %v422
  %v443 = vpack.c.b16 %v425, %v424
  %v444 = vpack.c.b16 %v427, %v426
  %v445 = vpack.c.b16 %v429, %v428
  %462 = vmatprep.subr.bf16.mxu0 0
  %463 = vmatpush1.bf16.msra.mxu0 %v437
  %464 = vmatprep.subr.bf16.mxu0 0
  %465 = vmatpush1.bf16.msra.mxu0 %v436
  %466 = vmatprep.subr.bf16.mxu0 0
  %467 = vmatpush1.bf16.msra.mxu0 %v435
  %468 = vmatprep.subr.bf16.mxu0 0
  %469 = vmatpush1.bf16.msra.mxu0 %v434
  %470 = vmatprep.subr.bf16.mxu0 0
  %471 = vmatpush1.bf16.msra.mxu0 %v433
  %472 = vmatprep.subr.bf16.mxu0 0
  %473 = vmatpush1.bf16.msra.mxu0 %v432
  %474 = vmatprep.subr.bf16.mxu0 0
  %475 = vmatpush1.bf16.msra.mxu0 %v431
  %476 = vmatprep.subr.bf16.mxu0 0
  %477 = vmatpush1.bf16.msra.mxu0 %v430
  %478 = vmatprep.subr.bf16.mxu0 0
  %479 = vmatpush2.bf16.msra.mxu0 %v445
  %480 = vmatprep.subr.bf16.mxu0 0
  %481 = vmatpush2.bf16.msra.mxu0 %v444
  %482 = vmatprep.subr.bf16.mxu0 0
  %483 = vmatpush2.bf16.msra.mxu0 %v443
  %484 = vmatprep.subr.bf16.mxu0 0
  %485 = vmatpush2.bf16.msra.mxu0 %v442
  %486 = vmatprep.subr.bf16.mxu0 0
  %487 = vmatpush2.bf16.msra.mxu0 %v441
  %488 = vmatprep.subr.bf16.mxu0 0
  %489 = vmatpush2.bf16.msra.mxu0 %v440
  %490 = vmatprep.subr.bf16.mxu0 0
  %491 = vmatpush2.bf16.msra.mxu0 %v439
  %492 = vmatprep.subr.bf16.mxu0 0
  %493 = vmatpush2.bf16.msra.mxu0 %v438
  %494 = vmatprep.mubr.bf16.mxu0 %v356
  %495 = vmatmul.mubr.bf16.gmra.mxu0 %v355
  %v496 = vpop.f32.mrf.mxu0
  %v497 = vadd.f32 %v364, %v496
  %v498 = vpop.f32.mrf.mxu0
  %v499 = vpop.f32.mrf.mxu0
  %v500 = vadd.f32 %v364, %v499
  %v501 = vpop.f32.mrf.mxu0
  %502 = vmatprep.mubr.bf16.mxu0 %v358
  %503 = vmatmul.mubr.bf16.gmra.mxu0 %v357
  %v504 = vpop.f32.mrf.mxu0
  %v505 = vadd.f32 %v364, %v504
  %v506 = vpop.f32.mrf.mxu0
  %v507 = vpop.f32.mrf.mxu0
  %v508 = vadd.f32 %v364, %v507
  %v509 = vpop.f32.mrf.mxu0
  %510 = vdwg.mxu0
  %v511 = vmul.f32 %v497, 0.5
  %v512 = vmul.f32 %v500, 0.5
  %v513 = vmul.f32 %v505, 0.5
  %v514 = vmul.f32 %v508, 0.5
  %v515 = vadd.f32 %v33, %v511
  %v516 = vadd.f32 %v34, %v512
  %v517 = vadd.f32 %v35, %v513
  %v518 = vadd.f32 %v36, %v514
  %519 = vst [vmem:[%s9] sm:$0xff] %v515
  %520 = vst [vmem:[%s9 + $0x8] sm:$0xff] %v516
  %521 = vst [vmem:[%s9 + $0x10] sm:$0xff] %v517
  %522 = vst [vmem:[%s9 + $0x18] sm:$0xff] %v518
  // Predicated region
  $region38: #{closed_call.13} parent=0 // pred_check
    _
  $region39: #{closed_call.13} parent=0 // pred_check_branch
    %524 = sbr.rel (0) target = $region41
  $region40: #{closed_call.13} parent=0 // pred_region
    _
  $region41: #{closed_call.13} parent=0 // pred_fallthru
    _
  // Predicated region
  $region42: #{closed_call.13} parent=0 // pred_check
    _
  $region43: #{closed_call.13} parent=0 // pred_check_branch
    %526 = sbr.rel (0) target = $region45
  $region44: #{closed_call.13} parent=0 // pred_region
    _
  $region45: #{closed_call.13} parent=0 // pred_fallthru
    _

// kernel: closed_call.14
$region0: #{closed_call.14}
  #allocation0 [shape = 'u32[]', space=smem, size = 0x4, offset = 0x4, fixed_abs, tag = 'smem constant byte address 0x4 - core index']
  #allocation1 [shape = 'u32[144,128]{1,0:T(1,128)}', space=vmem, size = 0x12000, scoped, tag = 'internal scratch']
  %s0 = inlined_call_operand.vmem [shape: f32[2,16,128], index: 0, kind: input, shape index: {}]
  %s1 = inlined_call_operand.vmem [shape: f32[1,128], index: 1, kind: input, shape index: {}]
  %s2 = inlined_call_operand.vmem [shape: f32[1,128], index: 2, kind: input, shape index: {}]
  %s3 = inlined_call_operand.vmem [shape: bf16[128,384], index: 3, kind: input, shape index: {}]
  %s4 = inlined_call_operand.vmem [shape: f32[1,384], index: 4, kind: input, shape index: {}]
  %s5 = inlined_call_operand.vmem [shape: bf16[128,128], index: 5, kind: input, shape index: {}]
  %s6 = inlined_call_operand.vmem [shape: f32[1,128], index: 6, kind: input, shape index: {}]
  %s7 = inlined_call_operand.vmem [shape: f32[2,16,128], index: 7, kind: output, shape index: {}]
  %s8 = sld [smem:[#allocation0]]
  $region61: #{closed_call.14} parent=0
    _
  %s10 = ssub.s32 1, %s8
  %s11 = scalar_select 0, %s10, %s8
  loop: start=0, step=1, limit=4
  $region2: #{closed_call.14} parent=0 // loop_pre_header
    _
  $region3: #{closed_call.14} parent=0 // loop_header
    %s13 = sphi 0, %s17
    %p14 = scmp.ge.s32.totalorder %s13, 4
    %s23 = sphi 0, %s25
    %s26 = sphi 0, %s23
    %s27 = sphi 0, %s26
    %s43 = sphi 0, %s27
    %s47 = sphi 0, %s47
    %s49 = sphi 0, %s47
    %s50 = sphi 0, %s49
    %s64 = sphi 0, %s50
    %s68 = sphi 0, %s68
    %s70 = sphi 0, %s68
    %s71 = sphi 0, %s70
    %s85 = sphi 0, %s71
    %s89 = sphi 0, %s89
    %s91 = sphi 0, %s89
    %s92 = sphi 0, %s91
    %s106 = sphi 0, %s92
    %s110 = sphi 0, %s110
    %s112 = sphi 0, %s110
    %s113 = sphi 0, %s112
    %s127 = sphi 0, %s113
    %s131 = sphi 0, %s131
    %s133 = sphi 0, %s131
    %s134 = sphi 0, %s133
    %s148 = sphi 0, %s134
    %s152 = sphi 0, %s152
    %s154 = sphi 0, %s152
    %s155 = sphi 0, %s154
    %s169 = sphi 0, %s155
    %s175 = sphi 0, %s177
    %s178 = sphi 0, %s175
    %s179 = sphi 0, %s178
    %s195 = sphi 0, %s179
  $region4: #{closed_call.14} parent=0 // loop_header_branch
    %16 = sbr.rel (%p14) target = $region8
  $region5: #{closed_call.14} parent=0 // loop_body
    %s18 = ssub.s32 %s13, 1
    %s19 = ssub.s32 %s13, 2
    %s20 = sadd.s32 %s13, 1
    %s21 = ssub.s32 %s13, %s20
    %p22 = scmp.eq.s32.totalorder %s21, 0
    %s24 = sadd.s32 %s23, 1
    %s25 = scalar_select %p22, %s23, %s24
    %p28 = pneg %p22
    %p29 = scmp.eq.s32.totalorder %s13, 1
    %p30 = por %p28, %p29
    %p31 = scmp.ne.s32.totalorder %s23, %s26
    %p32 = scmp.eq.s32.totalorder %s13, 0
    %p33 = por %p31, %p32
    %p34 = scmp.ne.s32.totalorder %s23, %s26
    %p35 = scmp.eq.s32.totalorder %s18, 1
    %p36 = por %p34, %p35
    %p37 = scmp.ne.s32.totalorder %s26, %s27
    %p38 = scmp.eq.s32.totalorder %s18, 0
    %p39 = por %p37, %p38
    %p40 = scmp.ne.s32.totalorder %s26, %s27
    %p41 = scmp.eq.s32.totalorder %s19, 1
    %p42 = por %p40, %p41
    %p44 = scmp.ne.s32.totalorder %s27, %s43
    %p45 = scmp.eq.s32.totalorder %s19, 0
    %p46 = por %p44, %p45
    %s48 = sadd.s32 %s47, 1
    %p51 = scmp.eq.s32.totalorder %s13, 1
    %p52 = scmp.ne.s32.totalorder %s47, %s49
    %p53 = scmp.eq.s32.totalorder %s13, 0
    %p54 = por %p52, %p53
    %p55 = scmp.ne.s32.totalorder %s47, %s49
    %p56 = scmp.eq.s32.totalorder %s18, 1
    %p57 = por %p55, %p56
    %p58 = scmp.ne.s32.totalorder %s49, %s50
    %p59 = scmp.eq.s32.totalorder %s18, 0
    %p60 = por %p58, %p59
    %p61 = scmp.ne.s32.totalorder %s49, %s50
    %p62 = scmp.eq.s32.totalorder %s19, 1
    %p63 = por %p61, %p62
    %p65 = scmp.ne.s32.totalorder %s50, %s64
    %p66 = scmp.eq.s32.totalorder %s19, 0
    %p67 = por %p65, %p66
    %s69 = sadd.s32 %s68, 1
    %p72 = scmp.eq.s32.totalorder %s13, 1
    %p73 = scmp.ne.s32.totalorder %s68, %s70
    %p74 = scmp.eq.s32.totalorder %s13, 0
    %p75 = por %p73, %p74
    %p76 = scmp.ne.s32.totalorder %s68, %s70
    %p77 = scmp.eq.s32.totalorder %s18, 1
    %p78 = por %p76, %p77
    %p79 = scmp.ne.s32.totalorder %s70, %s71
    %p80 = scmp.eq.s32.totalorder %s18, 0
    %p81 = por %p79, %p80
    %p82 = scmp.ne.s32.totalorder %s70, %s71
    %p83 = scmp.eq.s32.totalorder %s19, 1
    %p84 = por %p82, %p83
    %p86 = scmp.ne.s32.totalorder %s71, %s85
    %p87 = scmp.eq.s32.totalorder %s19, 0
    %p88 = por %p86, %p87
    %s90 = sadd.s32 %s89, 1
    %p93 = scmp.eq.s32.totalorder %s13, 1
    %p94 = scmp.ne.s32.totalorder %s89, %s91
    %p95 = scmp.eq.s32.totalorder %s13, 0
    %p96 = por %p94, %p95
    %p97 = scmp.ne.s32.totalorder %s89, %s91
    %p98 = scmp.eq.s32.totalorder %s18, 1
    %p99 = por %p97, %p98
    %p100 = scmp.ne.s32.totalorder %s91, %s92
    %p101 = scmp.eq.s32.totalorder %s18, 0
    %p102 = por %p100, %p101
    %p103 = scmp.ne.s32.totalorder %s91, %s92
    %p104 = scmp.eq.s32.totalorder %s19, 1
    %p105 = por %p103, %p104
    %p107 = scmp.ne.s32.totalorder %s92, %s106
    %p108 = scmp.eq.s32.totalorder %s19, 0
    %p109 = por %p107, %p108
    %s111 = sadd.s32 %s110, 1
    %p114 = scmp.eq.s32.totalorder %s13, 1
    %p115 = scmp.ne.s32.totalorder %s110, %s112
    %p116 = scmp.eq.s32.totalorder %s13, 0
    %p117 = por %p115, %p116
    %p118 = scmp.ne.s32.totalorder %s110, %s112
    %p119 = scmp.eq.s32.totalorder %s18, 1
    %p120 = por %p118, %p119
    %p121 = scmp.ne.s32.totalorder %s112, %s113
    %p122 = scmp.eq.s32.totalorder %s18, 0
    %p123 = por %p121, %p122
    %p124 = scmp.ne.s32.totalorder %s112, %s113
    %p125 = scmp.eq.s32.totalorder %s19, 1
    %p126 = por %p124, %p125
    %p128 = scmp.ne.s32.totalorder %s113, %s127
    %p129 = scmp.eq.s32.totalorder %s19, 0
    %p130 = por %p128, %p129
    %s132 = sadd.s32 %s131, 1
    %p135 = scmp.eq.s32.totalorder %s13, 1
    %p136 = scmp.ne.s32.totalorder %s131, %s133
    %p137 = scmp.eq.s32.totalorder %s13, 0
    %p138 = por %p136, %p137
    %p139 = scmp.ne.s32.totalorder %s131, %s133
    %p140 = scmp.eq.s32.totalorder %s18, 1
    %p141 = por %p139, %p140
    %p142 = scmp.ne.s32.totalorder %s133, %s134
    %p143 = scmp.eq.s32.totalorder %s18, 0
    %p144 = por %p142, %p143
    %p145 = scmp.ne.s32.totalorder %s133, %s134
    %p146 = scmp.eq.s32.totalorder %s19, 1
    %p147 = por %p145, %p146
    %p149 = scmp.ne.s32.totalorder %s134, %s148
    %p150 = scmp.eq.s32.totalorder %s19, 0
    %p151 = por %p149, %p150
    %s153 = sadd.s32 %s152, 1
    %p156 = scmp.eq.s32.totalorder %s13, 1
    %p157 = scmp.ne.s32.totalorder %s152, %s154
    %p158 = scmp.eq.s32.totalorder %s13, 0
    %p159 = por %p157, %p158
    %p160 = scmp.ne.s32.totalorder %s152, %s154
    %p161 = scmp.eq.s32.totalorder %s18, 1
    %p162 = por %p160, %p161
    %p163 = scmp.ne.s32.totalorder %s154, %s155
    %p164 = scmp.eq.s32.totalorder %s18, 0
    %p165 = por %p163, %p164
    %p166 = scmp.ne.s32.totalorder %s154, %s155
    %p167 = scmp.eq.s32.totalorder %s19, 1
    %p168 = por %p166, %p167
    %p170 = scmp.ne.s32.totalorder %s155, %s169
    %p171 = scmp.eq.s32.totalorder %s19, 0
    %p172 = por %p170, %p171
    %s173 = ssub.s32 %s13, %s20
    %p174 = scmp.eq.s32.totalorder %s173, 0
    %s176 = sadd.s32 %s175, 1
    %s177 = scalar_select %p174, %s175, %s176
    %p180 = pneg %p174
    %p181 = scmp.eq.s32.totalorder %s13, 1
    %p182 = por %p180, %p181
    %p183 = scmp.ne.s32.totalorder %s175, %s178
    %p184 = scmp.eq.s32.totalorder %s13, 0
    %p185 = por %p183, %p184
    %p186 = scmp.ne.s32.totalorder %s175, %s178
    %p187 = scmp.eq.s32.totalorder %s18, 1
    %p188 = por %p186, %p187
    %p189 = scmp.ne.s32.totalorder %s178, %s179
    %p190 = scmp.eq.s32.totalorder %s18, 0
    %p191 = por %p189, %p190
    %p192 = scmp.ne.s32.totalorder %s178, %s179
    %p193 = scmp.eq.s32.totalorder %s19, 1
    %p194 = por %p192, %p193
    %p196 = scmp.ne.s32.totalorder %s179, %s195
    %p197 = scmp.eq.s32.totalorder %s19, 0
    %p198 = por %p196, %p197
    %p199 = scmp.le.s32.totalorder 1, %s13
    %p200 = scmp.lt.s32.totalorder %s13, 3
    %p201 = pnand %p199, %p200
    %p202 = pneg %p201
    // Predicated region
    $region9: #{closed_call.14} parent=5 // pred_check
      _
    $region10: #{closed_call.14} parent=5 // pred_check_branch
      %204 = sbr.rel (%p201) target = $region12
    $region11: #{closed_call.14} parent=5 // pred_region
      %s205 = ssub.s32 %s13, 1
      // Predicated region
      $region13: #{closed_call.14} parent=11 // pred_check
        %p206 = pneg %p60
      $region14: #{closed_call.14} parent=11 // pred_check_branch
        %208 = sbr.rel (%p206) target = $region16
      $region15: #{closed_call.14} parent=11 // pred_region
        _
      $region16: #{closed_call.14} parent=11 // pred_fallthru
        _
      // Predicated region
      $region17: #{closed_call.14} parent=11 // pred_check
        %p209 = pneg %p81
      $region18: #{closed_call.14} parent=11 // pred_check_branch
        %211 = sbr.rel (%p209) target = $region20
      $region19: #{closed_call.14} parent=11 // pred_region
        _
      $region20: #{closed_call.14} parent=11 // pred_fallthru
        _
      // Predicated region
      $region21: #{closed_call.14} parent=11 // pred_check
        %p212 = pneg %p102
      $region22: #{closed_call.14} parent=11 // pred_check_branch
        %214 = sbr.rel (%p212) target = $region24
      $region23: #{closed_call.14} parent=11 // pred_region
        _
      $region24: #{closed_call.14} parent=11 // pred_fallthru
        _
      // Predicated region
      $region25: #{closed_call.14} parent=11 // pred_check
        %p215 = pneg %p123
      $region26: #{closed_call.14} parent=11 // pred_check_branch
        %217 = sbr.rel (%p215) target = $region28
      $region27: #{closed_call.14} parent=11 // pred_region
        _
      $region28: #{closed_call.14} parent=11 // pred_fallthru
        _
      // Predicated region
      $region29: #{closed_call.14} parent=11 // pred_check
        %p218 = pneg %p144
      $region30: #{closed_call.14} parent=11 // pred_check_branch
        %220 = sbr.rel (%p218) target = $region32
      $region31: #{closed_call.14} parent=11 // pred_region
        _
      $region32: #{closed_call.14} parent=11 // pred_fallthru
        _
      // Predicated region
      $region33: #{closed_call.14} parent=11 // pred_check
        %p221 = pneg %p165
      $region34: #{closed_call.14} parent=11 // pred_check_branch
        %223 = sbr.rel (%p221) target = $region36
      $region35: #{closed_call.14} parent=11 // pred_region
        _
      $region36: #{closed_call.14} parent=11 // pred_fallthru
        _
    $region12: #{closed_call.14} parent=5 // pred_fallthru
      _
    %p224 = scmp.lt.s32.totalorder %s13, 2
    // Predicated region
    $region37: #{closed_call.14} parent=5 // pred_check
      %p225 = pneg %p224
    $region38: #{closed_call.14} parent=5 // pred_check_branch
      %227 = sbr.rel (%p225) target = $region40
    $region39: #{closed_call.14} parent=5 // pred_region
      // Predicated region
      $region41: #{closed_call.14} parent=39 // pred_check
        %p228 = pneg %p33
      $region42: #{closed_call.14} parent=39 // pred_check_branch
        %230 = sbr.rel (%p228) target = $region44
      $region43: #{closed_call.14} parent=39 // pred_region
        %p231 = scmp.lt.s32.totalorder %s13, 1
        %s232 = scalar_select %p231, %s13, 1
        %s233 = smul.addr %s232, 2
        %s234 = smul.addr %s233, 8
        %s235 = scalar_lea.vmem %s0, %s234
      $region44: #{closed_call.14} parent=39 // pred_fallthru
        _
    $region40: #{closed_call.14} parent=5 // pred_fallthru
      _
    %p236 = scmp.le.s32.totalorder 1, %s13
    %p237 = scmp.lt.s32.totalorder %s13, 3
    %p238 = pnand %p236, %p237
    %p239 = pneg %p238
    // Predicated region
    $region45: #{closed_call.14} parent=5 // pred_check
      _
    $region46: #{closed_call.14} parent=5 // pred_check_branch
      %241 = sbr.rel (%p238) target = $region48
    $region47: #{closed_call.14} parent=5 // pred_region
      %s242 = ssub.s32 %s13, 1
      %p243 = scmp.lt.s32.totalorder %s18, 1
      %s244 = scalar_select %p243, %s18, 1
      %s245 = smul.addr %s244, 2
      %s246 = smul.addr %s245, 8
      %s247 = scalar_lea.vmem %s0, %s246
      %p248 = pneg %p39
      %p249 = pneg %p36
      %p250 = pneg %p60
      %p251 = pneg %p57
      %p252 = pneg %p81
      %p253 = pneg %p78
      %p254 = pneg %p102
      %p255 = pneg %p99
      %p256 = pneg %p123
      %p257 = pneg %p120
      %p258 = pneg %p144
      %p259 = pneg %p141
      %p260 = pneg %p165
      %p261 = pneg %p162
      %p262 = pneg %p191
      %p263 = pneg %p188
      %p264 = scmp.lt.s32.totalorder %s18, 1
      %s265 = scalar_select %p264, %s18, 1
      %s266 = smul.addr %s265, 2
      %s267 = smul.addr %s266, 8
      %s268 = scalar_lea.vmem %s7, %s267
      %p269 = scmp.lt.s32.totalorder %s18, 1
      %s270 = scalar_select %p269, %s18, 1
      %s271 = smul.addr %s270, 2
      %s272 = smul.addr %s271, 8
      %s273 = scalar_lea.vmem %s0, %s272
      %p274 = scmp.lt.s32.totalorder %s18, 1
      %s275 = scalar_select %p274, %s18, 1
      %s276 = smul.addr %s275, 2
      %s277 = smul.addr %s276, 8
      %s278 = scalar_lea.vmem %s7, %s277
      %v280 = vld [vmem:[%s273] sm:$0xff]
      %v281 = vld [vmem:[%s273 + $0x8] sm:$0xff]
      %v282 = vld [vmem:[%s1] sm:$0x1]
      %v283 = vld [vmem:[%s2] sm:$0x1]
      %284 = vadd.xlane.f32.xlu0 %v280
      %v285 = vpop.xlane.xlu0 %284
      %286 = vadd.xlane.f32.xlu0 %v281
      %v287 = vpop.xlane.xlu0 %286
      %v288 = vrcp.pop 128.0
      %v289 = vmul.f32 %v285, %v288
      %v290 = vmul.f32 %v287, %v288
      %v291 = vsub.f32 %v280, %v289
      %v292 = vsub.f32 %v281, %v290
      %v293 = vmul.f32 %v291, %v291
      %v294 = vmul.f32 %v292, %v292
      %295 = vadd.xlane.f32.xlu0 %v293
      %v296 = vpop.xlane.xlu0 %295
      %297 = vadd.xlane.f32.xlu0 %v294
      %v298 = vpop.xlane.xlu0 %297
      %v299 = vmul.f32 %v296, %v288
      %v300 = vmul.f32 %v298, %v288
      %v301 = vadd.f32 %v299, 1e-05
      %v302 = vadd.f32 %v300, 1e-05
      %v303 = vrsqrt.pop %v301
      %v304 = vrsqrt.pop %v302
      %v305 = vmul.f32 %v291, %v303
      %v306 = vmul.f32 %v292, %v304
      %v308 = vlaneseq
      %v309 = vshrl.u32 %v308, 7
      %v310 = vsub.s32 0, %v309
      %v311 = vrot.slane %v282, %v310
      %v313 = vmul.f32 %v305, %v311
      %v314 = vmul.f32 %v306, %v311
      %v316 = vlaneseq
      %v317 = vshrl.u32 %v316, 7
      %v318 = vsub.s32 0, %v317
      %v319 = vrot.slane %v283, %v318
      %v321 = vadd.f32 %v313, %v319
      %v322 = vadd.f32 %v314, %v319
      %v323 = vld [vmem:[%s3] sm:$0xff]
      %v324 = vld [vmem:[%s3 + $0x8] sm:$0xf]
      %v325 = vld [vmem:[%s3 + $0xc] sm:$0xff]
      %v326 = vld [vmem:[%s3 + $0x14] sm:$0xf]
      %v327 = vld [vmem:[%s3 + $0x18] sm:$0xff]
      %v328 = vld [vmem:[%s3 + $0x20] sm:$0xf]
      %v329 = vld [vmem:[%s3 + $0x24] sm:$0xff]
      %v330 = vld [vmem:[%s3 + $0x2c] sm:$0xf]
      %v331 = vld [vmem:[%s3 + $0x30] sm:$0xff]
      %v332 = vld [vmem:[%s3 + $0x38] sm:$0xf]
      %v333 = vld [vmem:[%s3 + $0x3c] sm:$0xff]
      %v334 = vld [vmem:[%s3 + $0x44] sm:$0xf]
      %v335 = vld [vmem:[%s3 + $0x48] sm:$0xff]
      %v336 = vld [vmem:[%s3 + $0x50] sm:$0xf]
      %v337 = vld [vmem:[%s3 + $0x54] sm:$0xff]
      %v338 = vld [vmem:[%s3 + $0x5c] sm:$0xf]
      %v339 = vld [vmem:[%s3 + $0x60] sm:$0xff]
      %v340 = vld [vmem:[%s3 + $0x68] sm:$0xf]
      %v341 = vld [vmem:[%s3 + $0x6c] sm:$0xff]
      %v342 = vld [vmem:[%s3 + $0x74] sm:$0xf]
      %v343 = vld [vmem:[%s3 + $0x78] sm:$0xff]
      %v344 = vld [vmem:[%s3 + $0x80] sm:$0xf]
      %v345 = vld [vmem:[%s3 + $0x84] sm:$0xff]
      %v346 = vld [vmem:[%s3 + $0x8c] sm:$0xf]
      %v347 = vld [vmem:[%s3 + $0x90] sm:$0xff]
      %v348 = vld [vmem:[%s3 + $0x98] sm:$0xf]
      %v349 = vld [vmem:[%s3 + $0x9c] sm:$0xff]
      %v350 = vld [vmem:[%s3 + $0xa4] sm:$0xf]
      %v351 = vld [vmem:[%s3 + $0xa8] sm:$0xff]
      %v352 = vld [vmem:[%s3 + $0xb0] sm:$0xf]
      %v353 = vld [vmem:[%s3 + $0xb4] sm:$0xff]
      %v354 = vld [vmem:[%s3 + $0xbc] sm:$0xf]
      %v355 = vpack.c.bf16 %v322, %v321
      %v356 = vld [vmem:[%s4] sm:$0x7]
      %v358 = vlaneseq
      %v359 = vshrl.u32 %v358, 7
      %v360 = vsub.s32 0, %v359
      %v361 = vrot.slane %v356, %v360
      %v362 = vlaneseq
      %v363 = vshrl.u32 %v362, 7
      %v364 = vsub.s32 1, %v363
      %v365 = vrot.slane %v356, %v364
      %v366 = vlaneseq
      %v367 = vshrl.u32 %v366, 7
      %v368 = vsub.s32 2, %v367
      %v369 = vrot.slane %v356, %v368
      %v405 = vunpack.c.l.b16 %v323
      %v406 = vunpack.c.h.b16 %v323
      %v407 = vunpack.c.l.b16 %v324
      %v408 = vunpack.c.l.b16 %v325
      %v409 = vunpack.c.h.b16 %v325
      %v410 = vunpack.c.l.b16 %v326
      %v411 = vunpack.c.l.b16 %v327
      %v412 = vunpack.c.h.b16 %v327
      %v413 = vunpack.c.l.b16 %v328
      %v414 = vunpack.c.l.b16 %v329
      %v415 = vunpack.c.h.b16 %v329
      %v416 = vunpack.c.l.b16 %v330
      %v417 = vunpack.c.l.b16 %v331
      %v418 = vunpack.c.h.b16 %v331
      %v419 = vunpack.c.l.b16 %v332
      %v420 = vunpack.c.l.b16 %v333
      %v421 = vunpack.c.h.b16 %v333
      %v422 = vunpack.c.l.b16 %v334
      %v423 = vunpack.c.l.b16 %v335
      %v424 = vunpack.c.h.b16 %v335
      %v425 = vunpack.c.l.b16 %v336
      %v426 = vunpack.c.l.b16 %v337
      %v427 = vunpack.c.h.b16 %v337
      %v428 = vunpack.c.l.b16 %v338
      %v429 = vunpack.c.l.b16 %v339
      %v430 = vunpack.c.h.b16 %v339
      %v431 = vunpack.c.l.b16 %v340
      %v432 = vunpack.c.l.b16 %v341
      %v433 = vunpack.c.h.b16 %v341
      %v434 = vunpack.c.l.b16 %v342
      %v435 = vunpack.c.l.b16 %v343
      %v436 = vunpack.c.h.b16 %v343
      %v437 = vunpack.c.l.b16 %v344
      %v438 = vunpack.c.l.b16 %v345
      %v439 = vunpack.c.h.b16 %v345
      %v440 = vunpack.c.l.b16 %v346
      %v441 = vunpack.c.l.b16 %v347
      %v442 = vunpack.c.h.b16 %v347
      %v443 = vunpack.c.l.b16 %v348
      %v444 = vunpack.c.l.b16 %v349
      %v445 = vunpack.c.h.b16 %v349
      %v446 = vunpack.c.l.b16 %v350
      %v447 = vunpack.c.l.b16 %v351
      %v448 = vunpack.c.h.b16 %v351
      %v449 = vunpack.c.l.b16 %v352
      %v450 = vunpack.c.l.b16 %v353
      %v451 = vunpack.c.h.b16 %v353
      %v452 = vunpack.c.l.b16 %v354
      %v453 = vpack.c.b16 %v408, %v405
      %v454 = vpack.c.b16 %v409, %v406
      %v455 = vpack.c.b16 %v410, %v407
      %v456 = vpack.c.b16 %v414, %v411
      %v457 = vpack.c.b16 %v415, %v412
      %v458 = vpack.c.b16 %v416, %v413
      %v459 = vpack.c.b16 %v420, %v417
      %v460 = vpack.c.b16 %v421, %v418
      %v461 = vpack.c.b16 %v422, %v419
      %v462 = vpack.c.b16 %v426, %v423
      %v463 = vpack.c.b16 %v427, %v424
      %v464 = vpack.c.b16 %v428, %v425
      %v465 = vpack.c.b16 %v432, %v429
      %v466 = vpack.c.b16 %v433, %v430
      %v467 = vpack.c.b16 %v434, %v431
      %v468 = vpack.c.b16 %v438, %v435
      %v469 = vpack.c.b16 %v439, %v436
      %v470 = vpack.c.b16 %v440, %v437
      %v471 = vpack.c.b16 %v444, %v441
      %v472 = vpack.c.b16 %v445, %v442
      %v473 = vpack.c.b16 %v446, %v443
      %v474 = vpack.c.b16 %v450, %v447
      %v475 = vpack.c.b16 %v451, %v448
      %v476 = vpack.c.b16 %v452, %v449
      %501 = vmatprep.subr.bf16.mxu0 %v475
      %502 = vmatpush1.bf16.msra.mxu0 %v474
      %503 = vmatprep.subr.bf16.mxu0 %v472
      %504 = vmatpush1.bf16.msra.mxu0 %v471
      %505 = vmatprep.subr.bf16.mxu0 %v469
      %506 = vmatpush1.bf16.msra.mxu0 %v468
      %507 = vmatprep.subr.bf16.mxu0 %v466
      %508 = vmatpush1.bf16.msra.mxu0 %v465
      %509 = vmatprep.subr.bf16.mxu0 %v463
      %510 = vmatpush1.bf16.msra.mxu0 %v462
      %511 = vmatprep.subr.bf16.mxu0 %v460
      %512 = vmatpush1.bf16.msra.mxu0 %v459
      %513 = vmatprep.subr.bf16.mxu0 %v457
      %514 = vmatpush1.bf16.msra.mxu0 %v456
      %515 = vmatprep.subr.bf16.mxu0 %v454
      %516 = vmatpush1.bf16.msra.mxu0 %v453
      %517 = vmatprep.subr.bf16.mxu0 0
      %518 = vmatpush2.bf16.msra.mxu0 0
      %519 = vmatprep.subr.bf16.mxu0 0
      %520 = vmatpush2.bf16.msra.mxu0 0
      %521 = vmatprep.subr.bf16.mxu0 0
      %522 = vmatpush2.bf16.msra.mxu0 0
      %523 = vmatprep.subr.bf16.mxu0 0
      %524 = vmatpush2.bf16.msra.mxu0 0
      %525 = vmatprep.subr.bf16.mxu0 0
      %526 = vmatpush2.bf16.msra.mxu0 0
      %527 = vmatprep.subr.bf16.mxu0 0
      %528 = vmatpush2.bf16.msra.mxu0 0
      %529 = vmatprep.subr.bf16.mxu0 0
      %530 = vmatpush2.bf16.msra.mxu0 0
      %531 = vmatprep.subr.bf16.mxu0 0
      %532 = vmatpush2.bf16.msra.mxu0 0
      %533 = vmatprep.mubr.bf16.mxu0 0
      %534 = vmatmul.mubr.bf16.gmra.mxu0 %v355
      %v535 = vpop.f32.mrf.mxu0
      %v536 = vadd.f32 %v361, %v535
      %v537 = vpop.f32.mrf.mxu0
      %v538 = vadd.f32 %v365, %v537
      %v539 = vpop.f32.mrf.mxu0
      %v540 = vadd.f32 %v361, %v539
      %v541 = vpop.f32.mrf.mxu0
      %v542 = vadd.f32 %v365, %v541
      %543 = vdwg.mxu0
      %544 = vmatprep.subr.bf16.mxu0 0
      %545 = vmatpush1.bf16.msra.mxu0 %v476
      %546 = vmatprep.subr.bf16.mxu0 0
      %547 = vmatpush1.bf16.msra.mxu0 %v473
      %548 = vmatprep.subr.bf16.mxu0 0
      %549 = vmatpush1.bf16.msra.mxu0 %v470
      %550 = vmatprep.subr.bf16.mxu0 0
      %551 = vmatpush1.bf16.msra.mxu0 %v467
      %552 = vmatprep.subr.bf16.mxu0 0
      %553 = vmatpush1.bf16.msra.mxu0 %v464
      %554 = vmatprep.subr.bf16.mxu0 0
      %555 = vmatpush1.bf16.msra.mxu0 %v461
      %556 = vmatprep.subr.bf16.mxu0 0
      %557 = vmatpush1.bf16.msra.mxu0 %v458
      %558 = vmatprep.subr.bf16.mxu0 0
      %559 = vmatpush1.bf16.msra.mxu0 %v455
      %560 = vmatprep.subr.bf16.mxu0 0
      %561 = vmatpush2.bf16.msra.mxu0 0
      %562 = vmatprep.subr.bf16.mxu0 0
      %563 = vmatpush2.bf16.msra.mxu0 0
      %564 = vmatprep.subr.bf16.mxu0 0
      %565 = vmatpush2.bf16.msra.mxu0 0
      %566 = vmatprep.subr.bf16.mxu0 0
      %567 = vmatpush2.bf16.msra.mxu0 0
      %568 = vmatprep.subr.bf16.mxu0 0
      %569 = vmatpush2.bf16.msra.mxu0 0
      %570 = vmatprep.subr.bf16.mxu0 0
      %571 = vmatpush2.bf16.msra.mxu0 0
      %572 = vmatprep.subr.bf16.mxu0 0
      %573 = vmatpush2.bf16.msra.mxu0 0
      %574 = vmatprep.subr.bf16.mxu0 0
      %575 = vmatpush2.bf16.msra.mxu0 0
      %576 = vmatprep.mubr.bf16.mxu0 0
      %577 = vmatmul.mubr.bf16.gmra.mxu0 %v355
      %v578 = vpop.f32.mrf.mxu0
      %v579 = vadd.f32 %v369, %v578
      %v580 = vpop.f32.mrf.mxu0
      %v581 = vpop.f32.mrf.mxu0
      %v582 = vadd.f32 %v369, %v581
      %v583 = vpop.f32.mrf.mxu0
      %584 = vdwg.mxu0
      %v585 = vpack.c.bf16 %v540, %v536
      %v586 = vpack.c.bf16 %v542, %v538
      %v587 = vpack.c.bf16 %v582, %v579
      %vm588 = vcmask 261120
      %v590 = vsel %vm588, %v585, 0
      %v593 = vsel %vm588, %v586, 0
      %595 = vmatprep.subr.bf16.mxu0 0
      %596 = vmatpush1.bf16.xpose.msra.mxu0 0
      %597 = vmatprep.subr.bf16.mxu0 0
      %598 = vmatpush1.bf16.xpose.msra.mxu0 0
      %599 = vmatprep.subr.bf16.mxu0 0
      %600 = vmatpush1.bf16.xpose.msra.mxu0 0
      %601 = vmatprep.subr.bf16.mxu0 0
      %602 = vmatpush1.bf16.xpose.msra.mxu0 0
      %603 = vmatprep.subr.bf16.mxu0 0
      %604 = vmatpush1.bf16.xpose.msra.mxu0 0
      %605 = vmatprep.subr.bf16.mxu0 0
      %606 = vmatpush1.bf16.xpose.msra.mxu0 0
      %607 = vmatprep.subr.bf16.mxu0 0
      %608 = vmatpush1.bf16.xpose.msra.mxu0 0
      %609 = vmatprep.subr.bf16.mxu0 0
      %610 = vmatpush1.bf16.xpose.msra.mxu0 %v593
      %611 = vmatprep.subr.bf16.mxu0 0
      %612 = vmatpush2.bf16.xpose.msra.mxu0 0
      %613 = vmatprep.subr.bf16.mxu0 0
      %614 = vmatpush2.bf16.xpose.msra.mxu0 0
      %615 = vmatprep.subr.bf16.mxu0 0
      %616 = vmatpush2.bf16.xpose.msra.mxu0 0
      %617 = vmatprep.subr.bf16.mxu0 0
      %618 = vmatpush2.bf16.xpose.msra.mxu0 0
      %619 = vmatprep.subr.bf16.mxu0 0
      %620 = vmatpush2.bf16.xpose.msra.mxu0 0
      %621 = vmatprep.subr.bf16.mxu0 0
      %622 = vmatpush2.bf16.xpose.msra.mxu0 0
      %623 = vmatprep.subr.bf16.mxu0 0
      %624 = vmatpush2.bf16.xpose.msra.mxu0 0
      %625 = vmatprep.subr.bf16.mxu0 0
      %626 = vmatpush2.bf16.xpose.msra.mxu0 0
      %627 = vmatprep.mubr.bf16.mxu0 0
      %628 = vmatmul.mubr.bf16.gmra.mxu0 %v590
      %v629 = vpop.f32.mrf.mxu0
      %v630 = vadd.f32 0.0, %v629
      %v631 = vpop.f32.mrf.mxu0
      %v632 = vpop.f32.mrf.mxu0
      %v633 = vadd.f32 0.0, %v632
      %v634 = vpop.f32.mrf.mxu0
      %635 = vdwg.mxu0
      %vm636 = vcmask 130048
      %v637 = vsel %vm636, %v630, -inf
      %638 = vmax.xlane.f32.xlu0 %v637
      %v639 = vpop.xlane.xlu0 %638
      %v640 = vsel %vm636, %v633, -inf
      %641 = vmax.xlane.f32.xlu0 %v640
      %v642 = vpop.xlane.xlu0 %641
      %v643 = vsub.f32 %v630, %v639
      %v644 = vsub.f32 %v633, %v642
      %v645 = vmul.f32 %v643, 1.442695
      %v646 = vpow.pop %v645
      %v647 = vmul.f32 %v644, 1.442695
      %v648 = vpow.pop %v647
      %v649 = vsel %vm636, %v646, 0.0
      %650 = vadd.xlane.f32.xlu0 %v649
      %v651 = vpop.xlane.xlu0 %650
      %v652 = vsel %vm636, %v648, 0.0
      %653 = vadd.xlane.f32.xlu0 %v652
      %v654 = vpop.xlane.xlu0 %653
      %v655 = vrcp.pop %v651
      %v656 = vrcp.pop %v654
      %v657 = vmul.f32 %v646, %v655
      %v658 = vmul.f32 %v648, %v656
      %v659 = vpack.c.bf16 %v658, %v657
      %v661 = vsel %vm636, %v659, 0
      %663 = vmatprep.subr.bf16.mxu0 0
      %664 = vmatpush1.bf16.msra.mxu0 0
      %665 = vmatprep.subr.bf16.mxu0 0
      %666 = vmatpush1.bf16.msra.mxu0 0
      %667 = vmatprep.subr.bf16.mxu0 0
      %668 = vmatpush1.bf16.msra.mxu0 0
      %669 = vmatprep.subr.bf16.mxu0 0
      %670 = vmatpush1.bf16.msra.mxu0 0
      %671 = vmatprep.subr.bf16.mxu0 0
      %672 = vmatpush1.bf16.msra.mxu0 0
      %673 = vmatprep.subr.bf16.mxu0 0
      %674 = vmatpush1.bf16.msra.mxu0 0
      %675 = vmatprep.subr.bf16.mxu0 0
      %676 = vmatpush1.bf16.msra.mxu0 0
      %677 = vmatprep.subr.bf16.mxu0 0
      %678 = vmatpush1.bf16.msra.mxu0 %v587
      %679 = vmatprep.subr.bf16.mxu0 0
      %680 = vmatpush2.bf16.msra.mxu0 0
      %681 = vmatprep.subr.bf16.mxu0 0
      %682 = vmatpush2.bf16.msra.mxu0 0
      %683 = vmatprep.subr.bf16.mxu0 0
      %684 = vmatpush2.bf16.msra.mxu0 0
      %685 = vmatprep.subr.bf16.mxu0 0
      %686 = vmatpush2.bf16.msra.mxu0 0
      %687 = vmatprep.subr.bf16.mxu0 0
      %688 = vmatpush2.bf16.msra.mxu0 0
      %689 = vmatprep.subr.bf16.mxu0 0
      %690 = vmatpush2.bf16.msra.mxu0 0
      %691 = vmatprep.subr.bf16.mxu0 0
      %692 = vmatpush2.bf16.msra.mxu0 0
      %693 = vmatprep.subr.bf16.mxu0 0
      %694 = vmatpush2.bf16.msra.mxu0 0
      %695 = vmatprep.mubr.bf16.mxu0 0
      %696 = vmatmul.mubr.bf16.gmra.mxu0 %v661
      %v697 = vpop.f32.mrf.mxu0
      %v698 = vadd.f32 0.0, %v697
      %v699 = vpop.f32.mrf.mxu0
      %v700 = vpop.f32.mrf.mxu0
      %v701 = vadd.f32 0.0, %v700
      %v702 = vpop.f32.mrf.mxu0
      %703 = vdwg.mxu0
      %705 = vrot.lane.b32.xlu0 %v585, 96
      %v706 = vpop.permute.xlu0 %705
      %708 = vrot.lane.b32.xlu0 %v586, 96
      %v709 = vpop.permute.xlu0 %708
      %v711 = vsel %vm588, %v706, 0
      %v714 = vsel %vm588, %v709, 0
      %716 = vmatprep.subr.bf16.mxu0 0
      %717 = vmatpush1.bf16.xpose.msra.mxu0 0
      %718 = vmatprep.subr.bf16.mxu0 0
      %719 = vmatpush1.bf16.xpose.msra.mxu0 0
      %720 = vmatprep.subr.bf16.mxu0 0
      %721 = vmatpush1.bf16.xpose.msra.mxu0 0
      %722 = vmatprep.subr.bf16.mxu0 0
      %723 = vmatpush1.bf16.xpose.msra.mxu0 0
      %724 = vmatprep.subr.bf16.mxu0 0
      %725 = vmatpush1.bf16.xpose.msra.mxu0 0
      %726 = vmatprep.subr.bf16.mxu0 0
      %727 = vmatpush1.bf16.xpose.msra.mxu0 0
      %728 = vmatprep.subr.bf16.mxu0 0
      %729 = vmatpush1.bf16.xpose.msra.mxu0 0
      %730 = vmatprep.subr.bf16.mxu0 0
      %731 = vmatpush1.bf16.xpose.msra.mxu0 %v714
      %732 = vmatprep.subr.bf16.mxu0 0
      %733 = vmatpush2.bf16.xpose.msra.mxu0 0
      %734 = vmatprep.subr.bf16.mxu0 0
      %735 = vmatpush2.bf16.xpose.msra.mxu0 0
      %736 = vmatprep.subr.bf16.mxu0 0
      %737 = vmatpush2.bf16.xpose.msra.mxu0 0
      %738 = vmatprep.subr.bf16.mxu0 0
      %739 = vmatpush2.bf16.xpose.msra.mxu0 0
      %740 = vmatprep.subr.bf16.mxu0 0
      %741 = vmatpush2.bf16.xpose.msra.mxu0 0
      %742 = vmatprep.subr.bf16.mxu0 0
      %743 = vmatpush2.bf16.xpose.msra.mxu0 0
      %744 = vmatprep.subr.bf16.mxu0 0
      %745 = vmatpush2.bf16.xpose.msra.mxu0 0
      %746 = vmatprep.subr.bf16.mxu0 0
      %747 = vmatpush2.bf16.xpose.msra.mxu0 0
      %748 = vmatprep.mubr.bf16.mxu0 0
      %749 = vmatmul.mubr.bf16.gmra.mxu0 %v711
      %v750 = vpop.f32.mrf.mxu0
      %v751 = vadd.f32 0.0, %v750
      %v752 = vpop.f32.mrf.mxu0
      %v753 = vpop.f32.mrf.mxu0
      %v754 = vadd.f32 0.0, %v753
      %v755 = vpop.f32.mrf.mxu0
      %756 = vdwg.mxu0
      %v757 = vsel %vm636, %v751, -inf
      %758 = vmax.xlane.f32.xlu0 %v757
      %v759 = vpop.xlane.xlu0 %758
      %v760 = vsel %vm636, %v754, -inf
      %761 = vmax.xlane.f32.xlu0 %v760
      %v762 = vpop.xlane.xlu0 %761
      %v763 = vsub.f32 %v751, %v759
      %v764 = vsub.f32 %v754, %v762
      %v765 = vmul.f32 %v763, 1.442695
      %v766 = vpow.pop %v765
      %v767 = vmul.f32 %v764, 1.442695
      %v768 = vpow.pop %v767
      %v769 = vsel %vm636, %v766, 0.0
      %770 = vadd.xlane.f32.xlu0 %v769
      %v771 = vpop.xlane.xlu0 %770
      %v772 = vsel %vm636, %v768, 0.0
      %773 = vadd.xlane.f32.xlu0 %v772
      %v774 = vpop.xlane.xlu0 %773
      %v775 = vrcp.pop %v771
      %v776 = vrcp.pop %v774
      %v777 = vmul.f32 %v766, %v775
      %v778 = vmul.f32 %v768, %v776
      %v779 = vpack.c.bf16 %v778, %v777
      %781 = vrot.lane.b32.xlu0 %v587, 96
      %v782 = vpop.permute.xlu0 %781
      %v785 = vsel %vm636, %v779, 0
      %787 = vmatprep.subr.bf16.mxu0 0
      %788 = vmatpush1.bf16.msra.mxu0 0
      %789 = vmatprep.subr.bf16.mxu0 0
      %790 = vmatpush1.bf16.msra.mxu0 0
      %791 = vmatprep.subr.bf16.mxu0 0
      %792 = vmatpush1.bf16.msra.mxu0 0
      %793 = vmatprep.subr.bf16.mxu0 0
      %794 = vmatpush1.bf16.msra.mxu0 0
      %795 = vmatprep.subr.bf16.mxu0 0
      %796 = vmatpush1.bf16.msra.mxu0 0
      %797 = vmatprep.subr.bf16.mxu0 0
      %798 = vmatpush1.bf16.msra.mxu0 0
      %799 = vmatprep.subr.bf16.mxu0 0
      %800 = vmatpush1.bf16.msra.mxu0 0
      %801 = vmatprep.subr.bf16.mxu0 0
      %802 = vmatpush1.bf16.msra.mxu0 %v782
      %803 = vmatprep.subr.bf16.mxu0 0
      %804 = vmatpush2.bf16.msra.mxu0 0
      %805 = vmatprep.subr.bf16.mxu0 0
      %806 = vmatpush2.bf16.msra.mxu0 0
      %807 = vmatprep.subr.bf16.mxu0 0
      %808 = vmatpush2.bf16.msra.mxu0 0
      %809 = vmatprep.subr.bf16.mxu0 0
      %810 = vmatpush2.bf16.msra.mxu0 0
      %811 = vmatprep.subr.bf16.mxu0 0
      %812 = vmatpush2.bf16.msra.mxu0 0
      %813 = vmatprep.subr.bf16.mxu0 0
      %814 = vmatpush2.bf16.msra.mxu0 0
      %815 = vmatprep.subr.bf16.mxu0 0
      %816 = vmatpush2.bf16.msra.mxu0 0
      %817 = vmatprep.subr.bf16.mxu0 0
      %818 = vmatpush2.bf16.msra.mxu0 0
      %819 = vmatprep.mubr.bf16.mxu0 0
      %820 = vmatmul.mubr.bf16.gmra.mxu0 %v785
      %v821 = vpop.f32.mrf.mxu0
      %v822 = vadd.f32 0.0, %v821
      %v823 = vpop.f32.mrf.mxu0
      %v824 = vpop.f32.mrf.mxu0
      %v825 = vadd.f32 0.0, %v824
      %v826 = vpop.f32.mrf.mxu0
      %827 = vdwg.mxu0
      %828 = vrot.lane.b32.xlu0 %v585, 64
      %v829 = vpop.permute.xlu0 %828
      %830 = vrot.lane.b32.xlu0 %v586, 64
      %v831 = vpop.permute.xlu0 %830
      %v833 = vsel %vm588, %v829, 0
      %v836 = vsel %vm588, %v831, 0
      %838 = vmatprep.subr.bf16.mxu0 0
      %839 = vmatpush1.bf16.xpose.msra.mxu0 0
      %840 = vmatprep.subr.bf16.mxu0 0
      %841 = vmatpush1.bf16.xpose.msra.mxu0 0
      %842 = vmatprep.subr.bf16.mxu0 0
      %843 = vmatpush1.bf16.xpose.msra.mxu0 0
      %844 = vmatprep.subr.bf16.mxu0 0
      %845 = vmatpush1.bf16.xpose.msra.mxu0 0
      %846 = vmatprep.subr.bf16.mxu0 0
      %847 = vmatpush1.bf16.xpose.msra.mxu0 0
      %848 = vmatprep.subr.bf16.mxu0 0
      %849 = vmatpush1.bf16.xpose.msra.mxu0 0
      %850 = vmatprep.subr.bf16.mxu0 0
      %851 = vmatpush1.bf16.xpose.msra.mxu0 0
      %852 = vmatprep.subr.bf16.mxu0 0
      %853 = vmatpush1.bf16.xpose.msra.mxu0 %v836
      %854 = vmatprep.subr.bf16.mxu0 0
      %855 = vmatpush2.bf16.xpose.msra.mxu0 0
      %856 = vmatprep.subr.bf16.mxu0 0
      %857 = vmatpush2.bf16.xpose.msra.mxu0 0
      %858 = vmatprep.subr.bf16.mxu0 0
      %859 = vmatpush2.bf16.xpose.msra.mxu0 0
      %860 = vmatprep.subr.bf16.mxu0 0
      %861 = vmatpush2.bf16.xpose.msra.mxu0 0
      %862 = vmatprep.subr.bf16.mxu0 0
      %863 = vmatpush2.bf16.xpose.msra.mxu0 0
      %864 = vmatprep.subr.bf16.mxu0 0
      %865 = vmatpush2.bf16.xpose.msra.mxu0 0
      %866 = vmatprep.subr.bf16.mxu0 0
      %867 = vmatpush2.bf16.xpose.msra.mxu0 0
      %868 = vmatprep.subr.bf16.mxu0 0
      %869 = vmatpush2.bf16.xpose.msra.mxu0 0
      %870 = vmatprep.mubr.bf16.mxu0 0
      %871 = vmatmul.mubr.bf16.gmra.mxu0 %v833
      %v872 = vpop.f32.mrf.mxu0
      %v873 = vadd.f32 0.0, %v872
      %v874 = vpop.f32.mrf.mxu0
      %v875 = vpop.f32.mrf.mxu0
      %v876 = vadd.f32 0.0, %v875
      %v877 = vpop.f32.mrf.mxu0
      %878 = vdwg.mxu0
      %v879 = vsel %vm636, %v873, -inf
      %880 = vmax.xlane.f32.xlu0 %v879
      %v881 = vpop.xlane.xlu0 %880
      %v882 = vsel %vm636, %v876, -inf
      %883 = vmax.xlane.f32.xlu0 %v882
      %v884 = vpop.xlane.xlu0 %883
      %v885 = vsub.f32 %v873, %v881
      %v886 = vsub.f32 %v876, %v884
      %v887 = vmul.f32 %v885, 1.442695
      %v888 = vpow.pop %v887
      %v889 = vmul.f32 %v886, 1.442695
      %v890 = vpow.pop %v889
      %v891 = vsel %vm636, %v888, 0.0
      %892 = vadd.xlane.f32.xlu0 %v891
      %v893 = vpop.xlane.xlu0 %892
      %v894 = vsel %vm636, %v890, 0.0
      %895 = vadd.xlane.f32.xlu0 %v894
      %v896 = vpop.xlane.xlu0 %895
      %v897 = vrcp.pop %v893
      %v898 = vrcp.pop %v896
      %v899 = vmul.f32 %v888, %v897
      %v900 = vmul.f32 %v890, %v898
      %v901 = vpack.c.bf16 %v900, %v899
      %902 = vrot.lane.b32.xlu0 %v587, 64
      %v903 = vpop.permute.xlu0 %902
      %v906 = vsel %vm636, %v901, 0
      %908 = vmatprep.subr.bf16.mxu0 0
      %909 = vmatpush1.bf16.msra.mxu0 0
      %910 = vmatprep.subr.bf16.mxu0 0
      %911 = vmatpush1.bf16.msra.mxu0 0
      %912 = vmatprep.subr.bf16.mxu0 0
      %913 = vmatpush1.bf16.msra.mxu0 0
      %914 = vmatprep.subr.bf16.mxu0 0
      %915 = vmatpush1.bf16.msra.mxu0 0
      %916 = vmatprep.subr.bf16.mxu0 0
      %917 = vmatpush1.bf16.msra.mxu0 0
      %918 = vmatprep.subr.bf16.mxu0 0
      %919 = vmatpush1.bf16.msra.mxu0 0
      %920 = vmatprep.subr.bf16.mxu0 0
      %921 = vmatpush1.bf16.msra.mxu0 0
      %922 = vmatprep.subr.bf16.mxu0 0
      %923 = vmatpush1.bf16.msra.mxu0 %v903
      %924 = vmatprep.subr.bf16.mxu0 0
      %925 = vmatpush2.bf16.msra.mxu0 0
      %926 = vmatprep.subr.bf16.mxu0 0
      %927 = vmatpush2.bf16.msra.mxu0 0
      %928 = vmatprep.subr.bf16.mxu0 0
      %929 = vmatpush2.bf16.msra.mxu0 0
      %930 = vmatprep.subr.bf16.mxu0 0
      %931 = vmatpush2.bf16.msra.mxu0 0
      %932 = vmatprep.subr.bf16.mxu0 0
      %933 = vmatpush2.bf16.msra.mxu0 0
      %934 = vmatprep.subr.bf16.mxu0 0
      %935 = vmatpush2.bf16.msra.mxu0 0
      %936 = vmatprep.subr.bf16.mxu0 0
      %937 = vmatpush2.bf16.msra.mxu0 0
      %938 = vmatprep.subr.bf16.mxu0 0
      %939 = vmatpush2.bf16.msra.mxu0 0
      %940 = vmatprep.mubr.bf16.mxu0 0
      %941 = vmatmul.mubr.bf16.gmra.mxu0 %v906
      %v942 = vpop.f32.mrf.mxu0
      %v943 = vadd.f32 0.0, %v942
      %v944 = vpop.f32.mrf.mxu0
      %v945 = vpop.f32.mrf.mxu0
      %v946 = vadd.f32 0.0, %v945
      %v947 = vpop.f32.mrf.mxu0
      %948 = vdwg.mxu0
      %949 = vrot.lane.b32.xlu0 %v585, 32
      %v950 = vpop.permute.xlu0 %949
      %951 = vrot.lane.b32.xlu0 %v586, 32
      %v952 = vpop.permute.xlu0 %951
      %v954 = vsel %vm588, %v950, 0
      %v957 = vsel %vm588, %v952, 0
      %959 = vmatprep.subr.bf16.mxu0 0
      %960 = vmatpush1.bf16.xpose.msra.mxu0 0
      %961 = vmatprep.subr.bf16.mxu0 0
      %962 = vmatpush1.bf16.xpose.msra.mxu0 0
      %963 = vmatprep.subr.bf16.mxu0 0
      %964 = vmatpush1.bf16.xpose.msra.mxu0 0
      %965 = vmatprep.subr.bf16.mxu0 0
      %966 = vmatpush1.bf16.xpose.msra.mxu0 0
      %967 = vmatprep.subr.bf16.mxu0 0
      %968 = vmatpush1.bf16.xpose.msra.mxu0 0
      %969 = vmatprep.subr.bf16.mxu0 0
      %970 = vmatpush1.bf16.xpose.msra.mxu0 0
      %971 = vmatprep.subr.bf16.mxu0 0
      %972 = vmatpush1.bf16.xpose.msra.mxu0 0
      %973 = vmatprep.subr.bf16.mxu0 0
      %974 = vmatpush1.bf16.xpose.msra.mxu0 %v957
      %975 = vmatprep.subr.bf16.mxu0 0
      %976 = vmatpush2.bf16.xpose.msra.mxu0 0
      %977 = vmatprep.subr.bf16.mxu0 0
      %978 = vmatpush2.bf16.xpose.msra.mxu0 0
      %979 = vmatprep.subr.bf16.mxu0 0
      %980 = vmatpush2.bf16.xpose.msra.mxu0 0
      %981 = vmatprep.subr.bf16.mxu0 0
      %982 = vmatpush2.bf16.xpose.msra.mxu0 0
      %983 = vmatprep.subr.bf16.mxu0 0
      %984 = vmatpush2.bf16.xpose.msra.mxu0 0
      %985 = vmatprep.subr.bf16.mxu0 0
      %986 = vmatpush2.bf16.xpose.msra.mxu0 0
      %987 = vmatprep.subr.bf16.mxu0 0
      %988 = vmatpush2.bf16.xpose.msra.mxu0 0
      %989 = vmatprep.subr.bf16.mxu0 0
      %990 = vmatpush2.bf16.xpose.msra.mxu0 0
      %991 = vmatprep.mubr.bf16.mxu0 0
      %992 = vmatmul.mubr.bf16.gmra.mxu0 %v954
      %v993 = vpop.f32.mrf.mxu0
      %v994 = vadd.f32 0.0, %v993
      %v995 = vpop.f32.mrf.mxu0
      %v996 = vpop.f32.mrf.mxu0
      %v997 = vadd.f32 0.0, %v996
      %v998 = vpop.f32.mrf.mxu0
      %999 = vdwg.mxu0
      %v1000 = vsel %vm636, %v994, -inf
      %1001 = vmax.xlane.f32.xlu0 %v1000
      %v1002 = vpop.xlane.xlu0 %1001
      %v1003 = vsel %vm636, %v997, -inf
      %1004 = vmax.xlane.f32.xlu0 %v1003
      %v1005 = vpop.xlane.xlu0 %1004
      %v1006 = vsub.f32 %v994, %v1002
      %v1007 = vsub.f32 %v997, %v1005
      %v1008 = vmul.f32 %v1006, 1.442695
      %v1009 = vpow.pop %v1008
      %v1010 = vmul.f32 %v1007, 1.442695
      %v1011 = vpow.pop %v1010
      %v1012 = vsel %vm636, %v1009, 0.0
      %1013 = vadd.xlane.f32.xlu0 %v1012
      %v1014 = vpop.xlane.xlu0 %1013
      %v1015 = vsel %vm636, %v1011, 0.0
      %1016 = vadd.xlane.f32.xlu0 %v1015
      %v1017 = vpop.xlane.xlu0 %1016
      %v1018 = vrcp.pop %v1014
      %v1019 = vrcp.pop %v1017
      %v1020 = vmul.f32 %v1009, %v1018
      %v1021 = vmul.f32 %v1011, %v1019
      %v1022 = vpack.c.bf16 %v1021, %v1020
      %1023 = vrot.lane.b32.xlu0 %v587, 32
      %v1024 = vpop.permute.xlu0 %1023
      %v1027 = vsel %vm636, %v1022, 0
      %1029 = vmatprep.subr.bf16.mxu0 0
      %1030 = vmatpush1.bf16.msra.mxu0 0
      %1031 = vmatprep.subr.bf16.mxu0 0
      %1032 = vmatpush1.bf16.msra.mxu0 0
      %1033 = vmatprep.subr.bf16.mxu0 0
      %1034 = vmatpush1.bf16.msra.mxu0 0
      %1035 = vmatprep.subr.bf16.mxu0 0
      %1036 = vmatpush1.bf16.msra.mxu0 0
      %1037 = vmatprep.subr.bf16.mxu0 0
      %1038 = vmatpush1.bf16.msra.mxu0 0
      %1039 = vmatprep.subr.bf16.mxu0 0
      %1040 = vmatpush1.bf16.msra.mxu0 0
      %1041 = vmatprep.subr.bf16.mxu0 0
      %1042 = vmatpush1.bf16.msra.mxu0 0
      %1043 = vmatprep.subr.bf16.mxu0 0
      %1044 = vmatpush1.bf16.msra.mxu0 %v1024
      %1045 = vmatprep.subr.bf16.mxu0 0
      %1046 = vmatpush2.bf16.msra.mxu0 0
      %1047 = vmatprep.subr.bf16.mxu0 0
      %1048 = vmatpush2.bf16.msra.mxu0 0
      %1049 = vmatprep.subr.bf16.mxu0 0
      %1050 = vmatpush2.bf16.msra.mxu0 0
      %1051 = vmatprep.subr.bf16.mxu0 0
      %1052 = vmatpush2.bf16.msra.mxu0 0
      %1053 = vmatprep.subr.bf16.mxu0 0
      %1054 = vmatpush2.bf16.msra.mxu0 0
      %1055 = vmatprep.subr.bf16.mxu0 0
      %1056 = vmatpush2.bf16.msra.mxu0 0
      %1057 = vmatprep.subr.bf16.mxu0 0
      %1058 = vmatpush2.bf16.msra.mxu0 0
      %1059 = vmatprep.subr.bf16.mxu0 0
      %1060 = vmatpush2.bf16.msra.mxu0 0
      %1061 = vmatprep.mubr.bf16.mxu0 0
      %1062 = vmatmul.mubr.bf16.gmra.mxu0 %v1027
      %v1063 = vpop.f32.mrf.mxu0
      %v1064 = vadd.f32 0.0, %v1063
      %v1065 = vpop.f32.mrf.mxu0
      %v1066 = vpop.f32.mrf.mxu0
      %v1067 = vadd.f32 0.0, %v1066
      %v1068 = vpop.f32.mrf.mxu0
      %1069 = vdwg.mxu0
      %1072 = vrot.lane.b32.xlu0 %v822, 32
      %v1073 = vpop.permute.xlu0 %1072
      %1074 = vrot.lane.b32.xlu0 %v825, 32
      %v1075 = vpop.permute.xlu0 %1074
      %1080 = vrot.lane.b32.xlu0 %v943, 64
      %v1081 = vpop.permute.xlu0 %1080
      %1082 = vrot.lane.b32.xlu0 %v946, 64
      %v1083 = vpop.permute.xlu0 %1082
      %1088 = vrot.lane.b32.xlu0 %v1064, 96
      %v1089 = vpop.permute.xlu0 %1088
      %1090 = vrot.lane.b32.xlu0 %v1067, 96
      %v1091 = vpop.permute.xlu0 %1090
      %v1094 = vsel %vm588, %v698, %v1073
      %v1095 = vsel %vm588, %v701, %v1075
      %vm1096 = vcmask 523264
      %v1097 = vsel %vm1096, %v1094, %v1081
      %v1098 = vsel %vm1096, %v1095, %v1083
      %vm1099 = vcmask 785408
      %v1100 = vsel %vm1099, %v1097, %v1089
      %v1101 = vsel %vm1099, %v1098, %v1091
      %v1102 = vld [vmem:[%s5] sm:$0xf]
      %v1103 = vld [vmem:[%s5 + $0x4] sm:$0xf]
      %v1104 = vld [vmem:[%s5 + $0x8] sm:$0xf]
      %v1105 = vld [vmem:[%s5 + $0xc] sm:$0xf]
      %v1106 = vld [vmem:[%s5 + $0x10] sm:$0xf]
      %v1107 = vld [vmem:[%s5 + $0x14] sm:$0xf]
      %v1108 = vld [vmem:[%s5 + $0x18] sm:$0xf]
      %v1109 = vld [vmem:[%s5 + $0x1c] sm:$0xf]
      %v1110 = vld [vmem:[%s5 + $0x20] sm:$0xf]
      %v1111 = vld [vmem:[%s5 + $0x24] sm:$0xf]
      %v1112 = vld [vmem:[%s5 + $0x28] sm:$0xf]
      %v1113 = vld [vmem:[%s5 + $0x2c] sm:$0xf]
      %v1114 = vld [vmem:[%s5 + $0x30] sm:$0xf]
      %v1115 = vld [vmem:[%s5 + $0x34] sm:$0xf]
      %v1116 = vld [vmem:[%s5 + $0x38] sm:$0xf]
      %v1117 = vld [vmem:[%s5 + $0x3c] sm:$0xf]
      %v1118 = vpack.c.bf16 %v1101, %v1100
      %v1119 = vld [vmem:[%s6] sm:$0x1]
      %v1121 = vlaneseq
      %v1122 = vshrl.u32 %v1121, 7
      %v1123 = vsub.s32 0, %v1122
      %v1124 = vrot.slane %v1119, %v1123
      %v1142 = vunpack.c.l.b16 %v1102
      %v1143 = vunpack.c.l.b16 %v1103
      %v1144 = vunpack.c.l.b16 %v1104
      %v1145 = vunpack.c.l.b16 %v1105
      %v1146 = vunpack.c.l.b16 %v1106
      %v1147 = vunpack.c.l.b16 %v1107
      %v1148 = vunpack.c.l.b16 %v1108
      %v1149 = vunpack.c.l.b16 %v1109
      %v1150 = vunpack.c.l.b16 %v1110
      %v1151 = vunpack.c.l.b16 %v1111
      %v1152 = vunpack.c.l.b16 %v1112
      %v1153 = vunpack.c.l.b16 %v1113
      %v1154 = vunpack.c.l.b16 %v1114
      %v1155 = vunpack.c.l.b16 %v1115
      %v1156 = vunpack.c.l.b16 %v1116
      %v1157 = vunpack.c.l.b16 %v1117
      %v1158 = vpack.c.b16 %v1143, %v1142
      %v1159 = vpack.c.b16 %v1145, %v1144
      %v1160 = vpack.c.b16 %v1147, %v1146
      %v1161 = vpack.c.b16 %v1149, %v1148
      %v1162 = vpack.c.b16 %v1151, %v1150
      %v1163 = vpack.c.b16 %v1153, %v1152
      %v1164 = vpack.c.b16 %v1155, %v1154
      %v1165 = vpack.c.b16 %v1157, %v1156
      %1174 = vmatprep.subr.bf16.mxu0 0
      %1175 = vmatpush1.bf16.msra.mxu0 %v1165
      %1176 = vmatprep.subr.bf16.mxu0 0
      %1177 = vmatpush1.bf16.msra.mxu0 %v1164
      %1178 = vmatprep.subr.bf16.mxu0 0
      %1179 = vmatpush1.bf16.msra.mxu0 %v1163
      %1180 = vmatprep.subr.bf16.mxu0 0
      %1181 = vmatpush1.bf16.msra.mxu0 %v1162
      %1182 = vmatprep.subr.bf16.mxu0 0
      %1183 = vmatpush1.bf16.msra.mxu0 %v1161
      %1184 = vmatprep.subr.bf16.mxu0 0
      %1185 = vmatpush1.bf16.msra.mxu0 %v1160
      %1186 = vmatprep.subr.bf16.mxu0 0
      %1187 = vmatpush1.bf16.msra.mxu0 %v1159
      %1188 = vmatprep.subr.bf16.mxu0 0
      %1189 = vmatpush1.bf16.msra.mxu0 %v1158
      %1190 = vmatprep.subr.bf16.mxu0 0
      %1191 = vmatpush2.bf16.msra.mxu0 0
      %1192 = vmatprep.subr.bf16.mxu0 0
      %1193 = vmatpush2.bf16.msra.mxu0 0
      %1194 = vmatprep.subr.bf16.mxu0 0
      %1195 = vmatpush2.bf16.msra.mxu0 0
      %1196 = vmatprep.subr.bf16.mxu0 0
      %1197 = vmatpush2.bf16.msra.mxu0 0
      %1198 = vmatprep.subr.bf16.mxu0 0
      %1199 = vmatpush2.bf16.msra.mxu0 0
      %1200 = vmatprep.subr.bf16.mxu0 0
      %1201 = vmatpush2.bf16.msra.mxu0 0
      %1202 = vmatprep.subr.bf16.mxu0 0
      %1203 = vmatpush2.bf16.msra.mxu0 0
      %1204 = vmatprep.subr.bf16.mxu0 0
      %1205 = vmatpush2.bf16.msra.mxu0 0
      %1206 = vmatprep.mubr.bf16.mxu0 0
      %1207 = vmatmul.mubr.bf16.gmra.mxu0 %v1118
      %v1208 = vpop.f32.mrf.mxu0
      %v1209 = vadd.f32 %v1124, %v1208
      %v1210 = vpop.f32.mrf.mxu0
      %v1211 = vpop.f32.mrf.mxu0
      %v1212 = vadd.f32 %v1124, %v1211
      %v1213 = vpop.f32.mrf.mxu0
      %1214 = vdwg.mxu0
      %v1215 = vadd.f32 %v280, %v1209
      %v1216 = vadd.f32 %v281, %v1212
      %1217 = vst [vmem:[%s278] sm:$0xff] %v1215
      %1218 = vst [vmem:[%s278 + $0x8] sm:$0xff] %v1216
      %p1219 = scmp.lt.s32.totalorder %s18, 1
      %s1220 = scalar_select %p1219, %s18, 1
      %s1221 = smul.addr %s1220, 2
      %s1222 = smul.addr %s1221, 8
      %s1223 = scalar_lea.vmem %s7, %s1222
      // Predicated region
      $region49: #{closed_call.14} parent=47 // pred_check
        %p1224 = pneg %p188
      $region50: #{closed_call.14} parent=47 // pred_check_branch
        %1226 = sbr.rel (%p1224) target = $region52
      $region51: #{closed_call.14} parent=47 // pred_region
        _
      $region52: #{closed_call.14} parent=47 // pred_fallthru
        _
    $region48: #{closed_call.14} parent=5 // pred_fallthru
      _
    %p1227 = scmp.le.s32.totalorder 2, %s13
    // Predicated region
    $region53: #{closed_call.14} parent=5 // pred_check
      %p1228 = pneg %p1227
    $region54: #{closed_call.14} parent=5 // pred_check_branch
      %1230 = sbr.rel (%p1228) target = $region56
    $region55: #{closed_call.14} parent=5 // pred_region
      %s1231 = ssub.s32 %s13, 2
      // Predicated region
      $region57: #{closed_call.14} parent=55 // pred_check
        %p1232 = pneg %p194
      $region58: #{closed_call.14} parent=55 // pred_check_branch
        %1234 = sbr.rel (%p1232) target = $region60
      $region59: #{closed_call.14} parent=55 // pred_region
        %p1235 = scmp.lt.s32.totalorder %s19, 1
        %s1236 = scalar_select %p1235, %s19, 1
        %s1237 = smul.addr %s1236, 2
        %s1238 = smul.addr %s1237, 8
        %s1239 = scalar_lea.vmem %s7, %s1238
      $region60: #{closed_call.14} parent=55 // pred_fallthru
        _
    $region56: #{closed_call.14} parent=5 // pred_fallthru
      _
  $region6: #{closed_call.14} parent=0 // loop_footer
    %s17 = sadd.s32 1, %s13
  $region7: #{closed_call.14} parent=0 // loop_footer_branch
    %12 = sbr.rel target = $region3
  $region8: #{closed_call.14} parent=0 // loop_exit
    _

// kernel: closed_call.15
$region0: #{closed_call.15}
  #allocation0 [shape = 'u32[]', space=smem, size = 0x4, offset = 0x4, fixed_abs, tag = 'smem constant byte address 0x4 - core index']
  #allocation1 [shape = 'u32[144,128]{1,0:T(1,128)}', space=vmem, size = 0x12000, scoped, tag = 'internal scratch']
  %s0 = inlined_call_operand.vmem [shape: f32[2,16,128], index: 0, kind: input, shape index: {}]
  %s1 = inlined_call_operand.vmem [shape: f32[1,128], index: 1, kind: input, shape index: {}]
  %s2 = inlined_call_operand.vmem [shape: f32[1,128], index: 2, kind: input, shape index: {}]
  %s3 = inlined_call_operand.vmem [shape: bf16[128,256], index: 3, kind: input, shape index: {}]
  %s4 = inlined_call_operand.vmem [shape: f32[1,256], index: 4, kind: input, shape index: {}]
  %s5 = inlined_call_operand.vmem [shape: f32[15,128], index: 5, kind: input, shape index: {}]
  %s6 = inlined_call_operand.vmem [shape: f32[1,128], index: 6, kind: input, shape index: {}]
  %s7 = inlined_call_operand.vmem [shape: f32[1,128], index: 7, kind: input, shape index: {}]
  %s8 = inlined_call_operand.vmem [shape: f32[1,128], index: 8, kind: input, shape index: {}]
  %s9 = inlined_call_operand.vmem [shape: bf16[128,128], index: 9, kind: input, shape index: {}]
  %s10 = inlined_call_operand.vmem [shape: f32[1,128], index: 10, kind: input, shape index: {}]
  %s11 = inlined_call_operand.vmem [shape: f32[2,16,128], index: 11, kind: output, shape index: {}]
  %s12 = sld [smem:[#allocation0]]
  $region77: #{closed_call.15} parent=0
    _
  %s14 = ssub.s32 1, %s12
  %s15 = scalar_select 0, %s14, %s12
  loop: start=0, step=1, limit=4
  $region2: #{closed_call.15} parent=0 // loop_pre_header
    _
  $region3: #{closed_call.15} parent=0 // loop_header
    %s17 = sphi 0, %s21
    %p18 = scmp.ge.s32.totalorder %s17, 4
    %s27 = sphi 0, %s29
    %s30 = sphi 0, %s27
    %s31 = sphi 0, %s30
    %s47 = sphi 0, %s31
    %s51 = sphi 0, %s51
    %s53 = sphi 0, %s51
    %s54 = sphi 0, %s53
    %s68 = sphi 0, %s54
    %s72 = sphi 0, %s72
    %s74 = sphi 0, %s72
    %s75 = sphi 0, %s74
    %s89 = sphi 0, %s75
    %s93 = sphi 0, %s93
    %s95 = sphi 0, %s93
    %s96 = sphi 0, %s95
    %s110 = sphi 0, %s96
    %s114 = sphi 0, %s114
    %s116 = sphi 0, %s114
    %s117 = sphi 0, %s116
    %s131 = sphi 0, %s117
    %s135 = sphi 0, %s135
    %s137 = sphi 0, %s135
    %s138 = sphi 0, %s137
    %s152 = sphi 0, %s138
    %s156 = sphi 0, %s156
    %s158 = sphi 0, %s156
    %s159 = sphi 0, %s158
    %s173 = sphi 0, %s159
    %s177 = sphi 0, %s177
    %s179 = sphi 0, %s177
    %s180 = sphi 0, %s179
    %s194 = sphi 0, %s180
    %s198 = sphi 0, %s198
    %s200 = sphi 0, %s198
    %s201 = sphi 0, %s200
    %s215 = sphi 0, %s201
    %s219 = sphi 0, %s219
    %s221 = sphi 0, %s219
    %s222 = sphi 0, %s221
    %s236 = sphi 0, %s222
    %s240 = sphi 0, %s240
    %s242 = sphi 0, %s240
    %s243 = sphi 0, %s242
    %s257 = sphi 0, %s243
    %s263 = sphi 0, %s265
    %s266 = sphi 0, %s263
    %s267 = sphi 0, %s266
    %s283 = sphi 0, %s267
  $region4: #{closed_call.15} parent=0 // loop_header_branch
    %20 = sbr.rel (%p18) target = $region8
  $region5: #{closed_call.15} parent=0 // loop_body
    %s22 = ssub.s32 %s17, 1
    %s23 = ssub.s32 %s17, 2
    %s24 = sadd.s32 %s17, 1
    %s25 = ssub.s32 %s17, %s24
    %p26 = scmp.eq.s32.totalorder %s25, 0
    %s28 = sadd.s32 %s27, 1
    %s29 = scalar_select %p26, %s27, %s28
    %p32 = pneg %p26
    %p33 = scmp.eq.s32.totalorder %s17, 1
    %p34 = por %p32, %p33
    %p35 = scmp.ne.s32.totalorder %s27, %s30
    %p36 = scmp.eq.s32.totalorder %s17, 0
    %p37 = por %p35, %p36
    %p38 = scmp.ne.s32.totalorder %s27, %s30
    %p39 = scmp.eq.s32.totalorder %s22, 1
    %p40 = por %p38, %p39
    %p41 = scmp.ne.s32.totalorder %s30, %s31
    %p42 = scmp.eq.s32.totalorder %s22, 0
    %p43 = por %p41, %p42
    %p44 = scmp.ne.s32.totalorder %s30, %s31
    %p45 = scmp.eq.s32.totalorder %s23, 1
    %p46 = por %p44, %p45
    %p48 = scmp.ne.s32.totalorder %s31, %s47
    %p49 = scmp.eq.s32.totalorder %s23, 0
    %p50 = por %p48, %p49
    %s52 = sadd.s32 %s51, 1
    %p55 = scmp.eq.s32.totalorder %s17, 1
    %p56 = scmp.ne.s32.totalorder %s51, %s53
    %p57 = scmp.eq.s32.totalorder %s17, 0
    %p58 = por %p56, %p57
    %p59 = scmp.ne.s32.totalorder %s51, %s53
    %p60 = scmp.eq.s32.totalorder %s22, 1
    %p61 = por %p59, %p60
    %p62 = scmp.ne.s32.totalorder %s53, %s54
    %p63 = scmp.eq.s32.totalorder %s22, 0
    %p64 = por %p62, %p63
    %p65 = scmp.ne.s32.totalorder %s53, %s54
    %p66 = scmp.eq.s32.totalorder %s23, 1
    %p67 = por %p65, %p66
    %p69 = scmp.ne.s32.totalorder %s54, %s68
    %p70 = scmp.eq.s32.totalorder %s23, 0
    %p71 = por %p69, %p70
    %s73 = sadd.s32 %s72, 1
    %p76 = scmp.eq.s32.totalorder %s17, 1
    %p77 = scmp.ne.s32.totalorder %s72, %s74
    %p78 = scmp.eq.s32.totalorder %s17, 0
    %p79 = por %p77, %p78
    %p80 = scmp.ne.s32.totalorder %s72, %s74
    %p81 = scmp.eq.s32.totalorder %s22, 1
    %p82 = por %p80, %p81
    %p83 = scmp.ne.s32.totalorder %s74, %s75
    %p84 = scmp.eq.s32.totalorder %s22, 0
    %p85 = por %p83, %p84
    %p86 = scmp.ne.s32.totalorder %s74, %s75
    %p87 = scmp.eq.s32.totalorder %s23, 1
    %p88 = por %p86, %p87
    %p90 = scmp.ne.s32.totalorder %s75, %s89
    %p91 = scmp.eq.s32.totalorder %s23, 0
    %p92 = por %p90, %p91
    %s94 = sadd.s32 %s93, 1
    %p97 = scmp.eq.s32.totalorder %s17, 1
    %p98 = scmp.ne.s32.totalorder %s93, %s95
    %p99 = scmp.eq.s32.totalorder %s17, 0
    %p100 = por %p98, %p99
    %p101 = scmp.ne.s32.totalorder %s93, %s95
    %p102 = scmp.eq.s32.totalorder %s22, 1
    %p103 = por %p101, %p102
    %p104 = scmp.ne.s32.totalorder %s95, %s96
    %p105 = scmp.eq.s32.totalorder %s22, 0
    %p106 = por %p104, %p105
    %p107 = scmp.ne.s32.totalorder %s95, %s96
    %p108 = scmp.eq.s32.totalorder %s23, 1
    %p109 = por %p107, %p108
    %p111 = scmp.ne.s32.totalorder %s96, %s110
    %p112 = scmp.eq.s32.totalorder %s23, 0
    %p113 = por %p111, %p112
    %s115 = sadd.s32 %s114, 1
    %p118 = scmp.eq.s32.totalorder %s17, 1
    %p119 = scmp.ne.s32.totalorder %s114, %s116
    %p120 = scmp.eq.s32.totalorder %s17, 0
    %p121 = por %p119, %p120
    %p122 = scmp.ne.s32.totalorder %s114, %s116
    %p123 = scmp.eq.s32.totalorder %s22, 1
    %p124 = por %p122, %p123
    %p125 = scmp.ne.s32.totalorder %s116, %s117
    %p126 = scmp.eq.s32.totalorder %s22, 0
    %p127 = por %p125, %p126
    %p128 = scmp.ne.s32.totalorder %s116, %s117
    %p129 = scmp.eq.s32.totalorder %s23, 1
    %p130 = por %p128, %p129
    %p132 = scmp.ne.s32.totalorder %s117, %s131
    %p133 = scmp.eq.s32.totalorder %s23, 0
    %p134 = por %p132, %p133
    %s136 = sadd.s32 %s135, 1
    %p139 = scmp.eq.s32.totalorder %s17, 1
    %p140 = scmp.ne.s32.totalorder %s135, %s137
    %p141 = scmp.eq.s32.totalorder %s17, 0
    %p142 = por %p140, %p141
    %p143 = scmp.ne.s32.totalorder %s135, %s137
    %p144 = scmp.eq.s32.totalorder %s22, 1
    %p145 = por %p143, %p144
    %p146 = scmp.ne.s32.totalorder %s137, %s138
    %p147 = scmp.eq.s32.totalorder %s22, 0
    %p148 = por %p146, %p147
    %p149 = scmp.ne.s32.totalorder %s137, %s138
    %p150 = scmp.eq.s32.totalorder %s23, 1
    %p151 = por %p149, %p150
    %p153 = scmp.ne.s32.totalorder %s138, %s152
    %p154 = scmp.eq.s32.totalorder %s23, 0
    %p155 = por %p153, %p154
    %s157 = sadd.s32 %s156, 1
    %p160 = scmp.eq.s32.totalorder %s17, 1
    %p161 = scmp.ne.s32.totalorder %s156, %s158
    %p162 = scmp.eq.s32.totalorder %s17, 0
    %p163 = por %p161, %p162
    %p164 = scmp.ne.s32.totalorder %s156, %s158
    %p165 = scmp.eq.s32.totalorder %s22, 1
    %p166 = por %p164, %p165
    %p167 = scmp.ne.s32.totalorder %s158, %s159
    %p168 = scmp.eq.s32.totalorder %s22, 0
    %p169 = por %p167, %p168
    %p170 = scmp.ne.s32.totalorder %s158, %s159
    %p171 = scmp.eq.s32.totalorder %s23, 1
    %p172 = por %p170, %p171
    %p174 = scmp.ne.s32.totalorder %s159, %s173
    %p175 = scmp.eq.s32.totalorder %s23, 0
    %p176 = por %p174, %p175
    %s178 = sadd.s32 %s177, 1
    %p181 = scmp.eq.s32.totalorder %s17, 1
    %p182 = scmp.ne.s32.totalorder %s177, %s179
    %p183 = scmp.eq.s32.totalorder %s17, 0
    %p184 = por %p182, %p183
    %p185 = scmp.ne.s32.totalorder %s177, %s179
    %p186 = scmp.eq.s32.totalorder %s22, 1
    %p187 = por %p185, %p186
    %p188 = scmp.ne.s32.totalorder %s179, %s180
    %p189 = scmp.eq.s32.totalorder %s22, 0
    %p190 = por %p188, %p189
    %p191 = scmp.ne.s32.totalorder %s179, %s180
    %p192 = scmp.eq.s32.totalorder %s23, 1
    %p193 = por %p191, %p192
    %p195 = scmp.ne.s32.totalorder %s180, %s194
    %p196 = scmp.eq.s32.totalorder %s23, 0
    %p197 = por %p195, %p196
    %s199 = sadd.s32 %s198, 1
    %p202 = scmp.eq.s32.totalorder %s17, 1
    %p203 = scmp.ne.s32.totalorder %s198, %s200
    %p204 = scmp.eq.s32.totalorder %s17, 0
    %p205 = por %p203, %p204
    %p206 = scmp.ne.s32.totalorder %s198, %s200
    %p207 = scmp.eq.s32.totalorder %s22, 1
    %p208 = por %p206, %p207
    %p209 = scmp.ne.s32.totalorder %s200, %s201
    %p210 = scmp.eq.s32.totalorder %s22, 0
    %p211 = por %p209, %p210
    %p212 = scmp.ne.s32.totalorder %s200, %s201
    %p213 = scmp.eq.s32.totalorder %s23, 1
    %p214 = por %p212, %p213
    %p216 = scmp.ne.s32.totalorder %s201, %s215
    %p217 = scmp.eq.s32.totalorder %s23, 0
    %p218 = por %p216, %p217
    %s220 = sadd.s32 %s219, 1
    %p223 = scmp.eq.s32.totalorder %s17, 1
    %p224 = scmp.ne.s32.totalorder %s219, %s221
    %p225 = scmp.eq.s32.totalorder %s17, 0
    %p226 = por %p224, %p225
    %p227 = scmp.ne.s32.totalorder %s219, %s221
    %p228 = scmp.eq.s32.totalorder %s22, 1
    %p229 = por %p227, %p228
    %p230 = scmp.ne.s32.totalorder %s221, %s222
    %p231 = scmp.eq.s32.totalorder %s22, 0
    %p232 = por %p230, %p231
    %p233 = scmp.ne.s32.totalorder %s221, %s222
    %p234 = scmp.eq.s32.totalorder %s23, 1
    %p235 = por %p233, %p234
    %p237 = scmp.ne.s32.totalorder %s222, %s236
    %p238 = scmp.eq.s32.totalorder %s23, 0
    %p239 = por %p237, %p238
    %s241 = sadd.s32 %s240, 1
    %p244 = scmp.eq.s32.totalorder %s17, 1
    %p245 = scmp.ne.s32.totalorder %s240, %s242
    %p246 = scmp.eq.s32.totalorder %s17, 0
    %p247 = por %p245, %p246
    %p248 = scmp.ne.s32.totalorder %s240, %s242
    %p249 = scmp.eq.s32.totalorder %s22, 1
    %p250 = por %p248, %p249
    %p251 = scmp.ne.s32.totalorder %s242, %s243
    %p252 = scmp.eq.s32.totalorder %s22, 0
    %p253 = por %p251, %p252
    %p254 = scmp.ne.s32.totalorder %s242, %s243
    %p255 = scmp.eq.s32.totalorder %s23, 1
    %p256 = por %p254, %p255
    %p258 = scmp.ne.s32.totalorder %s243, %s257
    %p259 = scmp.eq.s32.totalorder %s23, 0
    %p260 = por %p258, %p259
    %s261 = ssub.s32 %s17, %s24
    %p262 = scmp.eq.s32.totalorder %s261, 0
    %s264 = sadd.s32 %s263, 1
    %s265 = scalar_select %p262, %s263, %s264
    %p268 = pneg %p262
    %p269 = scmp.eq.s32.totalorder %s17, 1
    %p270 = por %p268, %p269
    %p271 = scmp.ne.s32.totalorder %s263, %s266
    %p272 = scmp.eq.s32.totalorder %s17, 0
    %p273 = por %p271, %p272
    %p274 = scmp.ne.s32.totalorder %s263, %s266
    %p275 = scmp.eq.s32.totalorder %s22, 1
    %p276 = por %p274, %p275
    %p277 = scmp.ne.s32.totalorder %s266, %s267
    %p278 = scmp.eq.s32.totalorder %s22, 0
    %p279 = por %p277, %p278
    %p280 = scmp.ne.s32.totalorder %s266, %s267
    %p281 = scmp.eq.s32.totalorder %s23, 1
    %p282 = por %p280, %p281
    %p284 = scmp.ne.s32.totalorder %s267, %s283
    %p285 = scmp.eq.s32.totalorder %s23, 0
    %p286 = por %p284, %p285
    %p287 = scmp.le.s32.totalorder 1, %s17
    %p288 = scmp.lt.s32.totalorder %s17, 3
    %p289 = pnand %p287, %p288
    %p290 = pneg %p289
    // Predicated region
    $region9: #{closed_call.15} parent=5 // pred_check
      _
    $region10: #{closed_call.15} parent=5 // pred_check_branch
      %292 = sbr.rel (%p289) target = $region12
    $region11: #{closed_call.15} parent=5 // pred_region
      %s293 = ssub.s32 %s17, 1
      // Predicated region
      $region13: #{closed_call.15} parent=11 // pred_check
        %p294 = pneg %p64
      $region14: #{closed_call.15} parent=11 // pred_check_branch
        %296 = sbr.rel (%p294) target = $region16
      $region15: #{closed_call.15} parent=11 // pred_region
        _
      $region16: #{closed_call.15} parent=11 // pred_fallthru
        _
      // Predicated region
      $region17: #{closed_call.15} parent=11 // pred_check
        %p297 = pneg %p85
      $region18: #{closed_call.15} parent=11 // pred_check_branch
        %299 = sbr.rel (%p297) target = $region20
      $region19: #{closed_call.15} parent=11 // pred_region
        _
      $region20: #{closed_call.15} parent=11 // pred_fallthru
        _
      // Predicated region
      $region21: #{closed_call.15} parent=11 // pred_check
        %p300 = pneg %p106
      $region22: #{closed_call.15} parent=11 // pred_check_branch
        %302 = sbr.rel (%p300) target = $region24
      $region23: #{closed_call.15} parent=11 // pred_region
        _
      $region24: #{closed_call.15} parent=11 // pred_fallthru
        _
      // Predicated region
      $region25: #{closed_call.15} parent=11 // pred_check
        %p303 = pneg %p127
      $region26: #{closed_call.15} parent=11 // pred_check_branch
        %305 = sbr.rel (%p303) target = $region28
      $region27: #{closed_call.15} parent=11 // pred_region
        _
      $region28: #{closed_call.15} parent=11 // pred_fallthru
        _
      // Predicated region
      $region29: #{closed_call.15} parent=11 // pred_check
        %p306 = pneg %p148
      $region30: #{closed_call.15} parent=11 // pred_check_branch
        %308 = sbr.rel (%p306) target = $region32
      $region31: #{closed_call.15} parent=11 // pred_region
        _
      $region32: #{closed_call.15} parent=11 // pred_fallthru
        _
      // Predicated region
      $region33: #{closed_call.15} parent=11 // pred_check
        %p309 = pneg %p169
      $region34: #{closed_call.15} parent=11 // pred_check_branch
        %311 = sbr.rel (%p309) target = $region36
      $region35: #{closed_call.15} parent=11 // pred_region
        _
      $region36: #{closed_call.15} parent=11 // pred_fallthru
        _
      // Predicated region
      $region37: #{closed_call.15} parent=11 // pred_check
        %p312 = pneg %p190
      $region38: #{closed_call.15} parent=11 // pred_check_branch
        %314 = sbr.rel (%p312) target = $region40
      $region39: #{closed_call.15} parent=11 // pred_region
        _
      $region40: #{closed_call.15} parent=11 // pred_fallthru
        _
      // Predicated region
      $region41: #{closed_call.15} parent=11 // pred_check
        %p315 = pneg %p211
      $region42: #{closed_call.15} parent=11 // pred_check_branch
        %317 = sbr.rel (%p315) target = $region44
      $region43: #{closed_call.15} parent=11 // pred_region
        _
      $region44: #{closed_call.15} parent=11 // pred_fallthru
        _
      // Predicated region
      $region45: #{closed_call.15} parent=11 // pred_check
        %p318 = pneg %p232
      $region46: #{closed_call.15} parent=11 // pred_check_branch
        %320 = sbr.rel (%p318) target = $region48
      $region47: #{closed_call.15} parent=11 // pred_region
        _
      $region48: #{closed_call.15} parent=11 // pred_fallthru
        _
      // Predicated region
      $region49: #{closed_call.15} parent=11 // pred_check
        %p321 = pneg %p253
      $region50: #{closed_call.15} parent=11 // pred_check_branch
        %323 = sbr.rel (%p321) target = $region52
      $region51: #{closed_call.15} parent=11 // pred_region
        _
      $region52: #{closed_call.15} parent=11 // pred_fallthru
        _
    $region12: #{closed_call.15} parent=5 // pred_fallthru
      _
    %p324 = scmp.lt.s32.totalorder %s17, 2
    // Predicated region
    $region53: #{closed_call.15} parent=5 // pred_check
      %p325 = pneg %p324
    $region54: #{closed_call.15} parent=5 // pred_check_branch
      %327 = sbr.rel (%p325) target = $region56
    $region55: #{closed_call.15} parent=5 // pred_region
      // Predicated region
      $region57: #{closed_call.15} parent=55 // pred_check
        %p328 = pneg %p37
      $region58: #{closed_call.15} parent=55 // pred_check_branch
        %330 = sbr.rel (%p328) target = $region60
      $region59: #{closed_call.15} parent=55 // pred_region
        %p331 = scmp.lt.s32.totalorder %s17, 1
        %s332 = scalar_select %p331, %s17, 1
        %s333 = smul.addr %s332, 2
        %s334 = smul.addr %s333, 8
        %s335 = scalar_lea.vmem %s0, %s334
      $region60: #{closed_call.15} parent=55 // pred_fallthru
        _
    $region56: #{closed_call.15} parent=5 // pred_fallthru
      _
    %p336 = scmp.le.s32.totalorder 1, %s17
    %p337 = scmp.lt.s32.totalorder %s17, 3
    %p338 = pnand %p336, %p337
    %p339 = pneg %p338
    // Predicated region
    $region61: #{closed_call.15} parent=5 // pred_check
      _
    $region62: #{closed_call.15} parent=5 // pred_check_branch
      %341 = sbr.rel (%p338) target = $region64
    $region63: #{closed_call.15} parent=5 // pred_region
      %s342 = ssub.s32 %s17, 1
      %p343 = scmp.lt.s32.totalorder %s22, 1
      %s344 = scalar_select %p343, %s22, 1
      %s345 = smul.addr %s344, 2
      %s346 = smul.addr %s345, 8
      %s347 = scalar_lea.vmem %s0, %s346
      %p348 = pneg %p43
      %p349 = pneg %p40
      %p350 = pneg %p64
      %p351 = pneg %p61
      %p352 = pneg %p85
      %p353 = pneg %p82
      %p354 = pneg %p106
      %p355 = pneg %p103
      %p356 = pneg %p127
      %p357 = pneg %p124
      %p358 = pneg %p148
      %p359 = pneg %p145
      %p360 = pneg %p169
      %p361 = pneg %p166
      %p362 = pneg %p190
      %p363 = pneg %p187
      %p364 = pneg %p211
      %p365 = pneg %p208
      %p366 = pneg %p232
      %p367 = pneg %p229
      %p368 = pneg %p253
      %p369 = pneg %p250
      %p370 = pneg %p279
      %p371 = pneg %p276
      %p372 = scmp.lt.s32.totalorder %s22, 1
      %s373 = scalar_select %p372, %s22, 1
      %s374 = smul.addr %s373, 2
      %s375 = smul.addr %s374, 8
      %s376 = scalar_lea.vmem %s11, %s375
      %p377 = scmp.lt.s32.totalorder %s22, 1
      %s378 = scalar_select %p377, %s22, 1
      %s379 = smul.addr %s378, 2
      %s380 = smul.addr %s379, 8
      %s381 = scalar_lea.vmem %s0, %s380
      %p382 = scmp.lt.s32.totalorder %s22, 1
      %s383 = scalar_select %p382, %s22, 1
      %s384 = smul.addr %s383, 2
      %s385 = smul.addr %s384, 8
      %s386 = scalar_lea.vmem %s11, %s385
      %v388 = vld [vmem:[%s381] sm:$0xff]
      %v389 = vld [vmem:[%s381 + $0x8] sm:$0xff]
      %v390 = vld [vmem:[%s1] sm:$0x1]
      %v391 = vld [vmem:[%s2] sm:$0x1]
      %392 = vadd.xlane.f32.xlu0 %v388
      %v393 = vpop.xlane.xlu0 %392
      %394 = vadd.xlane.f32.xlu0 %v389
      %v395 = vpop.xlane.xlu0 %394
      %v396 = vrcp.pop 128.0
      %v397 = vmul.f32 %v393, %v396
      %v398 = vmul.f32 %v395, %v396
      %v399 = vsub.f32 %v388, %v397
      %v400 = vsub.f32 %v389, %v398
      %v401 = vmul.f32 %v399, %v399
      %v402 = vmul.f32 %v400, %v400
      %403 = vadd.xlane.f32.xlu0 %v401
      %v404 = vpop.xlane.xlu0 %403
      %405 = vadd.xlane.f32.xlu0 %v402
      %v406 = vpop.xlane.xlu0 %405
      %v407 = vmul.f32 %v404, %v396
      %v408 = vmul.f32 %v406, %v396
      %v409 = vadd.f32 %v407, 1e-05
      %v410 = vadd.f32 %v408, 1e-05
      %v411 = vrsqrt.pop %v409
      %v412 = vrsqrt.pop %v410
      %v413 = vmul.f32 %v399, %v411
      %v414 = vmul.f32 %v400, %v412
      %v416 = vlaneseq
      %v417 = vshrl.u32 %v416, 7
      %v418 = vsub.s32 0, %v417
      %v419 = vrot.slane %v390, %v418
      %v421 = vmul.f32 %v413, %v419
      %v422 = vmul.f32 %v414, %v419
      %v424 = vlaneseq
      %v425 = vshrl.u32 %v424, 7
      %v426 = vsub.s32 0, %v425
      %v427 = vrot.slane %v391, %v426
      %v429 = vadd.f32 %v421, %v427
      %v430 = vadd.f32 %v422, %v427
      %v431 = vld [vmem:[%s3] sm:$0xff]
      %v432 = vld [vmem:[%s3 + $0x8] sm:$0xff]
      %v433 = vld [vmem:[%s3 + $0x10] sm:$0xff]
      %v434 = vld [vmem:[%s3 + $0x18] sm:$0xff]
      %v435 = vld [vmem:[%s3 + $0x20] sm:$0xff]
      %v436 = vld [vmem:[%s3 + $0x28] sm:$0xff]
      %v437 = vld [vmem:[%s3 + $0x30] sm:$0xff]
      %v438 = vld [vmem:[%s3 + $0x38] sm:$0xff]
      %v439 = vld [vmem:[%s3 + $0x40] sm:$0xff]
      %v440 = vld [vmem:[%s3 + $0x48] sm:$0xff]
      %v441 = vld [vmem:[%s3 + $0x50] sm:$0xff]
      %v442 = vld [vmem:[%s3 + $0x58] sm:$0xff]
      %v443 = vld [vmem:[%s3 + $0x60] sm:$0xff]
      %v444 = vld [vmem:[%s3 + $0x68] sm:$0xff]
      %v445 = vld [vmem:[%s3 + $0x70] sm:$0xff]
      %v446 = vld [vmem:[%s3 + $0x78] sm:$0xff]
      %v447 = vpack.c.bf16 %v430, %v429
      %v448 = vld [vmem:[%s4] sm:$0x3]
      %v450 = vlaneseq
      %v451 = vshrl.u32 %v450, 7
      %v452 = vsub.s32 0, %v451
      %v453 = vrot.slane %v448, %v452
      %v454 = vlaneseq
      %v455 = vshrl.u32 %v454, 7
      %v456 = vsub.s32 1, %v455
      %v457 = vrot.slane %v448, %v456
      %v476 = vunpack.c.l.b16 %v431
      %v477 = vunpack.c.h.b16 %v431
      %v478 = vunpack.c.l.b16 %v432
      %v479 = vunpack.c.h.b16 %v432
      %v480 = vunpack.c.l.b16 %v433
      %v481 = vunpack.c.h.b16 %v433
      %v482 = vunpack.c.l.b16 %v434
      %v483 = vunpack.c.h.b16 %v434
      %v484 = vunpack.c.l.b16 %v435
      %v485 = vunpack.c.h.b16 %v435
      %v486 = vunpack.c.l.b16 %v436
      %v487 = vunpack.c.h.b16 %v436
      %v488 = vunpack.c.l.b16 %v437
      %v489 = vunpack.c.h.b16 %v437
      %v490 = vunpack.c.l.b16 %v438
      %v491 = vunpack.c.h.b16 %v438
      %v492 = vunpack.c.l.b16 %v439
      %v493 = vunpack.c.h.b16 %v439
      %v494 = vunpack.c.l.b16 %v440
      %v495 = vunpack.c.h.b16 %v440
      %v496 = vunpack.c.l.b16 %v441
      %v497 = vunpack.c.h.b16 %v441
      %v498 = vunpack.c.l.b16 %v442
      %v499 = vunpack.c.h.b16 %v442
      %v500 = vunpack.c.l.b16 %v443
      %v501 = vunpack.c.h.b16 %v443
      %v502 = vunpack.c.l.b16 %v444
      %v503 = vunpack.c.h.b16 %v444
      %v504 = vunpack.c.l.b16 %v445
      %v505 = vunpack.c.h.b16 %v445
      %v506 = vunpack.c.l.b16 %v446
      %v507 = vunpack.c.h.b16 %v446
      %v508 = vpack.c.b16 %v478, %v476
      %v509 = vpack.c.b16 %v479, %v477
      %v510 = vpack.c.b16 %v482, %v480
      %v511 = vpack.c.b16 %v483, %v481
      %v512 = vpack.c.b16 %v486, %v484
      %v513 = vpack.c.b16 %v487, %v485
      %v514 = vpack.c.b16 %v490, %v488
      %v515 = vpack.c.b16 %v491, %v489
      %v516 = vpack.c.b16 %v494, %v492
      %v517 = vpack.c.b16 %v495, %v493
      %v518 = vpack.c.b16 %v498, %v496
      %v519 = vpack.c.b16 %v499, %v497
      %v520 = vpack.c.b16 %v502, %v500
      %v521 = vpack.c.b16 %v503, %v501
      %v522 = vpack.c.b16 %v506, %v504
      %v523 = vpack.c.b16 %v507, %v505
      %540 = vmatprep.subr.bf16.mxu0 %v523
      %541 = vmatpush1.bf16.msra.mxu0 %v522
      %542 = vmatprep.subr.bf16.mxu0 %v521
      %543 = vmatpush1.bf16.msra.mxu0 %v520
      %544 = vmatprep.subr.bf16.mxu0 %v519
      %545 = vmatpush1.bf16.msra.mxu0 %v518
      %546 = vmatprep.subr.bf16.mxu0 %v517
      %547 = vmatpush1.bf16.msra.mxu0 %v516
      %548 = vmatprep.subr.bf16.mxu0 %v515
      %549 = vmatpush1.bf16.msra.mxu0 %v514
      %550 = vmatprep.subr.bf16.mxu0 %v513
      %551 = vmatpush1.bf16.msra.mxu0 %v512
      %552 = vmatprep.subr.bf16.mxu0 %v511
      %553 = vmatpush1.bf16.msra.mxu0 %v510
      %554 = vmatprep.subr.bf16.mxu0 %v509
      %555 = vmatpush1.bf16.msra.mxu0 %v508
      %556 = vmatprep.subr.bf16.mxu0 0
      %557 = vmatpush2.bf16.msra.mxu0 0
      %558 = vmatprep.subr.bf16.mxu0 0
      %559 = vmatpush2.bf16.msra.mxu0 0
      %560 = vmatprep.subr.bf16.mxu0 0
      %561 = vmatpush2.bf16.msra.mxu0 0
      %562 = vmatprep.subr.bf16.mxu0 0
      %563 = vmatpush2.bf16.msra.mxu0 0
      %564 = vmatprep.subr.bf16.mxu0 0
      %565 = vmatpush2.bf16.msra.mxu0 0
      %566 = vmatprep.subr.bf16.mxu0 0
      %567 = vmatpush2.bf16.msra.mxu0 0
      %568 = vmatprep.subr.bf16.mxu0 0
      %569 = vmatpush2.bf16.msra.mxu0 0
      %570 = vmatprep.subr.bf16.mxu0 0
      %571 = vmatpush2.bf16.msra.mxu0 0
      %572 = vmatprep.mubr.bf16.mxu0 0
      %573 = vmatmul.mubr.bf16.gmra.mxu0 %v447
      %v574 = vpop.f32.mrf.mxu0
      %v575 = vadd.f32 %v453, %v574
      %v576 = vpop.f32.mrf.mxu0
      %v577 = vadd.f32 %v457, %v576
      %v578 = vpop.f32.mrf.mxu0
      %v579 = vadd.f32 %v453, %v578
      %v580 = vpop.f32.mrf.mxu0
      %v581 = vadd.f32 %v457, %v580
      %582 = vdwg.mxu0
      %v583 = vsub.f32 0.0, %v577
      %v584 = vsub.f32 0.0, %v581
      %v585 = vmul.f32 %v583, 1.442695
      %v586 = vpow.pop %v585
      %v587 = vmul.f32 %v584, 1.442695
      %v588 = vpow.pop %v587
      %v589 = vadd.f32 %v586, 1.0
      %v590 = vadd.f32 %v588, 1.0
      %v591 = vrcp.pop %v589
      %v592 = vmul.f32 1.0, %v591
      %v593 = vrcp.pop %v590
      %v594 = vmul.f32 1.0, %v593
      %v595 = vmul.f32 %v575, %v592
      %v596 = vmul.f32 %v579, %v594
      %vm599 = vcmask 1046528
      %v600 = vrot.slane %v595, 1
      %v601 = vrot.slane %v596, 1
      %v602 = vsel %vm599, %v600, %v601
      %v606 = vsel %vm599, 0.0, %v600
      %v607 = vsel %vm599, %v601, 0.0
      %v608 = vld [vmem:[%s5] sm:$0xff]
      %v609 = vld [vmem:[%s5 + $0x8] sm:$0x7f]
      %v610 = vlaneseq
      %v611 = vshrl.u32 %v610, 7
      %v612 = vsub.s32 0, %v611
      %v613 = vrot.slane %v608, %v612
      %v614 = vmul.f32 %v606, %v613
      %v615 = vmul.f32 %v602, %v613
      %v616 = vadd.f32 %v614, 0.0
      %v617 = vadd.f32 %v615, 0.0
      %v618 = vlaneseq
      %v619 = vshrl.u32 %v618, 7
      %v620 = vsub.s32 1, %v619
      %v621 = vrot.slane %v608, %v620
      %v622 = vmul.f32 %v606, %v621
      %v623 = vmul.f32 %v602, %v621
      %v624 = vmul.f32 %v607, %v621
      %v628 = vrot.slane %v622, 1
      %v629 = vrot.slane %v623, 1
      %v630 = vsel %vm599, %v628, %v629
      %v631 = vrot.slane %v624, 1
      %v632 = vsel %vm599, %v629, %v631
      %v635 = vadd.f32 %v616, %v630
      %v636 = vadd.f32 %v617, %v632
      %v637 = vlaneseq
      %v638 = vshrl.u32 %v637, 7
      %v639 = vsub.s32 2, %v638
      %v640 = vrot.slane %v608, %v639
      %v641 = vmul.f32 %v606, %v640
      %v642 = vmul.f32 %v602, %v640
      %v643 = vmul.f32 %v607, %v640
      %vm647 = vcmask 1045504
      %v648 = vrot.slane %v641, 2
      %v649 = vrot.slane %v642, 2
      %v650 = vsel %vm647, %v648, %v649
      %v651 = vrot.slane %v643, 2
      %v652 = vsel %vm647, %v649, %v651
      %v655 = vadd.f32 %v635, %v650
      %v656 = vadd.f32 %v636, %v652
      %v657 = vlaneseq
      %v658 = vshrl.u32 %v657, 7
      %v659 = vsub.s32 3, %v658
      %v660 = vrot.slane %v608, %v659
      %v661 = vmul.f32 %v606, %v660
      %v662 = vmul.f32 %v602, %v660
      %v663 = vmul.f32 %v607, %v660
      %vm667 = vcmask 1044480
      %v668 = vrot.slane %v661, 3
      %v669 = vrot.slane %v662, 3
      %v670 = vsel %vm667, %v668, %v669
      %v671 = vrot.slane %v663, 3
      %v672 = vsel %vm667, %v669, %v671
      %v675 = vadd.f32 %v655, %v670
      %v676 = vadd.f32 %v656, %v672
      %v677 = vlaneseq
      %v678 = vshrl.u32 %v677, 7
      %v679 = vsub.s32 4, %v678
      %v680 = vrot.slane %v608, %v679
      %v681 = vmul.f32 %v606, %v680
      %v682 = vmul.f32 %v602, %v680
      %v683 = vmul.f32 %v607, %v680
      %vm687 = vcmask 1043456
      %v688 = vrot.slane %v681, 4
      %v689 = vrot.slane %v682, 4
      %v690 = vsel %vm687, %v688, %v689
      %v691 = vrot.slane %v683, 4
      %v692 = vsel %vm687, %v689, %v691
      %v695 = vadd.f32 %v675, %v690
      %v696 = vadd.f32 %v676, %v692
      %v697 = vlaneseq
      %v698 = vshrl.u32 %v697, 7
      %v699 = vsub.s32 5, %v698
      %v700 = vrot.slane %v608, %v699
      %v701 = vmul.f32 %v606, %v700
      %v702 = vmul.f32 %v602, %v700
      %v703 = vmul.f32 %v607, %v700
      %vm707 = vcmask 1042432
      %v708 = vrot.slane %v701, 5
      %v709 = vrot.slane %v702, 5
      %v710 = vsel %vm707, %v708, %v709
      %v711 = vrot.slane %v703, 5
      %v712 = vsel %vm707, %v709, %v711
      %v715 = vadd.f32 %v695, %v710
      %v716 = vadd.f32 %v696, %v712
      %v717 = vlaneseq
      %v718 = vshrl.u32 %v717, 7
      %v719 = vsub.s32 6, %v718
      %v720 = vrot.slane %v608, %v719
      %v721 = vmul.f32 %v606, %v720
      %v722 = vmul.f32 %v602, %v720
      %v723 = vmul.f32 %v607, %v720
      %vm727 = vcmask 1041408
      %v728 = vrot.slane %v721, 6
      %v729 = vrot.slane %v722, 6
      %v730 = vsel %vm727, %v728, %v729
      %v731 = vrot.slane %v723, 6
      %v732 = vsel %vm727, %v729, %v731
      %v735 = vadd.f32 %v715, %v730
      %v736 = vadd.f32 %v716, %v732
      %v737 = vlaneseq
      %v738 = vshrl.u32 %v737, 7
      %v739 = vsub.s32 7, %v738
      %v740 = vrot.slane %v608, %v739
      %v741 = vmul.f32 %v606, %v740
      %v742 = vmul.f32 %v602, %v740
      %v743 = vmul.f32 %v607, %v740
      %vm747 = vcmask 1040384
      %v748 = vrot.slane %v741, 7
      %v749 = vrot.slane %v742, 7
      %v750 = vsel %vm747, %v748, %v749
      %v751 = vrot.slane %v743, 7
      %v752 = vsel %vm747, %v749, %v751
      %v755 = vadd.f32 %v735, %v750
      %v756 = vadd.f32 %v736, %v752
      %v757 = vlaneseq
      %v758 = vshrl.u32 %v757, 7
      %v759 = vsub.s32 0, %v758
      %v760 = vrot.slane %v609, %v759
      %v761 = vmul.f32 %v602, %v760
      %v762 = vmul.f32 %v607, %v760
      %v763 = vadd.f32 %v755, %v761
      %v764 = vadd.f32 %v756, %v762
      %v765 = vlaneseq
      %v766 = vshrl.u32 %v765, 7
      %v767 = vsub.s32 1, %v766
      %v768 = vrot.slane %v609, %v767
      %v769 = vmul.f32 %v602, %v768
      %v770 = vmul.f32 %v607, %v768
      %v771 = vmul.f32 %v768, 0.0
      %v775 = vrot.slane %v769, 1
      %v776 = vrot.slane %v770, 1
      %v777 = vsel %vm599, %v775, %v776
      %v778 = vrot.slane %v771, 1
      %v779 = vsel %vm599, %v776, %v778
      %v782 = vadd.f32 %v763, %v777
      %v783 = vadd.f32 %v764, %v779
      %v784 = vlaneseq
      %v785 = vshrl.u32 %v784, 7
      %v786 = vsub.s32 2, %v785
      %v787 = vrot.slane %v609, %v786
      %v788 = vmul.f32 %v602, %v787
      %v789 = vmul.f32 %v607, %v787
      %v790 = vmul.f32 %v787, 0.0
      %v794 = vrot.slane %v788, 2
      %v795 = vrot.slane %v789, 2
      %v796 = vsel %vm647, %v794, %v795
      %v797 = vrot.slane %v790, 2
      %v798 = vsel %vm647, %v795, %v797
      %v801 = vadd.f32 %v782, %v796
      %v802 = vadd.f32 %v783, %v798
      %v803 = vlaneseq
      %v804 = vshrl.u32 %v803, 7
      %v805 = vsub.s32 3, %v804
      %v806 = vrot.slane %v609, %v805
      %v807 = vmul.f32 %v602, %v806
      %v808 = vmul.f32 %v607, %v806
      %v809 = vmul.f32 %v806, 0.0
      %v813 = vrot.slane %v807, 3
      %v814 = vrot.slane %v808, 3
      %v815 = vsel %vm667, %v813, %v814
      %v816 = vrot.slane %v809, 3
      %v817 = vsel %vm667, %v814, %v816
      %v820 = vadd.f32 %v801, %v815
      %v821 = vadd.f32 %v802, %v817
      %v822 = vlaneseq
      %v823 = vshrl.u32 %v822, 7
      %v824 = vsub.s32 4, %v823
      %v825 = vrot.slane %v609, %v824
      %v826 = vmul.f32 %v602, %v825
      %v827 = vmul.f32 %v607, %v825
      %v828 = vmul.f32 %v825, 0.0
      %v832 = vrot.slane %v826, 4
      %v833 = vrot.slane %v827, 4
      %v834 = vsel %vm687, %v832, %v833
      %v835 = vrot.slane %v828, 4
      %v836 = vsel %vm687, %v833, %v835
      %v839 = vadd.f32 %v820, %v834
      %v840 = vadd.f32 %v821, %v836
      %v841 = vlaneseq
      %v842 = vshrl.u32 %v841, 7
      %v843 = vsub.s32 5, %v842
      %v844 = vrot.slane %v609, %v843
      %v845 = vmul.f32 %v602, %v844
      %v846 = vmul.f32 %v607, %v844
      %v847 = vmul.f32 %v844, 0.0
      %v851 = vrot.slane %v845, 5
      %v852 = vrot.slane %v846, 5
      %v853 = vsel %vm707, %v851, %v852
      %v854 = vrot.slane %v847, 5
      %v855 = vsel %vm707, %v852, %v854
      %v858 = vadd.f32 %v839, %v853
      %v859 = vadd.f32 %v840, %v855
      %v860 = vlaneseq
      %v861 = vshrl.u32 %v860, 7
      %v862 = vsub.s32 6, %v861
      %v863 = vrot.slane %v609, %v862
      %v864 = vmul.f32 %v602, %v863
      %v865 = vmul.f32 %v607, %v863
      %v866 = vmul.f32 %v863, 0.0
      %v870 = vrot.slane %v864, 6
      %v871 = vrot.slane %v865, 6
      %v872 = vsel %vm727, %v870, %v871
      %v873 = vrot.slane %v866, 6
      %v874 = vsel %vm727, %v871, %v873
      %v877 = vadd.f32 %v858, %v872
      %v878 = vadd.f32 %v859, %v874
      %v879 = vld [vmem:[%s6] sm:$0x1]
      %v881 = vlaneseq
      %v882 = vshrl.u32 %v881, 7
      %v883 = vsub.s32 0, %v882
      %v884 = vrot.slane %v879, %v883
      %v886 = vadd.f32 %v877, %v884
      %v887 = vadd.f32 %v878, %v884
      %v888 = vld [vmem:[%s7] sm:$0x1]
      %v890 = vlaneseq
      %v891 = vshrl.u32 %v890, 7
      %v892 = vsub.s32 0, %v891
      %v893 = vrot.slane %v888, %v892
      %v895 = vmul.f32 %v886, %v893
      %v896 = vmul.f32 %v887, %v893
      %v897 = vld [vmem:[%s8] sm:$0x1]
      %v899 = vlaneseq
      %v900 = vshrl.u32 %v899, 7
      %v901 = vsub.s32 0, %v900
      %v902 = vrot.slane %v897, %v901
      %v904 = vadd.f32 %v895, %v902
      %v905 = vadd.f32 %v896, %v902
      %v906 = vsub.f32 0.0, %v904
      %v907 = vsub.f32 0.0, %v905
      %v908 = vmul.f32 %v906, 1.442695
      %v909 = vpow.pop %v908
      %v910 = vmul.f32 %v907, 1.442695
      %v911 = vpow.pop %v910
      %v912 = vadd.f32 %v909, 1.0
      %v913 = vadd.f32 %v911, 1.0
      %v914 = vrcp.pop %v912
      %v915 = vmul.f32 1.0, %v914
      %v916 = vrcp.pop %v913
      %v917 = vmul.f32 1.0, %v916
      %v918 = vmul.f32 %v904, %v915
      %v919 = vmul.f32 %v905, %v917
      %v920 = vld [vmem:[%s9] sm:$0xf]
      %v921 = vld [vmem:[%s9 + $0x4] sm:$0xf]
      %v922 = vld [vmem:[%s9 + $0x8] sm:$0xf]
      %v923 = vld [vmem:[%s9 + $0xc] sm:$0xf]
      %v924 = vld [vmem:[%s9 + $0x10] sm:$0xf]
      %v925 = vld [vmem:[%s9 + $0x14] sm:$0xf]
      %v926 = vld [vmem:[%s9 + $0x18] sm:$0xf]
      %v927 = vld [vmem:[%s9 + $0x1c] sm:$0xf]
      %v928 = vld [vmem:[%s9 + $0x20] sm:$0xf]
      %v929 = vld [vmem:[%s9 + $0x24] sm:$0xf]
      %v930 = vld [vmem:[%s9 + $0x28] sm:$0xf]
      %v931 = vld [vmem:[%s9 + $0x2c] sm:$0xf]
      %v932 = vld [vmem:[%s9 + $0x30] sm:$0xf]
      %v933 = vld [vmem:[%s9 + $0x34] sm:$0xf]
      %v934 = vld [vmem:[%s9 + $0x38] sm:$0xf]
      %v935 = vld [vmem:[%s9 + $0x3c] sm:$0xf]
      %v936 = vpack.c.bf16 %v919, %v918
      %v937 = vld [vmem:[%s10] sm:$0x1]
      %v939 = vlaneseq
      %v940 = vshrl.u32 %v939, 7
      %v941 = vsub.s32 0, %v940
      %v942 = vrot.slane %v937, %v941
      %v960 = vunpack.c.l.b16 %v920
      %v961 = vunpack.c.l.b16 %v921
      %v962 = vunpack.c.l.b16 %v922
      %v963 = vunpack.c.l.b16 %v923
      %v964 = vunpack.c.l.b16 %v924
      %v965 = vunpack.c.l.b16 %v925
      %v966 = vunpack.c.l.b16 %v926
      %v967 = vunpack.c.l.b16 %v927
      %v968 = vunpack.c.l.b16 %v928
      %v969 = vunpack.c.l.b16 %v929
      %v970 = vunpack.c.l.b16 %v930
      %v971 = vunpack.c.l.b16 %v931
      %v972 = vunpack.c.l.b16 %v932
      %v973 = vunpack.c.l.b16 %v933
      %v974 = vunpack.c.l.b16 %v934
      %v975 = vunpack.c.l.b16 %v935
      %v976 = vpack.c.b16 %v961, %v960
      %v977 = vpack.c.b16 %v963, %v962
      %v978 = vpack.c.b16 %v965, %v964
      %v979 = vpack.c.b16 %v967, %v966
      %v980 = vpack.c.b16 %v969, %v968
      %v981 = vpack.c.b16 %v971, %v970
      %v982 = vpack.c.b16 %v973, %v972
      %v983 = vpack.c.b16 %v975, %v974
      %992 = vmatprep.subr.bf16.mxu0 0
      %993 = vmatpush1.bf16.msra.mxu0 %v983
      %994 = vmatprep.subr.bf16.mxu0 0
      %995 = vmatpush1.bf16.msra.mxu0 %v982
      %996 = vmatprep.subr.bf16.mxu0 0
      %997 = vmatpush1.bf16.msra.mxu0 %v981
      %998 = vmatprep.subr.bf16.mxu0 0
      %999 = vmatpush1.bf16.msra.mxu0 %v980
      %1000 = vmatprep.subr.bf16.mxu0 0
      %1001 = vmatpush1.bf16.msra.mxu0 %v979
      %1002 = vmatprep.subr.bf16.mxu0 0
      %1003 = vmatpush1.bf16.msra.mxu0 %v978
      %1004 = vmatprep.subr.bf16.mxu0 0
      %1005 = vmatpush1.bf16.msra.mxu0 %v977
      %1006 = vmatprep.subr.bf16.mxu0 0
      %1007 = vmatpush1.bf16.msra.mxu0 %v976
      %1008 = vmatprep.subr.bf16.mxu0 0
      %1009 = vmatpush2.bf16.msra.mxu0 0
      %1010 = vmatprep.subr.bf16.mxu0 0
      %1011 = vmatpush2.bf16.msra.mxu0 0
      %1012 = vmatprep.subr.bf16.mxu0 0
      %1013 = vmatpush2.bf16.msra.mxu0 0
      %1014 = vmatprep.subr.bf16.mxu0 0
      %1015 = vmatpush2.bf16.msra.mxu0 0
      %1016 = vmatprep.subr.bf16.mxu0 0
      %1017 = vmatpush2.bf16.msra.mxu0 0
      %1018 = vmatprep.subr.bf16.mxu0 0
      %1019 = vmatpush2.bf16.msra.mxu0 0
      %1020 = vmatprep.subr.bf16.mxu0 0
      %1021 = vmatpush2.bf16.msra.mxu0 0
      %1022 = vmatprep.subr.bf16.mxu0 0
      %1023 = vmatpush2.bf16.msra.mxu0 0
      %1024 = vmatprep.mubr.bf16.mxu0 0
      %1025 = vmatmul.mubr.bf16.gmra.mxu0 %v936
      %v1026 = vpop.f32.mrf.mxu0
      %v1027 = vadd.f32 %v942, %v1026
      %v1028 = vpop.f32.mrf.mxu0
      %v1029 = vpop.f32.mrf.mxu0
      %v1030 = vadd.f32 %v942, %v1029
      %v1031 = vpop.f32.mrf.mxu0
      %1032 = vdwg.mxu0
      %v1033 = vadd.f32 %v388, %v1027
      %v1034 = vadd.f32 %v389, %v1030
      %1035 = vst [vmem:[%s386] sm:$0xff] %v1033
      %1036 = vst [vmem:[%s386 + $0x8] sm:$0xff] %v1034
      %p1037 = scmp.lt.s32.totalorder %s22, 1
      %s1038 = scalar_select %p1037, %s22, 1
      %s1039 = smul.addr %s1038, 2
      %s1040 = smul.addr %s1039, 8
      %s1041 = scalar_lea.vmem %s11, %s1040
      // Predicated region
      $region65: #{closed_call.15} parent=63 // pred_check
        %p1042 = pneg %p276
      $region66: #{closed_call.15} parent=63 // pred_check_branch
        %1044 = sbr.rel (%p1042) target = $region68
      $region67: #{closed_call.15} parent=63 // pred_region
        _
      $region68: #{closed_call.15} parent=63 // pred_fallthru
        _
    $region64: #{closed_call.15} parent=5 // pred_fallthru
      _
    %p1045 = scmp.le.s32.totalorder 2, %s17
    // Predicated region
    $region69: #{closed_call.15} parent=5 // pred_check
      %p1046 = pneg %p1045
    $region70: #{closed_call.15} parent=5 // pred_check_branch
      %1048 = sbr.rel (%p1046) target = $region72
    $region71: #{closed_call.15} parent=5 // pred_region
      %s1049 = ssub.s32 %s17, 2
      // Predicated region
      $region73: #{closed_call.15} parent=71 // pred_check
        %p1050 = pneg %p282
      $region74: #{closed_call.15} parent=71 // pred_check_branch
        %1052 = sbr.rel (%p1050) target = $region76
      $region75: #{closed_call.15} parent=71 // pred_region
        %p1053 = scmp.lt.s32.totalorder %s23, 1
        %s1054 = scalar_select %p1053, %s23, 1
        %s1055 = smul.addr %s1054, 2
        %s1056 = smul.addr %s1055, 8
        %s1057 = scalar_lea.vmem %s11, %s1056
      $region76: #{closed_call.15} parent=71 // pred_fallthru
        _
    $region72: #{closed_call.15} parent=5 // pred_fallthru
      _
  $region6: #{closed_call.15} parent=0 // loop_footer
    %s21 = sadd.s32 1, %s17
  $region7: #{closed_call.15} parent=0 // loop_footer_branch
    %16 = sbr.rel target = $region3
  $region8: #{closed_call.15} parent=0 // loop_exit
    _

// kernel: closed_call.16
$region0: #{closed_call.16}
  #allocation0 [shape = 'u32[]', space=smem, size = 0x4, offset = 0x4, fixed_abs, tag = 'smem constant byte address 0x4 - core index']
  #allocation1 [shape = 'u32[144,128]{1,0:T(1,128)}', space=vmem, size = 0x12000, scoped, tag = 'internal scratch']
  %s0 = inlined_call_operand.vmem [shape: f32[32,128], index: 0, kind: input, shape index: {}]
  %s1 = inlined_call_operand.vmem [shape: f32[1,128], index: 1, kind: input, shape index: {}]
  %s2 = inlined_call_operand.vmem [shape: f32[1,128], index: 2, kind: input, shape index: {}]
  %s3 = inlined_call_operand.vmem [shape: bf16[128,256], index: 3, kind: input, shape index: {}]
  %s4 = inlined_call_operand.vmem [shape: f32[1,256], index: 4, kind: input, shape index: {}]
  %s5 = inlined_call_operand.vmem [shape: bf16[256,128], index: 5, kind: input, shape index: {}]
  %s6 = inlined_call_operand.vmem [shape: f32[1,128], index: 6, kind: input, shape index: {}]
  %s7 = inlined_call_operand.vmem [shape: f32[1,128], index: 7, kind: input, shape index: {}]
  %s8 = inlined_call_operand.vmem [shape: f32[1,128], index: 8, kind: input, shape index: {}]
  %s9 = inlined_call_operand.vmem [shape: f32[32,128], index: 9, kind: output, shape index: {}]
  %s10 = sld [smem:[#allocation0]]
  $region46: #{closed_call.16} parent=0
    _
  %s12 = ssub.s32 1, %s10
  %s13 = scalar_select 0, %s12, %s10
  // Predicated region
  $region2: #{closed_call.16} parent=0 // pred_check
    _
  $region3: #{closed_call.16} parent=0 // pred_check_branch
    %15 = sbr.rel (0) target = $region5
  $region4: #{closed_call.16} parent=0 // pred_region
    _
  $region5: #{closed_call.16} parent=0 // pred_fallthru
    _
  // Predicated region
  $region6: #{closed_call.16} parent=0 // pred_check
    _
  $region7: #{closed_call.16} parent=0 // pred_check_branch
    %17 = sbr.rel (0) target = $region9
  $region8: #{closed_call.16} parent=0 // pred_region
    _
  $region9: #{closed_call.16} parent=0 // pred_fallthru
    _
  // Predicated region
  $region10: #{closed_call.16} parent=0 // pred_check
    _
  $region11: #{closed_call.16} parent=0 // pred_check_branch
    %19 = sbr.rel (0) target = $region13
  $region12: #{closed_call.16} parent=0 // pred_region
    _
  $region13: #{closed_call.16} parent=0 // pred_fallthru
    _
  // Predicated region
  $region14: #{closed_call.16} parent=0 // pred_check
    _
  $region15: #{closed_call.16} parent=0 // pred_check_branch
    %21 = sbr.rel (0) target = $region17
  $region16: #{closed_call.16} parent=0 // pred_region
    _
  $region17: #{closed_call.16} parent=0 // pred_fallthru
    _
  // Predicated region
  $region18: #{closed_call.16} parent=0 // pred_check
    _
  $region19: #{closed_call.16} parent=0 // pred_check_branch
    %23 = sbr.rel (0) target = $region21
  $region20: #{closed_call.16} parent=0 // pred_region
    _
  $region21: #{closed_call.16} parent=0 // pred_fallthru
    _
  // Predicated region
  $region22: #{closed_call.16} parent=0 // pred_check
    _
  $region23: #{closed_call.16} parent=0 // pred_check_branch
    %25 = sbr.rel (0) target = $region25
  $region24: #{closed_call.16} parent=0 // pred_region
    _
  $region25: #{closed_call.16} parent=0 // pred_fallthru
    _
  // Predicated region
  $region26: #{closed_call.16} parent=0 // pred_check
    _
  $region27: #{closed_call.16} parent=0 // pred_check_branch
    %27 = sbr.rel (0) target = $region29
  $region28: #{closed_call.16} parent=0 // pred_region
    _
  $region29: #{closed_call.16} parent=0 // pred_fallthru
    _
  // Predicated region
  $region30: #{closed_call.16} parent=0 // pred_check
    _
  $region31: #{closed_call.16} parent=0 // pred_check_branch
    %29 = sbr.rel (0) target = $region33
  $region32: #{closed_call.16} parent=0 // pred_region
    _
  $region33: #{closed_call.16} parent=0 // pred_fallthru
    _
  // Predicated region
  $region34: #{closed_call.16} parent=0 // pred_check
    _
  $region35: #{closed_call.16} parent=0 // pred_check_branch
    %31 = sbr.rel (0) target = $region37
  $region36: #{closed_call.16} parent=0 // pred_region
    _
  $region37: #{closed_call.16} parent=0 // pred_fallthru
    _
  %v33 = vld [vmem:[%s0] sm:$0xff]
  %v34 = vld [vmem:[%s0 + $0x8] sm:$0xff]
  %v35 = vld [vmem:[%s0 + $0x10] sm:$0xff]
  %v36 = vld [vmem:[%s0 + $0x18] sm:$0xff]
  %v37 = vld [vmem:[%s1] sm:$0x1]
  %v38 = vld [vmem:[%s2] sm:$0x1]
  %39 = vadd.xlane.f32.xlu0 %v33
  %v40 = vpop.xlane.xlu0 %39
  %41 = vadd.xlane.f32.xlu0 %v34
  %v42 = vpop.xlane.xlu0 %41
  %43 = vadd.xlane.f32.xlu0 %v35
  %v44 = vpop.xlane.xlu0 %43
  %45 = vadd.xlane.f32.xlu0 %v36
  %v46 = vpop.xlane.xlu0 %45
  %v47 = vrcp.pop 128.0
  %v48 = vmul.f32 %v40, %v47
  %v49 = vmul.f32 %v42, %v47
  %v50 = vmul.f32 %v44, %v47
  %v51 = vmul.f32 %v46, %v47
  %v52 = vsub.f32 %v33, %v48
  %v53 = vsub.f32 %v34, %v49
  %v54 = vsub.f32 %v35, %v50
  %v55 = vsub.f32 %v36, %v51
  %v56 = vmul.f32 %v52, %v52
  %v57 = vmul.f32 %v53, %v53
  %v58 = vmul.f32 %v54, %v54
  %v59 = vmul.f32 %v55, %v55
  %60 = vadd.xlane.f32.xlu0 %v56
  %v61 = vpop.xlane.xlu0 %60
  %62 = vadd.xlane.f32.xlu0 %v57
  %v63 = vpop.xlane.xlu0 %62
  %64 = vadd.xlane.f32.xlu0 %v58
  %v65 = vpop.xlane.xlu0 %64
  %66 = vadd.xlane.f32.xlu0 %v59
  %v67 = vpop.xlane.xlu0 %66
  %v68 = vmul.f32 %v61, %v47
  %v69 = vmul.f32 %v63, %v47
  %v70 = vmul.f32 %v65, %v47
  %v71 = vmul.f32 %v67, %v47
  %v72 = vadd.f32 %v68, 1e-05
  %v73 = vadd.f32 %v69, 1e-05
  %v74 = vadd.f32 %v70, 1e-05
  %v75 = vadd.f32 %v71, 1e-05
  %v76 = vrsqrt.pop %v72
  %v77 = vrsqrt.pop %v73
  %v78 = vrsqrt.pop %v74
  %v79 = vrsqrt.pop %v75
  %v80 = vmul.f32 %v52, %v76
  %v81 = vmul.f32 %v53, %v77
  %v82 = vmul.f32 %v54, %v78
  %v83 = vmul.f32 %v55, %v79
  %v85 = vlaneseq
  %v86 = vshrl.u32 %v85, 7
  %v87 = vsub.s32 0, %v86
  %v88 = vrot.slane %v37, %v87
  %v90 = vmul.f32 %v80, %v88
  %v91 = vmul.f32 %v81, %v88
  %v92 = vmul.f32 %v82, %v88
  %v93 = vmul.f32 %v83, %v88
  %v95 = vlaneseq
  %v96 = vshrl.u32 %v95, 7
  %v97 = vsub.s32 0, %v96
  %v98 = vrot.slane %v38, %v97
  %v100 = vadd.f32 %v90, %v98
  %v101 = vadd.f32 %v91, %v98
  %v102 = vadd.f32 %v92, %v98
  %v103 = vadd.f32 %v93, %v98
  %v104 = vld [vmem:[%s3] sm:$0xff]
  %v105 = vld [vmem:[%s3 + $0x8] sm:$0xff]
  %v106 = vld [vmem:[%s3 + $0x10] sm:$0xff]
  %v107 = vld [vmem:[%s3 + $0x18] sm:$0xff]
  %v108 = vld [vmem:[%s3 + $0x20] sm:$0xff]
  %v109 = vld [vmem:[%s3 + $0x28] sm:$0xff]
  %v110 = vld [vmem:[%s3 + $0x30] sm:$0xff]
  %v111 = vld [vmem:[%s3 + $0x38] sm:$0xff]
  %v112 = vld [vmem:[%s3 + $0x40] sm:$0xff]
  %v113 = vld [vmem:[%s3 + $0x48] sm:$0xff]
  %v114 = vld [vmem:[%s3 + $0x50] sm:$0xff]
  %v115 = vld [vmem:[%s3 + $0x58] sm:$0xff]
  %v116 = vld [vmem:[%s3 + $0x60] sm:$0xff]
  %v117 = vld [vmem:[%s3 + $0x68] sm:$0xff]
  %v118 = vld [vmem:[%s3 + $0x70] sm:$0xff]
  %v119 = vld [vmem:[%s3 + $0x78] sm:$0xff]
  %v120 = vpack.c.bf16 %v101, %v100
  %v121 = vpack.c.bf16 %v103, %v102
  %v122 = vld [vmem:[%s4] sm:$0x3]
  %v124 = vlaneseq
  %v125 = vshrl.u32 %v124, 7
  %v126 = vsub.s32 0, %v125
  %v127 = vrot.slane %v122, %v126
  %v128 = vlaneseq
  %v129 = vshrl.u32 %v128, 7
  %v130 = vsub.s32 1, %v129
  %v131 = vrot.slane %v122, %v130
  %v150 = vunpack.c.l.b16 %v104
  %v151 = vunpack.c.h.b16 %v104
  %v152 = vunpack.c.l.b16 %v105
  %v153 = vunpack.c.h.b16 %v105
  %v154 = vunpack.c.l.b16 %v106
  %v155 = vunpack.c.h.b16 %v106
  %v156 = vunpack.c.l.b16 %v107
  %v157 = vunpack.c.h.b16 %v107
  %v158 = vunpack.c.l.b16 %v108
  %v159 = vunpack.c.h.b16 %v108
  %v160 = vunpack.c.l.b16 %v109
  %v161 = vunpack.c.h.b16 %v109
  %v162 = vunpack.c.l.b16 %v110
  %v163 = vunpack.c.h.b16 %v110
  %v164 = vunpack.c.l.b16 %v111
  %v165 = vunpack.c.h.b16 %v111
  %v166 = vunpack.c.l.b16 %v112
  %v167 = vunpack.c.h.b16 %v112
  %v168 = vunpack.c.l.b16 %v113
  %v169 = vunpack.c.h.b16 %v113
  %v170 = vunpack.c.l.b16 %v114
  %v171 = vunpack.c.h.b16 %v114
  %v172 = vunpack.c.l.b16 %v115
  %v173 = vunpack.c.h.b16 %v115
  %v174 = vunpack.c.l.b16 %v116
  %v175 = vunpack.c.h.b16 %v116
  %v176 = vunpack.c.l.b16 %v117
  %v177 = vunpack.c.h.b16 %v117
  %v178 = vunpack.c.l.b16 %v118
  %v179 = vunpack.c.h.b16 %v118
  %v180 = vunpack.c.l.b16 %v119
  %v181 = vunpack.c.h.b16 %v119
  %v182 = vpack.c.b16 %v152, %v150
  %v183 = vpack.c.b16 %v153, %v151
  %v184 = vpack.c.b16 %v156, %v154
  %v185 = vpack.c.b16 %v157, %v155
  %v186 = vpack.c.b16 %v160, %v158
  %v187 = vpack.c.b16 %v161, %v159
  %v188 = vpack.c.b16 %v164, %v162
  %v189 = vpack.c.b16 %v165, %v163
  %v190 = vpack.c.b16 %v168, %v166
  %v191 = vpack.c.b16 %v169, %v167
  %v192 = vpack.c.b16 %v172, %v170
  %v193 = vpack.c.b16 %v173, %v171
  %v194 = vpack.c.b16 %v176, %v174
  %v195 = vpack.c.b16 %v177, %v175
  %v196 = vpack.c.b16 %v180, %v178
  %v197 = vpack.c.b16 %v181, %v179
  %214 = vmatprep.subr.bf16.mxu0 %v197
  %215 = vmatpush1.bf16.msra.mxu0 %v196
  %216 = vmatprep.subr.bf16.mxu0 %v195
  %217 = vmatpush1.bf16.msra.mxu0 %v194
  %218 = vmatprep.subr.bf16.mxu0 %v193
  %219 = vmatpush1.bf16.msra.mxu0 %v192
  %220 = vmatprep.subr.bf16.mxu0 %v191
  %221 = vmatpush1.bf16.msra.mxu0 %v190
  %222 = vmatprep.subr.bf16.mxu0 %v189
  %223 = vmatpush1.bf16.msra.mxu0 %v188
  %224 = vmatprep.subr.bf16.mxu0 %v187
  %225 = vmatpush1.bf16.msra.mxu0 %v186
  %226 = vmatprep.subr.bf16.mxu0 %v185
  %227 = vmatpush1.bf16.msra.mxu0 %v184
  %228 = vmatprep.subr.bf16.mxu0 %v183
  %229 = vmatpush1.bf16.msra.mxu0 %v182
  %230 = vmatprep.subr.bf16.mxu0 0
  %231 = vmatpush2.bf16.msra.mxu0 0
  %232 = vmatprep.subr.bf16.mxu0 0
  %233 = vmatpush2.bf16.msra.mxu0 0
  %234 = vmatprep.subr.bf16.mxu0 0
  %235 = vmatpush2.bf16.msra.mxu0 0
  %236 = vmatprep.subr.bf16.mxu0 0
  %237 = vmatpush2.bf16.msra.mxu0 0
  %238 = vmatprep.subr.bf16.mxu0 0
  %239 = vmatpush2.bf16.msra.mxu0 0
  %240 = vmatprep.subr.bf16.mxu0 0
  %241 = vmatpush2.bf16.msra.mxu0 0
  %242 = vmatprep.subr.bf16.mxu0 0
  %243 = vmatpush2.bf16.msra.mxu0 0
  %244 = vmatprep.subr.bf16.mxu0 0
  %245 = vmatpush2.bf16.msra.mxu0 0
  %246 = vmatprep.mubr.bf16.mxu0 0
  %247 = vmatmul.mubr.bf16.gmra.mxu0 %v120
  %v248 = vpop.f32.mrf.mxu0
  %v249 = vadd.f32 %v127, %v248
  %v250 = vpop.f32.mrf.mxu0
  %v251 = vadd.f32 %v131, %v250
  %v252 = vpop.f32.mrf.mxu0
  %v253 = vadd.f32 %v127, %v252
  %v254 = vpop.f32.mrf.mxu0
  %v255 = vadd.f32 %v131, %v254
  %256 = vmatprep.mubr.bf16.mxu0 0
  %257 = vmatmul.mubr.bf16.gmra.mxu0 %v121
  %v258 = vpop.f32.mrf.mxu0
  %v259 = vadd.f32 %v127, %v258
  %v260 = vpop.f32.mrf.mxu0
  %v261 = vadd.f32 %v131, %v260
  %v262 = vpop.f32.mrf.mxu0
  %v263 = vadd.f32 %v127, %v262
  %v264 = vpop.f32.mrf.mxu0
  %v265 = vadd.f32 %v131, %v264
  %266 = vdwg.mxu0
  %v267 = vsub.f32 0.0, %v249
  %v268 = vsub.f32 0.0, %v251
  %v269 = vsub.f32 0.0, %v253
  %v270 = vsub.f32 0.0, %v255
  %v271 = vsub.f32 0.0, %v259
  %v272 = vsub.f32 0.0, %v261
  %v273 = vsub.f32 0.0, %v263
  %v274 = vsub.f32 0.0, %v265
  %v275 = vmul.f32 %v267, 1.442695
  %v276 = vpow.pop %v275
  %v277 = vmul.f32 %v268, 1.442695
  %v278 = vpow.pop %v277
  %v279 = vmul.f32 %v269, 1.442695
  %v280 = vpow.pop %v279
  %v281 = vmul.f32 %v270, 1.442695
  %v282 = vpow.pop %v281
  %v283 = vmul.f32 %v271, 1.442695
  %v284 = vpow.pop %v283
  %v285 = vmul.f32 %v272, 1.442695
  %v286 = vpow.pop %v285
  %v287 = vmul.f32 %v273, 1.442695
  %v288 = vpow.pop %v287
  %v289 = vmul.f32 %v274, 1.442695
  %v290 = vpow.pop %v289
  %v291 = vadd.f32 %v276, 1.0
  %v292 = vadd.f32 %v278, 1.0
  %v293 = vadd.f32 %v280, 1.0
  %v294 = vadd.f32 %v282, 1.0
  %v295 = vadd.f32 %v284, 1.0
  %v296 = vadd.f32 %v286, 1.0
  %v297 = vadd.f32 %v288, 1.0
  %v298 = vadd.f32 %v290, 1.0
  %v299 = vrcp.pop %v291
  %v300 = vmul.f32 1.0, %v299
  %v301 = vrcp.pop %v292
  %v302 = vmul.f32 1.0, %v301
  %v303 = vrcp.pop %v293
  %v304 = vmul.f32 1.0, %v303
  %v305 = vrcp.pop %v294
  %v306 = vmul.f32 1.0, %v305
  %v307 = vrcp.pop %v295
  %v308 = vmul.f32 1.0, %v307
  %v309 = vrcp.pop %v296
  %v310 = vmul.f32 1.0, %v309
  %v311 = vrcp.pop %v297
  %v312 = vmul.f32 1.0, %v311
  %v313 = vrcp.pop %v298
  %v314 = vmul.f32 1.0, %v313
  %v315 = vmul.f32 %v249, %v300
  %v316 = vmul.f32 %v251, %v302
  %v317 = vmul.f32 %v253, %v304
  %v318 = vmul.f32 %v255, %v306
  %v319 = vmul.f32 %v259, %v308
  %v320 = vmul.f32 %v261, %v310
  %v321 = vmul.f32 %v263, %v312
  %v322 = vmul.f32 %v265, %v314
  %v323 = vld [vmem:[%s5] sm:$0xf]
  %v324 = vld [vmem:[%s5 + $0x4] sm:$0xf]
  %v325 = vld [vmem:[%s5 + $0x8] sm:$0xf]
  %v326 = vld [vmem:[%s5 + $0xc] sm:$0xf]
  %v327 = vld [vmem:[%s5 + $0x10] sm:$0xf]
  %v328 = vld [vmem:[%s5 + $0x14] sm:$0xf]
  %v329 = vld [vmem:[%s5 + $0x18] sm:$0xf]
  %v330 = vld [vmem:[%s5 + $0x1c] sm:$0xf]
  %v331 = vld [vmem:[%s5 + $0x20] sm:$0xf]
  %v332 = vld [vmem:[%s5 + $0x24] sm:$0xf]
  %v333 = vld [vmem:[%s5 + $0x28] sm:$0xf]
  %v334 = vld [vmem:[%s5 + $0x2c] sm:$0xf]
  %v335 = vld [vmem:[%s5 + $0x30] sm:$0xf]
  %v336 = vld [vmem:[%s5 + $0x34] sm:$0xf]
  %v337 = vld [vmem:[%s5 + $0x38] sm:$0xf]
  %v338 = vld [vmem:[%s5 + $0x3c] sm:$0xf]
  %v339 = vld [vmem:[%s5 + $0x40] sm:$0xf]
  %v340 = vld [vmem:[%s5 + $0x44] sm:$0xf]
  %v341 = vld [vmem:[%s5 + $0x48] sm:$0xf]
  %v342 = vld [vmem:[%s5 + $0x4c] sm:$0xf]
  %v343 = vld [vmem:[%s5 + $0x50] sm:$0xf]
  %v344 = vld [vmem:[%s5 + $0x54] sm:$0xf]
  %v345 = vld [vmem:[%s5 + $0x58] sm:$0xf]
  %v346 = vld [vmem:[%s5 + $0x5c] sm:$0xf]
  %v347 = vld [vmem:[%s5 + $0x60] sm:$0xf]
  %v348 = vld [vmem:[%s5 + $0x64] sm:$0xf]
  %v349 = vld [vmem:[%s5 + $0x68] sm:$0xf]
  %v350 = vld [vmem:[%s5 + $0x6c] sm:$0xf]
  %v351 = vld [vmem:[%s5 + $0x70] sm:$0xf]
  %v352 = vld [vmem:[%s5 + $0x74] sm:$0xf]
  %v353 = vld [vmem:[%s5 + $0x78] sm:$0xf]
  %v354 = vld [vmem:[%s5 + $0x7c] sm:$0xf]
  %v355 = vpack.c.bf16 %v317, %v315
  %v356 = vpack.c.bf16 %v318, %v316
  %v357 = vpack.c.bf16 %v321, %v319
  %v358 = vpack.c.bf16 %v322, %v320
  %v359 = vld [vmem:[%s6] sm:$0x1]
  %v361 = vlaneseq
  %v362 = vshrl.u32 %v361, 7
  %v363 = vsub.s32 0, %v362
  %v364 = vrot.slane %v359, %v363
  %v398 = vunpack.c.l.b16 %v323
  %v399 = vunpack.c.l.b16 %v324
  %v400 = vunpack.c.l.b16 %v325
  %v401 = vunpack.c.l.b16 %v326
  %v402 = vunpack.c.l.b16 %v327
  %v403 = vunpack.c.l.b16 %v328
  %v404 = vunpack.c.l.b16 %v329
  %v405 = vunpack.c.l.b16 %v330
  %v406 = vunpack.c.l.b16 %v331
  %v407 = vunpack.c.l.b16 %v332
  %v408 = vunpack.c.l.b16 %v333
  %v409 = vunpack.c.l.b16 %v334
  %v410 = vunpack.c.l.b16 %v335
  %v411 = vunpack.c.l.b16 %v336
  %v412 = vunpack.c.l.b16 %v337
  %v413 = vunpack.c.l.b16 %v338
  %v414 = vunpack.c.l.b16 %v339
  %v415 = vunpack.c.l.b16 %v340
  %v416 = vunpack.c.l.b16 %v341
  %v417 = vunpack.c.l.b16 %v342
  %v418 = vunpack.c.l.b16 %v343
  %v419 = vunpack.c.l.b16 %v344
  %v420 = vunpack.c.l.b16 %v345
  %v421 = vunpack.c.l.b16 %v346
  %v422 = vunpack.c.l.b16 %v347
  %v423 = vunpack.c.l.b16 %v348
  %v424 = vunpack.c.l.b16 %v349
  %v425 = vunpack.c.l.b16 %v350
  %v426 = vunpack.c.l.b16 %v351
  %v427 = vunpack.c.l.b16 %v352
  %v428 = vunpack.c.l.b16 %v353
  %v429 = vunpack.c.l.b16 %v354
  %v430 = vpack.c.b16 %v399, %v398
  %v431 = vpack.c.b16 %v401, %v400
  %v432 = vpack.c.b16 %v403, %v402
  %v433 = vpack.c.b16 %v405, %v404
  %v434 = vpack.c.b16 %v407, %v406
  %v435 = vpack.c.b16 %v409, %v408
  %v436 = vpack.c.b16 %v411, %v410
  %v437 = vpack.c.b16 %v413, %v412
  %v438 = vpack.c.b16 %v415, %v414
  %v439 = vpack.c.b16 %v417, %v416
  %v440 = vpack.c.b16 %v419, %v418
  %v441 = vpack.c.b16 %v421, %v420
  %v442 = vpack.c.b16 %v423, %v422
  %v443 = vpack.c.b16 %v425, %v424
  %v444 = vpack.c.b16 %v427, %v426
  %v445 = vpack.c.b16 %v429, %v428
  %462 = vmatprep.subr.bf16.mxu0 0
  %463 = vmatpush1.bf16.msra.mxu0 %v437
  %464 = vmatprep.subr.bf16.mxu0 0
  %465 = vmatpush1.bf16.msra.mxu0 %v436
  %466 = vmatprep.subr.bf16.mxu0 0
  %467 = vmatpush1.bf16.msra.mxu0 %v435
  %468 = vmatprep.subr.bf16.mxu0 0
  %469 = vmatpush1.bf16.msra.mxu0 %v434
  %470 = vmatprep.subr.bf16.mxu0 0
  %471 = vmatpush1.bf16.msra.mxu0 %v433
  %472 = vmatprep.subr.bf16.mxu0 0
  %473 = vmatpush1.bf16.msra.mxu0 %v432
  %474 = vmatprep.subr.bf16.mxu0 0
  %475 = vmatpush1.bf16.msra.mxu0 %v431
  %476 = vmatprep.subr.bf16.mxu0 0
  %477 = vmatpush1.bf16.msra.mxu0 %v430
  %478 = vmatprep.subr.bf16.mxu0 0
  %479 = vmatpush2.bf16.msra.mxu0 %v445
  %480 = vmatprep.subr.bf16.mxu0 0
  %481 = vmatpush2.bf16.msra.mxu0 %v444
  %482 = vmatprep.subr.bf16.mxu0 0
  %483 = vmatpush2.bf16.msra.mxu0 %v443
  %484 = vmatprep.subr.bf16.mxu0 0
  %485 = vmatpush2.bf16.msra.mxu0 %v442
  %486 = vmatprep.subr.bf16.mxu0 0
  %487 = vmatpush2.bf16.msra.mxu0 %v441
  %488 = vmatprep.subr.bf16.mxu0 0
  %489 = vmatpush2.bf16.msra.mxu0 %v440
  %490 = vmatprep.subr.bf16.mxu0 0
  %491 = vmatpush2.bf16.msra.mxu0 %v439
  %492 = vmatprep.subr.bf16.mxu0 0
  %493 = vmatpush2.bf16.msra.mxu0 %v438
  %494 = vmatprep.mubr.bf16.mxu0 %v356
  %495 = vmatmul.mubr.bf16.gmra.mxu0 %v355
  %v496 = vpop.f32.mrf.mxu0
  %v497 = vadd.f32 %v364, %v496
  %v498 = vpop.f32.mrf.mxu0
  %v499 = vpop.f32.mrf.mxu0
  %v500 = vadd.f32 %v364, %v499
  %v501 = vpop.f32.mrf.mxu0
  %502 = vmatprep.mubr.bf16.mxu0 %v358
  %503 = vmatmul.mubr.bf16.gmra.mxu0 %v357
  %v504 = vpop.f32.mrf.mxu0
  %v505 = vadd.f32 %v364, %v504
  %v506 = vpop.f32.mrf.mxu0
  %v507 = vpop.f32.mrf.mxu0
  %v508 = vadd.f32 %v364, %v507
  %v509 = vpop.f32.mrf.mxu0
  %510 = vdwg.mxu0
  %v511 = vmul.f32 %v497, 0.5
  %v512 = vmul.f32 %v500, 0.5
  %v513 = vmul.f32 %v505, 0.5
  %v514 = vmul.f32 %v508, 0.5
  %v515 = vadd.f32 %v33, %v511
  %v516 = vadd.f32 %v34, %v512
  %v517 = vadd.f32 %v35, %v513
  %v518 = vadd.f32 %v36, %v514
  %v519 = vld [vmem:[%s7] sm:$0x1]
  %v520 = vld [vmem:[%s8] sm:$0x1]
  %521 = vadd.xlane.f32.xlu0 %v515
  %v522 = vpop.xlane.xlu0 %521
  %523 = vadd.xlane.f32.xlu0 %v516
  %v524 = vpop.xlane.xlu0 %523
  %525 = vadd.xlane.f32.xlu0 %v517
  %v526 = vpop.xlane.xlu0 %525
  %527 = vadd.xlane.f32.xlu0 %v518
  %v528 = vpop.xlane.xlu0 %527
  %v529 = vmul.f32 %v522, %v47
  %v530 = vmul.f32 %v524, %v47
  %v531 = vmul.f32 %v526, %v47
  %v532 = vmul.f32 %v528, %v47
  %v533 = vsub.f32 %v515, %v529
  %v534 = vsub.f32 %v516, %v530
  %v535 = vsub.f32 %v517, %v531
  %v536 = vsub.f32 %v518, %v532
  %v537 = vmul.f32 %v533, %v533
  %v538 = vmul.f32 %v534, %v534
  %v539 = vmul.f32 %v535, %v535
  %v540 = vmul.f32 %v536, %v536
  %541 = vadd.xlane.f32.xlu0 %v537
  %v542 = vpop.xlane.xlu0 %541
  %543 = vadd.xlane.f32.xlu0 %v538
  %v544 = vpop.xlane.xlu0 %543
  %545 = vadd.xlane.f32.xlu0 %v539
  %v546 = vpop.xlane.xlu0 %545
  %547 = vadd.xlane.f32.xlu0 %v540
  %v548 = vpop.xlane.xlu0 %547
  %v549 = vmul.f32 %v542, %v47
  %v550 = vmul.f32 %v544, %v47
  %v551 = vmul.f32 %v546, %v47
  %v552 = vmul.f32 %v548, %v47
  %v553 = vadd.f32 %v549, 1e-05
  %v554 = vadd.f32 %v550, 1e-05
  %v555 = vadd.f32 %v551, 1e-05
  %v556 = vadd.f32 %v552, 1e-05
  %v557 = vrsqrt.pop %v553
  %v558 = vrsqrt.pop %v554
  %v559 = vrsqrt.pop %v555
  %v560 = vrsqrt.pop %v556
  %v561 = vmul.f32 %v533, %v557
  %v562 = vmul.f32 %v534, %v558
  %v563 = vmul.f32 %v535, %v559
  %v564 = vmul.f32 %v536, %v560
  %v566 = vlaneseq
  %v567 = vshrl.u32 %v566, 7
  %v568 = vsub.s32 0, %v567
  %v569 = vrot.slane %v519, %v568
  %v571 = vmul.f32 %v561, %v569
  %v572 = vmul.f32 %v562, %v569
  %v573 = vmul.f32 %v563, %v569
  %v574 = vmul.f32 %v564, %v569
  %v576 = vlaneseq
  %v577 = vshrl.u32 %v576, 7
  %v578 = vsub.s32 0, %v577
  %v579 = vrot.slane %v520, %v578
  %v581 = vadd.f32 %v571, %v579
  %v582 = vadd.f32 %v572, %v579
  %v583 = vadd.f32 %v573, %v579
  %v584 = vadd.f32 %v574, %v579
  %585 = vst [vmem:[%s9] sm:$0xff] %v581
  %586 = vst [vmem:[%s9 + $0x8] sm:$0xff] %v582
  %587 = vst [vmem:[%s9 + $0x10] sm:$0xff] %v583
  %588 = vst [vmem:[%s9 + $0x18] sm:$0xff] %v584
  // Predicated region
  $region38: #{closed_call.16} parent=0 // pred_check
    _
  $region39: #{closed_call.16} parent=0 // pred_check_branch
    %590 = sbr.rel (0) target = $region41
  $region40: #{closed_call.16} parent=0 // pred_region
    _
  $region41: #{closed_call.16} parent=0 // pred_fallthru
    _
  // Predicated region
  $region42: #{closed_call.16} parent=0 // pred_check
    _
  $region43: #{closed_call.16} parent=0 // pred_check_branch
    %592 = sbr.rel (0) target = $region45
  $region44: #{closed_call.16} parent=0 // pred_region
    _
  $region45: #{closed_call.16} parent=0 // pred_fallthru
    _

// kernel: model_forward.3
$region0: #{model_forward.3}
  #allocation0 [shape = 'u32[]', space=smem, size = 0x4, offset = 0x4, fixed_abs, tag = 'smem constant byte address 0x4 - core index']
  #allocation1 [shape = 'u32[144,128]{1,0:T(1,128)}', space=vmem, size = 0x12000, scoped, tag = 'internal scratch']
  %s0 = inlined_call_operand.vmem [shape: f32[2,16,128], index: 0, kind: input, shape index: {}]
  %s1 = inlined_call_operand.vmem [shape: f32[1,128], index: 1, kind: input, shape index: {}]
  %s2 = inlined_call_operand.vmem [shape: f32[1,128], index: 2, kind: input, shape index: {}]
  %s3 = inlined_call_operand.vmem [shape: bf16[384,128], index: 3, kind: input, shape index: {}]
  %s4 = inlined_call_operand.vmem [shape: f32[1,128], index: 4, kind: input, shape index: {}]
  %s5 = inlined_call_operand.vmem [shape: bf16[128,128], index: 5, kind: input, shape index: {}]
  %s6 = inlined_call_operand.vmem [shape: f32[1,128], index: 6, kind: input, shape index: {}]
  %s7 = inlined_call_operand.vmem [shape: bf16[256,128], index: 7, kind: input, shape index: {}]
  %s8 = inlined_call_operand.hbm [shape: f32[2,1,128], index: 8, kind: output, shape index: {}]
  %s9 = sld [smem:[#allocation0]]
  $region65: #{model_forward.3} parent=0
    _
  %s11 = ssub.s32 1, %s9
  %s12 = scalar_select 0, %s11, %s9
  $region1: #{model_forward.3} parent=0
    #allocation2 [shape = 'u8[1024]{0}', space=vmem, size = 0x400, scoped, tag = 'output window, operand 0']
    #allocation3 [shape = 's32[2]{0}', space=sflag, size = 0x8, scoped, tag = 'scoped memory for model_forward.3']
    %13 = vsyncpa [#allocation3], 0
    %s14 = scalar_lea.sflag [#allocation3], 1
    %15 = vsyncpa %s14, 0
    loop: start=0, step=1, limit=4
    $region2: #{model_forward.3} parent=1 // loop_pre_header
      _
    $region3: #{model_forward.3} parent=1 // loop_header
      %s17 = sphi 0, %s21
      %p18 = scmp.ge.s32.totalorder %s17, 4
      %s27 = sphi 0, %s29
      %s30 = sphi 0, %s27
      %s31 = sphi 0, %s30
      %s47 = sphi 0, %s31
      %s51 = sphi 0, %s51
      %s53 = sphi 0, %s51
      %s54 = sphi 0, %s53
      %s68 = sphi 0, %s54
      %s72 = sphi 0, %s72
      %s74 = sphi 0, %s72
      %s75 = sphi 0, %s74
      %s89 = sphi 0, %s75
      %s93 = sphi 0, %s93
      %s95 = sphi 0, %s93
      %s96 = sphi 0, %s95
      %s110 = sphi 0, %s96
      %s114 = sphi 0, %s114
      %s116 = sphi 0, %s114
      %s117 = sphi 0, %s116
      %s131 = sphi 0, %s117
      %s135 = sphi 0, %s135
      %s137 = sphi 0, %s135
      %s138 = sphi 0, %s137
      %s152 = sphi 0, %s138
      %s156 = sphi 0, %s156
      %s158 = sphi 0, %s156
      %s159 = sphi 0, %s158
      %s173 = sphi 0, %s159
      %s177 = sphi 0, %s177
      %s179 = sphi 0, %s177
      %s180 = sphi 0, %s179
      %s194 = sphi 0, %s180
      %s200 = sphi 0, %s202
      %s203 = sphi 0, %s200
      %s204 = sphi 0, %s203
      %s220 = sphi 0, %s204
    $region4: #{model_forward.3} parent=1 // loop_header_branch
      %20 = sbr.rel (%p18) target = $region8
    $region5: #{model_forward.3} parent=1 // loop_body
      %s22 = ssub.s32 %s17, 1
      %s23 = ssub.s32 %s17, 2
      %s24 = sadd.s32 %s17, 1
      %s25 = ssub.s32 %s17, %s24
      %p26 = scmp.eq.s32.totalorder %s25, 0
      %s28 = sadd.s32 %s27, 1
      %s29 = scalar_select %p26, %s27, %s28
      %p32 = pneg %p26
      %p33 = scmp.eq.s32.totalorder %s17, 1
      %p34 = por %p32, %p33
      %p35 = scmp.ne.s32.totalorder %s27, %s30
      %p36 = scmp.eq.s32.totalorder %s17, 0
      %p37 = por %p35, %p36
      %p38 = scmp.ne.s32.totalorder %s27, %s30
      %p39 = scmp.eq.s32.totalorder %s22, 1
      %p40 = por %p38, %p39
      %p41 = scmp.ne.s32.totalorder %s30, %s31
      %p42 = scmp.eq.s32.totalorder %s22, 0
      %p43 = por %p41, %p42
      %p44 = scmp.ne.s32.totalorder %s30, %s31
      %p45 = scmp.eq.s32.totalorder %s23, 1
      %p46 = por %p44, %p45
      %p48 = scmp.ne.s32.totalorder %s31, %s47
      %p49 = scmp.eq.s32.totalorder %s23, 0
      %p50 = por %p48, %p49
      %s52 = sadd.s32 %s51, 1
      %p55 = scmp.eq.s32.totalorder %s17, 1
      %p56 = scmp.ne.s32.totalorder %s51, %s53
      %p57 = scmp.eq.s32.totalorder %s17, 0
      %p58 = por %p56, %p57
      %p59 = scmp.ne.s32.totalorder %s51, %s53
      %p60 = scmp.eq.s32.totalorder %s22, 1
      %p61 = por %p59, %p60
      %p62 = scmp.ne.s32.totalorder %s53, %s54
      %p63 = scmp.eq.s32.totalorder %s22, 0
      %p64 = por %p62, %p63
      %p65 = scmp.ne.s32.totalorder %s53, %s54
      %p66 = scmp.eq.s32.totalorder %s23, 1
      %p67 = por %p65, %p66
      %p69 = scmp.ne.s32.totalorder %s54, %s68
      %p70 = scmp.eq.s32.totalorder %s23, 0
      %p71 = por %p69, %p70
      %s73 = sadd.s32 %s72, 1
      %p76 = scmp.eq.s32.totalorder %s17, 1
      %p77 = scmp.ne.s32.totalorder %s72, %s74
      %p78 = scmp.eq.s32.totalorder %s17, 0
      %p79 = por %p77, %p78
      %p80 = scmp.ne.s32.totalorder %s72, %s74
      %p81 = scmp.eq.s32.totalorder %s22, 1
      %p82 = por %p80, %p81
      %p83 = scmp.ne.s32.totalorder %s74, %s75
      %p84 = scmp.eq.s32.totalorder %s22, 0
      %p85 = por %p83, %p84
      %p86 = scmp.ne.s32.totalorder %s74, %s75
      %p87 = scmp.eq.s32.totalorder %s23, 1
      %p88 = por %p86, %p87
      %p90 = scmp.ne.s32.totalorder %s75, %s89
      %p91 = scmp.eq.s32.totalorder %s23, 0
      %p92 = por %p90, %p91
      %s94 = sadd.s32 %s93, 1
      %p97 = scmp.eq.s32.totalorder %s17, 1
      %p98 = scmp.ne.s32.totalorder %s93, %s95
      %p99 = scmp.eq.s32.totalorder %s17, 0
      %p100 = por %p98, %p99
      %p101 = scmp.ne.s32.totalorder %s93, %s95
      %p102 = scmp.eq.s32.totalorder %s22, 1
      %p103 = por %p101, %p102
      %p104 = scmp.ne.s32.totalorder %s95, %s96
      %p105 = scmp.eq.s32.totalorder %s22, 0
      %p106 = por %p104, %p105
      %p107 = scmp.ne.s32.totalorder %s95, %s96
      %p108 = scmp.eq.s32.totalorder %s23, 1
      %p109 = por %p107, %p108
      %p111 = scmp.ne.s32.totalorder %s96, %s110
      %p112 = scmp.eq.s32.totalorder %s23, 0
      %p113 = por %p111, %p112
      %s115 = sadd.s32 %s114, 1
      %p118 = scmp.eq.s32.totalorder %s17, 1
      %p119 = scmp.ne.s32.totalorder %s114, %s116
      %p120 = scmp.eq.s32.totalorder %s17, 0
      %p121 = por %p119, %p120
      %p122 = scmp.ne.s32.totalorder %s114, %s116
      %p123 = scmp.eq.s32.totalorder %s22, 1
      %p124 = por %p122, %p123
      %p125 = scmp.ne.s32.totalorder %s116, %s117
      %p126 = scmp.eq.s32.totalorder %s22, 0
      %p127 = por %p125, %p126
      %p128 = scmp.ne.s32.totalorder %s116, %s117
      %p129 = scmp.eq.s32.totalorder %s23, 1
      %p130 = por %p128, %p129
      %p132 = scmp.ne.s32.totalorder %s117, %s131
      %p133 = scmp.eq.s32.totalorder %s23, 0
      %p134 = por %p132, %p133
      %s136 = sadd.s32 %s135, 1
      %p139 = scmp.eq.s32.totalorder %s17, 1
      %p140 = scmp.ne.s32.totalorder %s135, %s137
      %p141 = scmp.eq.s32.totalorder %s17, 0
      %p142 = por %p140, %p141
      %p143 = scmp.ne.s32.totalorder %s135, %s137
      %p144 = scmp.eq.s32.totalorder %s22, 1
      %p145 = por %p143, %p144
      %p146 = scmp.ne.s32.totalorder %s137, %s138
      %p147 = scmp.eq.s32.totalorder %s22, 0
      %p148 = por %p146, %p147
      %p149 = scmp.ne.s32.totalorder %s137, %s138
      %p150 = scmp.eq.s32.totalorder %s23, 1
      %p151 = por %p149, %p150
      %p153 = scmp.ne.s32.totalorder %s138, %s152
      %p154 = scmp.eq.s32.totalorder %s23, 0
      %p155 = por %p153, %p154
      %s157 = sadd.s32 %s156, 1
      %p160 = scmp.eq.s32.totalorder %s17, 1
      %p161 = scmp.ne.s32.totalorder %s156, %s158
      %p162 = scmp.eq.s32.totalorder %s17, 0
      %p163 = por %p161, %p162
      %p164 = scmp.ne.s32.totalorder %s156, %s158
      %p165 = scmp.eq.s32.totalorder %s22, 1
      %p166 = por %p164, %p165
      %p167 = scmp.ne.s32.totalorder %s158, %s159
      %p168 = scmp.eq.s32.totalorder %s22, 0
      %p169 = por %p167, %p168
      %p170 = scmp.ne.s32.totalorder %s158, %s159
      %p171 = scmp.eq.s32.totalorder %s23, 1
      %p172 = por %p170, %p171
      %p174 = scmp.ne.s32.totalorder %s159, %s173
      %p175 = scmp.eq.s32.totalorder %s23, 0
      %p176 = por %p174, %p175
      %s178 = sadd.s32 %s177, 1
      %p181 = scmp.eq.s32.totalorder %s17, 1
      %p182 = scmp.ne.s32.totalorder %s177, %s179
      %p183 = scmp.eq.s32.totalorder %s17, 0
      %p184 = por %p182, %p183
      %p185 = scmp.ne.s32.totalorder %s177, %s179
      %p186 = scmp.eq.s32.totalorder %s22, 1
      %p187 = por %p185, %p186
      %p188 = scmp.ne.s32.totalorder %s179, %s180
      %p189 = scmp.eq.s32.totalorder %s22, 0
      %p190 = por %p188, %p189
      %p191 = scmp.ne.s32.totalorder %s179, %s180
      %p192 = scmp.eq.s32.totalorder %s23, 1
      %p193 = por %p191, %p192
      %p195 = scmp.ne.s32.totalorder %s180, %s194
      %p196 = scmp.eq.s32.totalorder %s23, 0
      %p197 = por %p195, %p196
      %s198 = ssub.s32 %s17, %s24
      %p199 = scmp.eq.s32.totalorder %s198, 0
      %s201 = sadd.s32 %s200, 1
      %s202 = scalar_select %p199, %s200, %s201
      %p205 = pneg %p199
      %p206 = scmp.eq.s32.totalorder %s17, 1
      %p207 = por %p205, %p206
      %p208 = scmp.ne.s32.totalorder %s200, %s203
      %p209 = scmp.eq.s32.totalorder %s17, 0
      %p210 = por %p208, %p209
      %p211 = scmp.ne.s32.totalorder %s200, %s203
      %p212 = scmp.eq.s32.totalorder %s22, 1
      %p213 = por %p211, %p212
      %p214 = scmp.ne.s32.totalorder %s203, %s204
      %p215 = scmp.eq.s32.totalorder %s22, 0
      %p216 = por %p214, %p215
      %p217 = scmp.ne.s32.totalorder %s203, %s204
      %p218 = scmp.eq.s32.totalorder %s23, 1
      %p219 = por %p217, %p218
      %p221 = scmp.ne.s32.totalorder %s204, %s220
      %p222 = scmp.eq.s32.totalorder %s23, 0
      %p223 = por %p221, %p222
      %p224 = scmp.le.s32.totalorder 1, %s17
      %p225 = scmp.lt.s32.totalorder %s17, 3
      %p226 = pnand %p224, %p225
      %p227 = pneg %p226
      // Predicated region
      $region9: #{model_forward.3} parent=5 // pred_check
        _
      $region10: #{model_forward.3} parent=5 // pred_check_branch
        %229 = sbr.rel (%p226) target = $region12
      $region11: #{model_forward.3} parent=5 // pred_region
        %s230 = ssub.s32 %s17, 1
        // Predicated region
        $region13: #{model_forward.3} parent=11 // pred_check
          %p231 = pneg %p64
        $region14: #{model_forward.3} parent=11 // pred_check_branch
          %233 = sbr.rel (%p231) target = $region16
        $region15: #{model_forward.3} parent=11 // pred_region
          _
        $region16: #{model_forward.3} parent=11 // pred_fallthru
          _
        // Predicated region
        $region17: #{model_forward.3} parent=11 // pred_check
          %p234 = pneg %p85
        $region18: #{model_forward.3} parent=11 // pred_check_branch
          %236 = sbr.rel (%p234) target = $region20
        $region19: #{model_forward.3} parent=11 // pred_region
          _
        $region20: #{model_forward.3} parent=11 // pred_fallthru
          _
        // Predicated region
        $region21: #{model_forward.3} parent=11 // pred_check
          %p237 = pneg %p106
        $region22: #{model_forward.3} parent=11 // pred_check_branch
          %239 = sbr.rel (%p237) target = $region24
        $region23: #{model_forward.3} parent=11 // pred_region
          _
        $region24: #{model_forward.3} parent=11 // pred_fallthru
          _
        // Predicated region
        $region25: #{model_forward.3} parent=11 // pred_check
          %p240 = pneg %p127
        $region26: #{model_forward.3} parent=11 // pred_check_branch
          %242 = sbr.rel (%p240) target = $region28
        $region27: #{model_forward.3} parent=11 // pred_region
          _
        $region28: #{model_forward.3} parent=11 // pred_fallthru
          _
        // Predicated region
        $region29: #{model_forward.3} parent=11 // pred_check
          %p243 = pneg %p148
        $region30: #{model_forward.3} parent=11 // pred_check_branch
          %245 = sbr.rel (%p243) target = $region32
        $region31: #{model_forward.3} parent=11 // pred_region
          _
        $region32: #{model_forward.3} parent=11 // pred_fallthru
          _
        // Predicated region
        $region33: #{model_forward.3} parent=11 // pred_check
          %p246 = pneg %p169
        $region34: #{model_forward.3} parent=11 // pred_check_branch
          %248 = sbr.rel (%p246) target = $region36
        $region35: #{model_forward.3} parent=11 // pred_region
          _
        $region36: #{model_forward.3} parent=11 // pred_fallthru
          _
        // Predicated region
        $region37: #{model_forward.3} parent=11 // pred_check
          %p249 = pneg %p190
        $region38: #{model_forward.3} parent=11 // pred_check_branch
          %251 = sbr.rel (%p249) target = $region40
        $region39: #{model_forward.3} parent=11 // pred_region
          _
        $region40: #{model_forward.3} parent=11 // pred_fallthru
          _
      $region12: #{model_forward.3} parent=5 // pred_fallthru
        _
      %p252 = scmp.lt.s32.totalorder %s17, 2
      // Predicated region
      $region41: #{model_forward.3} parent=5 // pred_check
        %p253 = pneg %p252
      $region42: #{model_forward.3} parent=5 // pred_check_branch
        %255 = sbr.rel (%p253) target = $region44
      $region43: #{model_forward.3} parent=5 // pred_region
        // Predicated region
        $region45: #{model_forward.3} parent=43 // pred_check
          %p256 = pneg %p37
        $region46: #{model_forward.3} parent=43 // pred_check_branch
          %258 = sbr.rel (%p256) target = $region48
        $region47: #{model_forward.3} parent=43 // pred_region
          %p259 = scmp.lt.s32.totalorder %s17, 1
          %s260 = scalar_select %p259, %s17, 1
          %s261 = smul.addr %s260, 2
          %s262 = smul.addr %s261, 8
          %s263 = scalar_lea.vmem %s0, %s262
        $region48: #{model_forward.3} parent=43 // pred_fallthru
          _
      $region44: #{model_forward.3} parent=5 // pred_fallthru
        _
      %p264 = scmp.le.s32.totalorder 1, %s17
      %p265 = scmp.lt.s32.totalorder %s17, 3
      %p266 = pnand %p264, %p265
      %p267 = pneg %p266
      // Predicated region
      $region49: #{model_forward.3} parent=5 // pred_check
        _
      $region50: #{model_forward.3} parent=5 // pred_check_branch
        %269 = sbr.rel (%p266) target = $region52
      $region51: #{model_forward.3} parent=5 // pred_region
        %s270 = ssub.s32 %s17, 1
        %p271 = scmp.lt.s32.totalorder %s22, 1
        %s272 = scalar_select %p271, %s22, 1
        %s273 = smul.addr %s272, 2
        %s274 = smul.addr %s273, 8
        %s275 = scalar_lea.vmem %s0, %s274
        %p276 = pneg %p43
        %p277 = pneg %p40
        %p278 = pneg %p64
        %p279 = pneg %p61
        %p280 = pneg %p85
        %p281 = pneg %p82
        %p282 = pneg %p106
        %p283 = pneg %p103
        %p284 = pneg %p127
        %p285 = pneg %p124
        %p286 = pneg %p148
        %p287 = pneg %p145
        %p288 = pneg %p169
        %p289 = pneg %p166
        %p290 = pneg %p190
        %p291 = pneg %p187
        %p292 = pneg %p216
        %p293 = pneg %p213
        %s294 = sand.u32 %s203, 1
        %s295 = scalar_lea.sflag [#allocation3], %s294
        %s296 = sand.u32 %s203, 1
        %s297 = scalar_lea.vmem [#allocation2], %s296
        %p298 = scmp.lt.s32.totalorder %s22, 1
        %s299 = scalar_select %p298, %s22, 1
        %s300 = smul.addr %s299, 2
        %s301 = smul.addr %s300, 8
        %s302 = scalar_lea.vmem %s0, %s301
        %v304 = vld [vmem:[%s302] sm:$0xff]
        %v305 = vld [vmem:[%s302 + $0x8] sm:$0xff]
        %v306 = vld [vmem:[%s1] sm:$0x1]
        %v307 = vld [vmem:[%s2] sm:$0x1]
        %308 = vadd.xlane.f32.xlu0 %v304
        %v309 = vpop.xlane.xlu0 %308
        %310 = vadd.xlane.f32.xlu0 %v305
        %v311 = vpop.xlane.xlu0 %310
        %v312 = vrcp.pop 128.0
        %v313 = vmul.f32 %v309, %v312
        %v314 = vmul.f32 %v311, %v312
        %v315 = vsub.f32 %v304, %v313
        %v316 = vsub.f32 %v305, %v314
        %v317 = vmul.f32 %v315, %v315
        %v318 = vmul.f32 %v316, %v316
        %319 = vadd.xlane.f32.xlu0 %v317
        %v320 = vpop.xlane.xlu0 %319
        %321 = vadd.xlane.f32.xlu0 %v318
        %v322 = vpop.xlane.xlu0 %321
        %v323 = vmul.f32 %v320, %v312
        %v324 = vmul.f32 %v322, %v312
        %v325 = vadd.f32 %v323, 1e-05
        %v326 = vadd.f32 %v324, 1e-05
        %v327 = vrsqrt.pop %v325
        %v328 = vrsqrt.pop %v326
        %v329 = vmul.f32 %v315, %v327
        %v330 = vmul.f32 %v316, %v328
        %v332 = vlaneseq
        %v333 = vshrl.u32 %v332, 7
        %v334 = vsub.s32 0, %v333
        %v335 = vrot.slane %v306, %v334
        %v337 = vmul.f32 %v329, %v335
        %v338 = vmul.f32 %v330, %v335
        %v340 = vlaneseq
        %v341 = vshrl.u32 %v340, 7
        %v342 = vsub.s32 0, %v341
        %v343 = vrot.slane %v307, %v342
        %v345 = vadd.f32 %v337, %v343
        %v346 = vadd.f32 %v338, %v343
        %v347 = vadd.f32 %v345, %v346
        %v348 = vrot.slane %v347, 4
        %v349 = vadd.f32 %v347, %v348
        %v350 = vrot.slane %v349, 2
        %v351 = vadd.f32 %v349, %v350
        %v352 = vrot.slane %v351, 1
        %v353 = vadd.f32 %v351, %v352
        %v354 = vrcp.pop 16.0
        %v355 = vmul.f32 %v353, %v354
        %v356 = vsub.f32 %v345, %v355
        %v357 = vsub.f32 %v346, %v355
        %v358 = vmul.f32 %v356, %v356
        %v359 = vmul.f32 %v357, %v357
        %v360 = vadd.f32 %v358, %v359
        %v361 = vrot.slane %v360, 4
        %v362 = vadd.f32 %v360, %v361
        %v363 = vrot.slane %v362, 2
        %v364 = vadd.f32 %v362, %v363
        %v365 = vrot.slane %v364, 1
        %v366 = vadd.f32 %v364, %v365
        %v367 = vmul.f32 %v366, %v354
        %v368 = vmax.f32 %v367, 1e-12
        %v369 = vrsqrt.pop %v368
        %v370 = vmul.f32 %v368, %v369
        %vm371 = vcmp.eq.f32.partialorder %v368, inf
        %v372 = vsel %vm371, %v368, %v370
        %vm373 = vcmp.eq.f32.partialorder %v368, 0.0
        %v374 = vand.u32 %v368, 2147483648
        %v375 = vsel %vm373, %v374, %v372
        %v376 = vld [vmem:[%s3] sm:$0xf]
        %v377 = vld [vmem:[%s3 + $0x4] sm:$0xf]
        %v378 = vld [vmem:[%s3 + $0x8] sm:$0xf]
        %v379 = vld [vmem:[%s3 + $0xc] sm:$0xf]
        %v380 = vld [vmem:[%s3 + $0x10] sm:$0xf]
        %v381 = vld [vmem:[%s3 + $0x14] sm:$0xf]
        %v382 = vld [vmem:[%s3 + $0x18] sm:$0xf]
        %v383 = vld [vmem:[%s3 + $0x1c] sm:$0xf]
        %v384 = vld [vmem:[%s3 + $0x20] sm:$0xf]
        %v385 = vld [vmem:[%s3 + $0x24] sm:$0xf]
        %v386 = vld [vmem:[%s3 + $0x28] sm:$0xf]
        %v387 = vld [vmem:[%s3 + $0x2c] sm:$0xf]
        %v388 = vld [vmem:[%s3 + $0x30] sm:$0xf]
        %v389 = vld [vmem:[%s3 + $0x34] sm:$0xf]
        %v390 = vld [vmem:[%s3 + $0x38] sm:$0xf]
        %v391 = vld [vmem:[%s3 + $0x3c] sm:$0xf]
        %v392 = vpack.c.bf16 %v346, %v345
        %v393 = vld [vmem:[%s3 + $0x40] sm:$0xf]
        %v394 = vld [vmem:[%s3 + $0x44] sm:$0xf]
        %v395 = vld [vmem:[%s3 + $0x48] sm:$0xf]
        %v396 = vld [vmem:[%s3 + $0x4c] sm:$0xf]
        %v397 = vld [vmem:[%s3 + $0x50] sm:$0xf]
        %v398 = vld [vmem:[%s3 + $0x54] sm:$0xf]
        %v399 = vld [vmem:[%s3 + $0x58] sm:$0xf]
        %v400 = vld [vmem:[%s3 + $0x5c] sm:$0xf]
        %v401 = vld [vmem:[%s3 + $0x60] sm:$0xf]
        %v402 = vld [vmem:[%s3 + $0x64] sm:$0xf]
        %v403 = vld [vmem:[%s3 + $0x68] sm:$0xf]
        %v404 = vld [vmem:[%s3 + $0x6c] sm:$0xf]
        %v405 = vld [vmem:[%s3 + $0x70] sm:$0xf]
        %v406 = vld [vmem:[%s3 + $0x74] sm:$0xf]
        %v407 = vld [vmem:[%s3 + $0x78] sm:$0xf]
        %v408 = vld [vmem:[%s3 + $0x7c] sm:$0xf]
        %v409 = vpack.c.bf16 %v355, %v355
        %v426 = vunpack.c.l.b16 %v393
        %v427 = vunpack.c.l.b16 %v394
        %v428 = vunpack.c.l.b16 %v395
        %v429 = vunpack.c.l.b16 %v396
        %v430 = vunpack.c.l.b16 %v397
        %v431 = vunpack.c.l.b16 %v398
        %v432 = vunpack.c.l.b16 %v399
        %v433 = vunpack.c.l.b16 %v400
        %v434 = vunpack.c.l.b16 %v401
        %v435 = vunpack.c.l.b16 %v402
        %v436 = vunpack.c.l.b16 %v403
        %v437 = vunpack.c.l.b16 %v404
        %v438 = vunpack.c.l.b16 %v405
        %v439 = vunpack.c.l.b16 %v406
        %v440 = vunpack.c.l.b16 %v407
        %v441 = vunpack.c.l.b16 %v408
        %v442 = vpack.c.b16 %v427, %v426
        %v443 = vpack.c.b16 %v429, %v428
        %v444 = vpack.c.b16 %v431, %v430
        %v445 = vpack.c.b16 %v433, %v432
        %v446 = vpack.c.b16 %v435, %v434
        %v447 = vpack.c.b16 %v437, %v436
        %v448 = vpack.c.b16 %v439, %v438
        %v449 = vpack.c.b16 %v441, %v440
        %458 = vmatprep.subr.bf16.mxu0 0
        %459 = vmatpush1.bf16.msra.mxu0 %v449
        %460 = vmatprep.subr.bf16.mxu0 0
        %461 = vmatpush1.bf16.msra.mxu0 %v448
        %462 = vmatprep.subr.bf16.mxu0 0
        %463 = vmatpush1.bf16.msra.mxu0 %v447
        %464 = vmatprep.subr.bf16.mxu0 0
        %465 = vmatpush1.bf16.msra.mxu0 %v446
        %466 = vmatprep.subr.bf16.mxu0 0
        %467 = vmatpush1.bf16.msra.mxu0 %v445
        %468 = vmatprep.subr.bf16.mxu0 0
        %469 = vmatpush1.bf16.msra.mxu0 %v444
        %470 = vmatprep.subr.bf16.mxu0 0
        %471 = vmatpush1.bf16.msra.mxu0 %v443
        %472 = vmatprep.subr.bf16.mxu0 0
        %473 = vmatpush1.bf16.msra.mxu0 %v442
        %474 = vmatprep.subr.bf16.mxu0 0
        %475 = vmatpush2.bf16.msra.mxu0 0
        %476 = vmatprep.subr.bf16.mxu0 0
        %477 = vmatpush2.bf16.msra.mxu0 0
        %478 = vmatprep.subr.bf16.mxu0 0
        %479 = vmatpush2.bf16.msra.mxu0 0
        %480 = vmatprep.subr.bf16.mxu0 0
        %481 = vmatpush2.bf16.msra.mxu0 0
        %482 = vmatprep.subr.bf16.mxu0 0
        %483 = vmatpush2.bf16.msra.mxu0 0
        %484 = vmatprep.subr.bf16.mxu0 0
        %485 = vmatpush2.bf16.msra.mxu0 0
        %486 = vmatprep.subr.bf16.mxu0 0
        %487 = vmatpush2.bf16.msra.mxu0 0
        %488 = vmatprep.subr.bf16.mxu0 0
        %489 = vmatpush2.bf16.msra.mxu0 0
        %490 = vmatprep.mubr.bf16.mxu0 0
        %491 = vmatmul.mubr.bf16.gmra.mxu0 %v409
        %v492 = vpop.f32.mrf.mxu0
        %v493 = vadd.f32 0.0, %v492
        %v494 = vpop.f32.mrf.mxu0
        %v495 = vpop.f32.mrf.mxu0
        %v496 = vpop.f32.mrf.mxu0
        %497 = vdwg.mxu0
        %v498 = vlaneseq
        %v499 = vshrl.u32 %v498, 7
        %v500 = vsub.s32 0, %v499
        %v501 = vrot.slane %v493, %v500
        %v518 = vunpack.c.l.b16 %v376
        %v519 = vunpack.c.l.b16 %v377
        %v520 = vunpack.c.l.b16 %v378
        %v521 = vunpack.c.l.b16 %v379
        %v522 = vunpack.c.l.b16 %v380
        %v523 = vunpack.c.l.b16 %v381
        %v524 = vunpack.c.l.b16 %v382
        %v525 = vunpack.c.l.b16 %v383
        %v526 = vunpack.c.l.b16 %v384
        %v527 = vunpack.c.l.b16 %v385
        %v528 = vunpack.c.l.b16 %v386
        %v529 = vunpack.c.l.b16 %v387
        %v530 = vunpack.c.l.b16 %v388
        %v531 = vunpack.c.l.b16 %v389
        %v532 = vunpack.c.l.b16 %v390
        %v533 = vunpack.c.l.b16 %v391
        %v534 = vpack.c.b16 %v519, %v518
        %v535 = vpack.c.b16 %v521, %v520
        %v536 = vpack.c.b16 %v523, %v522
        %v537 = vpack.c.b16 %v525, %v524
        %v538 = vpack.c.b16 %v527, %v526
        %v539 = vpack.c.b16 %v529, %v528
        %v540 = vpack.c.b16 %v531, %v530
        %v541 = vpack.c.b16 %v533, %v532
        %550 = vmatprep.subr.bf16.mxu0 0
        %551 = vmatpush1.bf16.msra.mxu0 %v541
        %552 = vmatprep.subr.bf16.mxu0 0
        %553 = vmatpush1.bf16.msra.mxu0 %v540
        %554 = vmatprep.subr.bf16.mxu0 0
        %555 = vmatpush1.bf16.msra.mxu0 %v539
        %556 = vmatprep.subr.bf16.mxu0 0
        %557 = vmatpush1.bf16.msra.mxu0 %v538
        %558 = vmatprep.subr.bf16.mxu0 0
        %559 = vmatpush1.bf16.msra.mxu0 %v537
        %560 = vmatprep.subr.bf16.mxu0 0
        %561 = vmatpush1.bf16.msra.mxu0 %v536
        %562 = vmatprep.subr.bf16.mxu0 0
        %563 = vmatpush1.bf16.msra.mxu0 %v535
        %564 = vmatprep.subr.bf16.mxu0 0
        %565 = vmatpush1.bf16.msra.mxu0 %v534
        %566 = vmatprep.subr.bf16.mxu0 0
        %567 = vmatpush2.bf16.msra.mxu0 0
        %568 = vmatprep.subr.bf16.mxu0 0
        %569 = vmatpush2.bf16.msra.mxu0 0
        %570 = vmatprep.subr.bf16.mxu0 0
        %571 = vmatpush2.bf16.msra.mxu0 0
        %572 = vmatprep.subr.bf16.mxu0 0
        %573 = vmatpush2.bf16.msra.mxu0 0
        %574 = vmatprep.subr.bf16.mxu0 0
        %575 = vmatpush2.bf16.msra.mxu0 0
        %576 = vmatprep.subr.bf16.mxu0 0
        %577 = vmatpush2.bf16.msra.mxu0 0
        %578 = vmatprep.subr.bf16.mxu0 0
        %579 = vmatpush2.bf16.msra.mxu0 0
        %580 = vmatprep.subr.bf16.mxu0 0
        %581 = vmatpush2.bf16.msra.mxu0 0
        %582 = vmatprep.mubr.bf16.mxu0 0
        %583 = vmatmul.mubr.bf16.gmra.mxu0 %v392
        %v584 = vpop.f32.mrf.mxu0
        %v585 = vadd.f32 %v501, %v584
        %v586 = vpop.f32.mrf.mxu0
        %v587 = vpop.f32.mrf.mxu0
        %v588 = vadd.f32 %v501, %v587
        %v589 = vpop.f32.mrf.mxu0
        %590 = vdwg.mxu0
        %v591 = vld [vmem:[%s3 + $0x80] sm:$0xf]
        %v592 = vld [vmem:[%s3 + $0x84] sm:$0xf]
        %v593 = vld [vmem:[%s3 + $0x88] sm:$0xf]
        %v594 = vld [vmem:[%s3 + $0x8c] sm:$0xf]
        %v595 = vld [vmem:[%s3 + $0x90] sm:$0xf]
        %v596 = vld [vmem:[%s3 + $0x94] sm:$0xf]
        %v597 = vld [vmem:[%s3 + $0x98] sm:$0xf]
        %v598 = vld [vmem:[%s3 + $0x9c] sm:$0xf]
        %v599 = vld [vmem:[%s3 + $0xa0] sm:$0xf]
        %v600 = vld [vmem:[%s3 + $0xa4] sm:$0xf]
        %v601 = vld [vmem:[%s3 + $0xa8] sm:$0xf]
        %v602 = vld [vmem:[%s3 + $0xac] sm:$0xf]
        %v603 = vld [vmem:[%s3 + $0xb0] sm:$0xf]
        %v604 = vld [vmem:[%s3 + $0xb4] sm:$0xf]
        %v605 = vld [vmem:[%s3 + $0xb8] sm:$0xf]
        %v606 = vld [vmem:[%s3 + $0xbc] sm:$0xf]
        %v607 = vpack.c.bf16 %v375, %v375
        %v624 = vunpack.c.l.b16 %v591
        %v625 = vunpack.c.l.b16 %v592
        %v626 = vunpack.c.l.b16 %v593
        %v627 = vunpack.c.l.b16 %v594
        %v628 = vunpack.c.l.b16 %v595
        %v629 = vunpack.c.l.b16 %v596
        %v630 = vunpack.c.l.b16 %v597
        %v631 = vunpack.c.l.b16 %v598
        %v632 = vunpack.c.l.b16 %v599
        %v633 = vunpack.c.l.b16 %v600
        %v634 = vunpack.c.l.b16 %v601
        %v635 = vunpack.c.l.b16 %v602
        %v636 = vunpack.c.l.b16 %v603
        %v637 = vunpack.c.l.b16 %v604
        %v638 = vunpack.c.l.b16 %v605
        %v639 = vunpack.c.l.b16 %v606
        %v640 = vpack.c.b16 %v625, %v624
        %v641 = vpack.c.b16 %v627, %v626
        %v642 = vpack.c.b16 %v629, %v628
        %v643 = vpack.c.b16 %v631, %v630
        %v644 = vpack.c.b16 %v633, %v632
        %v645 = vpack.c.b16 %v635, %v634
        %v646 = vpack.c.b16 %v637, %v636
        %v647 = vpack.c.b16 %v639, %v638
        %656 = vmatprep.subr.bf16.mxu0 0
        %657 = vmatpush1.bf16.msra.mxu0 %v647
        %658 = vmatprep.subr.bf16.mxu0 0
        %659 = vmatpush1.bf16.msra.mxu0 %v646
        %660 = vmatprep.subr.bf16.mxu0 0
        %661 = vmatpush1.bf16.msra.mxu0 %v645
        %662 = vmatprep.subr.bf16.mxu0 0
        %663 = vmatpush1.bf16.msra.mxu0 %v644
        %664 = vmatprep.subr.bf16.mxu0 0
        %665 = vmatpush1.bf16.msra.mxu0 %v643
        %666 = vmatprep.subr.bf16.mxu0 0
        %667 = vmatpush1.bf16.msra.mxu0 %v642
        %668 = vmatprep.subr.bf16.mxu0 0
        %669 = vmatpush1.bf16.msra.mxu0 %v641
        %670 = vmatprep.subr.bf16.mxu0 0
        %671 = vmatpush1.bf16.msra.mxu0 %v640
        %672 = vmatprep.subr.bf16.mxu0 0
        %673 = vmatpush2.bf16.msra.mxu0 0
        %674 = vmatprep.subr.bf16.mxu0 0
        %675 = vmatpush2.bf16.msra.mxu0 0
        %676 = vmatprep.subr.bf16.mxu0 0
        %677 = vmatpush2.bf16.msra.mxu0 0
        %678 = vmatprep.subr.bf16.mxu0 0
        %679 = vmatpush2.bf16.msra.mxu0 0
        %680 = vmatprep.subr.bf16.mxu0 0
        %681 = vmatpush2.bf16.msra.mxu0 0
        %682 = vmatprep.subr.bf16.mxu0 0
        %683 = vmatpush2.bf16.msra.mxu0 0
        %684 = vmatprep.subr.bf16.mxu0 0
        %685 = vmatpush2.bf16.msra.mxu0 0
        %686 = vmatprep.subr.bf16.mxu0 0
        %687 = vmatpush2.bf16.msra.mxu0 0
        %688 = vmatprep.mubr.bf16.mxu0 0
        %689 = vmatmul.mubr.bf16.gmra.mxu0 %v607
        %v690 = vpop.f32.mrf.mxu0
        %v691 = vadd.f32 0.0, %v690
        %v692 = vpop.f32.mrf.mxu0
        %v693 = vpop.f32.mrf.mxu0
        %v694 = vpop.f32.mrf.mxu0
        %695 = vdwg.mxu0
        %v696 = vlaneseq
        %v697 = vshrl.u32 %v696, 7
        %v698 = vsub.s32 0, %v697
        %v699 = vrot.slane %v691, %v698
        %v700 = vadd.f32 %v585, %v699
        %v701 = vadd.f32 %v588, %v699
        %v702 = vld [vmem:[%s4] sm:$0x1]
        %v704 = vlaneseq
        %v705 = vshrl.u32 %v704, 7
        %v706 = vsub.s32 0, %v705
        %v707 = vrot.slane %v702, %v706
        %v709 = vadd.f32 %v700, %v707
        %v710 = vadd.f32 %v701, %v707
        %v711 = vtanh.pop %v709
        %v712 = vtanh.pop %v710
        %v713 = vld [vmem:[%s5] sm:$0xf]
        %v714 = vld [vmem:[%s5 + $0x4] sm:$0xf]
        %v715 = vld [vmem:[%s5 + $0x8] sm:$0xf]
        %v716 = vld [vmem:[%s5 + $0xc] sm:$0xf]
        %v717 = vld [vmem:[%s5 + $0x10] sm:$0xf]
        %v718 = vld [vmem:[%s5 + $0x14] sm:$0xf]
        %v719 = vld [vmem:[%s5 + $0x18] sm:$0xf]
        %v720 = vld [vmem:[%s5 + $0x1c] sm:$0xf]
        %v721 = vld [vmem:[%s5 + $0x20] sm:$0xf]
        %v722 = vld [vmem:[%s5 + $0x24] sm:$0xf]
        %v723 = vld [vmem:[%s5 + $0x28] sm:$0xf]
        %v724 = vld [vmem:[%s5 + $0x2c] sm:$0xf]
        %v725 = vld [vmem:[%s5 + $0x30] sm:$0xf]
        %v726 = vld [vmem:[%s5 + $0x34] sm:$0xf]
        %v727 = vld [vmem:[%s5 + $0x38] sm:$0xf]
        %v728 = vld [vmem:[%s5 + $0x3c] sm:$0xf]
        %v729 = vpack.c.bf16 %v712, %v711
        %v730 = vld [vmem:[%s6] sm:$0x1]
        %v732 = vlaneseq
        %v733 = vshrl.u32 %v732, 7
        %v734 = vsub.s32 0, %v733
        %v735 = vrot.slane %v730, %v734
        %v753 = vunpack.c.l.b16 %v713
        %v754 = vunpack.c.l.b16 %v714
        %v755 = vunpack.c.l.b16 %v715
        %v756 = vunpack.c.l.b16 %v716
        %v757 = vunpack.c.l.b16 %v717
        %v758 = vunpack.c.l.b16 %v718
        %v759 = vunpack.c.l.b16 %v719
        %v760 = vunpack.c.l.b16 %v720
        %v761 = vunpack.c.l.b16 %v721
        %v762 = vunpack.c.l.b16 %v722
        %v763 = vunpack.c.l.b16 %v723
        %v764 = vunpack.c.l.b16 %v724
        %v765 = vunpack.c.l.b16 %v725
        %v766 = vunpack.c.l.b16 %v726
        %v767 = vunpack.c.l.b16 %v727
        %v768 = vunpack.c.l.b16 %v728
        %v769 = vpack.c.b16 %v754, %v753
        %v770 = vpack.c.b16 %v756, %v755
        %v771 = vpack.c.b16 %v758, %v757
        %v772 = vpack.c.b16 %v760, %v759
        %v773 = vpack.c.b16 %v762, %v761
        %v774 = vpack.c.b16 %v764, %v763
        %v775 = vpack.c.b16 %v766, %v765
        %v776 = vpack.c.b16 %v768, %v767
        %785 = vmatprep.subr.bf16.mxu0 0
        %786 = vmatpush1.bf16.msra.mxu0 %v776
        %787 = vmatprep.subr.bf16.mxu0 0
        %788 = vmatpush1.bf16.msra.mxu0 %v775
        %789 = vmatprep.subr.bf16.mxu0 0
        %790 = vmatpush1.bf16.msra.mxu0 %v774
        %791 = vmatprep.subr.bf16.mxu0 0
        %792 = vmatpush1.bf16.msra.mxu0 %v773
        %793 = vmatprep.subr.bf16.mxu0 0
        %794 = vmatpush1.bf16.msra.mxu0 %v772
        %795 = vmatprep.subr.bf16.mxu0 0
        %796 = vmatpush1.bf16.msra.mxu0 %v771
        %797 = vmatprep.subr.bf16.mxu0 0
        %798 = vmatpush1.bf16.msra.mxu0 %v770
        %799 = vmatprep.subr.bf16.mxu0 0
        %800 = vmatpush1.bf16.msra.mxu0 %v769
        %801 = vmatprep.subr.bf16.mxu0 0
        %802 = vmatpush2.bf16.msra.mxu0 0
        %803 = vmatprep.subr.bf16.mxu0 0
        %804 = vmatpush2.bf16.msra.mxu0 0
        %805 = vmatprep.subr.bf16.mxu0 0
        %806 = vmatpush2.bf16.msra.mxu0 0
        %807 = vmatprep.subr.bf16.mxu0 0
        %808 = vmatpush2.bf16.msra.mxu0 0
        %809 = vmatprep.subr.bf16.mxu0 0
        %810 = vmatpush2.bf16.msra.mxu0 0
        %811 = vmatprep.subr.bf16.mxu0 0
        %812 = vmatpush2.bf16.msra.mxu0 0
        %813 = vmatprep.subr.bf16.mxu0 0
        %814 = vmatpush2.bf16.msra.mxu0 0
        %815 = vmatprep.subr.bf16.mxu0 0
        %816 = vmatpush2.bf16.msra.mxu0 0
        %817 = vmatprep.mubr.bf16.mxu0 0
        %818 = vmatmul.mubr.bf16.gmra.mxu0 %v729
        %v819 = vpop.f32.mrf.mxu0
        %v820 = vadd.f32 %v735, %v819
        %v821 = vpop.f32.mrf.mxu0
        %v822 = vpop.f32.mrf.mxu0
        %v823 = vadd.f32 %v735, %v822
        %v824 = vpop.f32.mrf.mxu0
        %825 = vdwg.mxu0
        %v826 = vmax.f32 %v820, %v823
        %v827 = vrot.slane %v826, 4
        %v828 = vmax.f32 %v826, %v827
        %v829 = vrot.slane %v828, 2
        %v830 = vmax.f32 %v828, %v829
        %v831 = vrot.slane %v830, 1
        %v832 = vmax.f32 %v830, %v831
        %v833 = vsub.f32 %v820, %v832
        %v834 = vsub.f32 %v823, %v832
        %v835 = vmul.f32 %v833, 1.442695
        %v836 = vpow.pop %v835
        %v837 = vmul.f32 %v834, 1.442695
        %v838 = vpow.pop %v837
        %v839 = vadd.f32 %v836, %v838
        %v840 = vrot.slane %v839, 4
        %v841 = vadd.f32 %v839, %v840
        %v842 = vrot.slane %v841, 2
        %v843 = vadd.f32 %v841, %v842
        %v844 = vrot.slane %v843, 1
        %v845 = vadd.f32 %v843, %v844
        %v846 = vrcp.pop %v845
        %v847 = vmul.f32 %v836, %v846
        %v848 = vmul.f32 %v838, %v846
        %v849 = vmul.f32 %v847, %v345
        %v850 = vmul.f32 %v848, %v346
        %v851 = vadd.f32 %v849, %v850
        %v852 = vrot.slane %v851, 4
        %v853 = vadd.f32 %v851, %v852
        %v854 = vrot.slane %v853, 2
        %v855 = vadd.f32 %v853, %v854
        %v856 = vrot.slane %v855, 1
        %v857 = vadd.f32 %v855, %v856
        %v858 = vsub.f32 %v345, %v857
        %v859 = vsub.f32 %v346, %v857
        %v860 = vmul.f32 %v858, %v858
        %v861 = vmul.f32 %v859, %v859
        %v862 = vmul.f32 %v847, %v860
        %v863 = vmul.f32 %v848, %v861
        %v864 = vadd.f32 %v862, %v863
        %v865 = vrot.slane %v864, 4
        %v866 = vadd.f32 %v864, %v865
        %v867 = vrot.slane %v866, 2
        %v868 = vadd.f32 %v866, %v867
        %v869 = vrot.slane %v868, 1
        %v870 = vadd.f32 %v868, %v869
        %v871 = vmax.f32 %v870, 1e-12
        %v872 = vrsqrt.pop %v871
        %v873 = vmul.f32 %v871, %v872
        %vm874 = vcmp.eq.f32.partialorder %v871, inf
        %v875 = vsel %vm874, %v871, %v873
        %vm876 = vcmp.eq.f32.partialorder %v871, 0.0
        %v877 = vand.u32 %v871, 2147483648
        %v878 = vsel %vm876, %v877, %v875
        %v879 = vld [vmem:[%s7] sm:$0xf]
        %v880 = vld [vmem:[%s7 + $0x4] sm:$0xf]
        %v881 = vld [vmem:[%s7 + $0x8] sm:$0xf]
        %v882 = vld [vmem:[%s7 + $0xc] sm:$0xf]
        %v883 = vld [vmem:[%s7 + $0x10] sm:$0xf]
        %v884 = vld [vmem:[%s7 + $0x14] sm:$0xf]
        %v885 = vld [vmem:[%s7 + $0x18] sm:$0xf]
        %v886 = vld [vmem:[%s7 + $0x1c] sm:$0xf]
        %v887 = vld [vmem:[%s7 + $0x20] sm:$0xf]
        %v888 = vld [vmem:[%s7 + $0x24] sm:$0xf]
        %v889 = vld [vmem:[%s7 + $0x28] sm:$0xf]
        %v890 = vld [vmem:[%s7 + $0x2c] sm:$0xf]
        %v891 = vld [vmem:[%s7 + $0x30] sm:$0xf]
        %v892 = vld [vmem:[%s7 + $0x34] sm:$0xf]
        %v893 = vld [vmem:[%s7 + $0x38] sm:$0xf]
        %v894 = vld [vmem:[%s7 + $0x3c] sm:$0xf]
        %v895 = vpack.c.bf16 %v857, %v857
        %v896 = vld [vmem:[%s7 + $0x40] sm:$0xf]
        %v897 = vld [vmem:[%s7 + $0x44] sm:$0xf]
        %v898 = vld [vmem:[%s7 + $0x48] sm:$0xf]
        %v899 = vld [vmem:[%s7 + $0x4c] sm:$0xf]
        %v900 = vld [vmem:[%s7 + $0x50] sm:$0xf]
        %v901 = vld [vmem:[%s7 + $0x54] sm:$0xf]
        %v902 = vld [vmem:[%s7 + $0x58] sm:$0xf]
        %v903 = vld [vmem:[%s7 + $0x5c] sm:$0xf]
        %v904 = vld [vmem:[%s7 + $0x60] sm:$0xf]
        %v905 = vld [vmem:[%s7 + $0x64] sm:$0xf]
        %v906 = vld [vmem:[%s7 + $0x68] sm:$0xf]
        %v907 = vld [vmem:[%s7 + $0x6c] sm:$0xf]
        %v908 = vld [vmem:[%s7 + $0x70] sm:$0xf]
        %v909 = vld [vmem:[%s7 + $0x74] sm:$0xf]
        %v910 = vld [vmem:[%s7 + $0x78] sm:$0xf]
        %v911 = vld [vmem:[%s7 + $0x7c] sm:$0xf]
        %v912 = vpack.c.bf16 %v878, %v878
        %v929 = vunpack.c.l.b16 %v896
        %v930 = vunpack.c.l.b16 %v897
        %v931 = vunpack.c.l.b16 %v898
        %v932 = vunpack.c.l.b16 %v899
        %v933 = vunpack.c.l.b16 %v900
        %v934 = vunpack.c.l.b16 %v901
        %v935 = vunpack.c.l.b16 %v902
        %v936 = vunpack.c.l.b16 %v903
        %v937 = vunpack.c.l.b16 %v904
        %v938 = vunpack.c.l.b16 %v905
        %v939 = vunpack.c.l.b16 %v906
        %v940 = vunpack.c.l.b16 %v907
        %v941 = vunpack.c.l.b16 %v908
        %v942 = vunpack.c.l.b16 %v909
        %v943 = vunpack.c.l.b16 %v910
        %v944 = vunpack.c.l.b16 %v911
        %v945 = vpack.c.b16 %v930, %v929
        %v946 = vpack.c.b16 %v932, %v931
        %v947 = vpack.c.b16 %v934, %v933
        %v948 = vpack.c.b16 %v936, %v935
        %v949 = vpack.c.b16 %v938, %v937
        %v950 = vpack.c.b16 %v940, %v939
        %v951 = vpack.c.b16 %v942, %v941
        %v952 = vpack.c.b16 %v944, %v943
        %961 = vmatprep.subr.bf16.mxu0 0
        %962 = vmatpush1.bf16.msra.mxu0 %v952
        %963 = vmatprep.subr.bf16.mxu0 0
        %964 = vmatpush1.bf16.msra.mxu0 %v951
        %965 = vmatprep.subr.bf16.mxu0 0
        %966 = vmatpush1.bf16.msra.mxu0 %v950
        %967 = vmatprep.subr.bf16.mxu0 0
        %968 = vmatpush1.bf16.msra.mxu0 %v949
        %969 = vmatprep.subr.bf16.mxu0 0
        %970 = vmatpush1.bf16.msra.mxu0 %v948
        %971 = vmatprep.subr.bf16.mxu0 0
        %972 = vmatpush1.bf16.msra.mxu0 %v947
        %973 = vmatprep.subr.bf16.mxu0 0
        %974 = vmatpush1.bf16.msra.mxu0 %v946
        %975 = vmatprep.subr.bf16.mxu0 0
        %976 = vmatpush1.bf16.msra.mxu0 %v945
        %977 = vmatprep.subr.bf16.mxu0 0
        %978 = vmatpush2.bf16.msra.mxu0 0
        %979 = vmatprep.subr.bf16.mxu0 0
        %980 = vmatpush2.bf16.msra.mxu0 0
        %981 = vmatprep.subr.bf16.mxu0 0
        %982 = vmatpush2.bf16.msra.mxu0 0
        %983 = vmatprep.subr.bf16.mxu0 0
        %984 = vmatpush2.bf16.msra.mxu0 0
        %985 = vmatprep.subr.bf16.mxu0 0
        %986 = vmatpush2.bf16.msra.mxu0 0
        %987 = vmatprep.subr.bf16.mxu0 0
        %988 = vmatpush2.bf16.msra.mxu0 0
        %989 = vmatprep.subr.bf16.mxu0 0
        %990 = vmatpush2.bf16.msra.mxu0 0
        %991 = vmatprep.subr.bf16.mxu0 0
        %992 = vmatpush2.bf16.msra.mxu0 0
        %993 = vmatprep.mubr.bf16.mxu0 0
        %994 = vmatmul.mubr.bf16.gmra.mxu0 %v912
        %v995 = vpop.f32.mrf.mxu0
        %v996 = vadd.f32 0.0, %v995
        %v997 = vpop.f32.mrf.mxu0
        %v998 = vpop.f32.mrf.mxu0
        %v999 = vpop.f32.mrf.mxu0
        %1000 = vdwg.mxu0
        %v1017 = vunpack.c.l.b16 %v879
        %v1018 = vunpack.c.l.b16 %v880
        %v1019 = vunpack.c.l.b16 %v881
        %v1020 = vunpack.c.l.b16 %v882
        %v1021 = vunpack.c.l.b16 %v883
        %v1022 = vunpack.c.l.b16 %v884
        %v1023 = vunpack.c.l.b16 %v885
        %v1024 = vunpack.c.l.b16 %v886
        %v1025 = vunpack.c.l.b16 %v887
        %v1026 = vunpack.c.l.b16 %v888
        %v1027 = vunpack.c.l.b16 %v889
        %v1028 = vunpack.c.l.b16 %v890
        %v1029 = vunpack.c.l.b16 %v891
        %v1030 = vunpack.c.l.b16 %v892
        %v1031 = vunpack.c.l.b16 %v893
        %v1032 = vunpack.c.l.b16 %v894
        %v1033 = vpack.c.b16 %v1018, %v1017
        %v1034 = vpack.c.b16 %v1020, %v1019
        %v1035 = vpack.c.b16 %v1022, %v1021
        %v1036 = vpack.c.b16 %v1024, %v1023
        %v1037 = vpack.c.b16 %v1026, %v1025
        %v1038 = vpack.c.b16 %v1028, %v1027
        %v1039 = vpack.c.b16 %v1030, %v1029
        %v1040 = vpack.c.b16 %v1032, %v1031
        %1049 = vmatprep.subr.bf16.mxu0 0
        %1050 = vmatpush1.bf16.msra.mxu0 %v1040
        %1051 = vmatprep.subr.bf16.mxu0 0
        %1052 = vmatpush1.bf16.msra.mxu0 %v1039
        %1053 = vmatprep.subr.bf16.mxu0 0
        %1054 = vmatpush1.bf16.msra.mxu0 %v1038
        %1055 = vmatprep.subr.bf16.mxu0 0
        %1056 = vmatpush1.bf16.msra.mxu0 %v1037
        %1057 = vmatprep.subr.bf16.mxu0 0
        %1058 = vmatpush1.bf16.msra.mxu0 %v1036
        %1059 = vmatprep.subr.bf16.mxu0 0
        %1060 = vmatpush1.bf16.msra.mxu0 %v1035
        %1061 = vmatprep.subr.bf16.mxu0 0
        %1062 = vmatpush1.bf16.msra.mxu0 %v1034
        %1063 = vmatprep.subr.bf16.mxu0 0
        %1064 = vmatpush1.bf16.msra.mxu0 %v1033
        %1065 = vmatprep.subr.bf16.mxu0 0
        %1066 = vmatpush2.bf16.msra.mxu0 0
        %1067 = vmatprep.subr.bf16.mxu0 0
        %1068 = vmatpush2.bf16.msra.mxu0 0
        %1069 = vmatprep.subr.bf16.mxu0 0
        %1070 = vmatpush2.bf16.msra.mxu0 0
        %1071 = vmatprep.subr.bf16.mxu0 0
        %1072 = vmatpush2.bf16.msra.mxu0 0
        %1073 = vmatprep.subr.bf16.mxu0 0
        %1074 = vmatpush2.bf16.msra.mxu0 0
        %1075 = vmatprep.subr.bf16.mxu0 0
        %1076 = vmatpush2.bf16.msra.mxu0 0
        %1077 = vmatprep.subr.bf16.mxu0 0
        %1078 = vmatpush2.bf16.msra.mxu0 0
        %1079 = vmatprep.subr.bf16.mxu0 0
        %1080 = vmatpush2.bf16.msra.mxu0 0
        %1081 = vmatprep.mubr.bf16.mxu0 0
        %1082 = vmatmul.mubr.bf16.gmra.mxu0 %v895
        %v1083 = vpop.f32.mrf.mxu0
        %v1084 = vadd.f32 %v996, %v1083
        %v1085 = vpop.f32.mrf.mxu0
        %v1086 = vpop.f32.mrf.mxu0
        %v1087 = vpop.f32.mrf.mxu0
        %1088 = vdwg.mxu0
        %1089 = vst [vmem:[%s297] sm:$0x1] %v1084
        %s1090 = sand.u32 %s203, 1
        %s1091 = scalar_lea.sflag [#allocation3], %s1090
        %s1092 = sand.u32 %s203, 1
        %s1093 = scalar_lea.vmem [#allocation2], %s1092
        // Predicated region
        $region53: #{model_forward.3} parent=51 // pred_check
          %p1094 = pneg %p213
        $region54: #{model_forward.3} parent=51 // pred_check_branch
          %1096 = sbr.rel (%p1094) target = $region56
        $region55: #{model_forward.3} parent=51 // pred_region
          %s1098 = ssub.s32 16, 16
          %1099 = vsyncadd %s1091, %s1098
          %s1100 = smul.addr %s22, 16
          %s1101 = scalar_lea.hbm %s8, %s1100
          %s1103 = sshll.u32 %s1093, 4
          %s1104 = int_to_ptr.vmem [resolvable:$true] %s1103
          %1106 = dma.vmem_to_hbm [thread:$0]  %s1104, 16, %s1101, %s1091
        $region56: #{model_forward.3} parent=51 // pred_fallthru
          _
      $region52: #{model_forward.3} parent=5 // pred_fallthru
        _
      %p1107 = scmp.le.s32.totalorder 2, %s17
      // Predicated region
      $region57: #{model_forward.3} parent=5 // pred_check
        %p1108 = pneg %p1107
      $region58: #{model_forward.3} parent=5 // pred_check_branch
        %1110 = sbr.rel (%p1108) target = $region60
      $region59: #{model_forward.3} parent=5 // pred_region
        %s1111 = ssub.s32 %s17, 2
        // Predicated region
        $region61: #{model_forward.3} parent=59 // pred_check
          %p1112 = pneg %p219
        $region62: #{model_forward.3} parent=59 // pred_check_branch
          %1114 = sbr.rel (%p1112) target = $region64
        $region63: #{model_forward.3} parent=59 // pred_region
          %s1115 = sand.u32 %s204, 1
          %s1116 = scalar_lea.sflag [#allocation3], %s1115
          %s1117 = sand.u32 %s204, 1
          %s1118 = scalar_lea.vmem [#allocation2], %s1117
          %1119 = dma.done %s1116, 16
        $region64: #{model_forward.3} parent=59 // pred_fallthru
          _
      $region60: #{model_forward.3} parent=5 // pred_fallthru
        _
    $region6: #{model_forward.3} parent=1 // loop_footer
      %s21 = sadd.s32 1, %s17
    $region7: #{model_forward.3} parent=1 // loop_footer_branch
      %16 = sbr.rel target = $region3
    $region8: #{model_forward.3} parent=1 // loop_exit
      _
    %1120 = vsyncpa [#allocation3], 1
    %s1121 = scalar_lea.sflag [#allocation3], 1
    %1122 = vsyncpa %s1121, 1

</llo_original>
